<compile_context>
chip_gen: v7x
topology: tpu7x:2x2x1
jax: 0.10.0
libtpu: 0.0.40
codegen_flags: <defaults>
</compile_context>

<pallas_src>
import functools
import math

import jax
import jax.numpy as jnp
from jax import lax
from jax.experimental import pallas as pl
from jax.experimental.pallas import tpu as pltpu

EPS = 1e-6
NEG_INF = -1e9


# ----------------------------- in-kernel helpers -----------------------------

def _layer_norm(x, a, b):
    """x: (S, D) f32;  a, b: (1, D).  Torch: a*(x-mean)/(eps+std_unbiased)+b."""
    d = x.shape[-1]
    mean = jnp.mean(x, axis=-1, keepdims=True)
    c = x - mean
    var = jnp.sum(c * c, axis=-1, keepdims=True) * (1.0 / (d - 1))  # unbiased (ddof=1)
    std = jnp.sqrt(var)
    # EUP reciprocal (approx) instead of VALU divide; negligible error vs torch.
    return a * c * pl.reciprocal(EPS + std, approx=True) + b


# ----------------------------- fused sublayer kernels ------------------------

def _attn_sublayer_kernel(x_ref, kv_ref, m_ref,
                          a_ref, b_ref,
                          wq_ref, bq_ref, wk_ref, bk_ref, wv_ref, bv_ref,
                          wo_ref, bo_ref,
                          o_ref, *, head, self_attn):
    """out = x + W_o @ MHA(LN(x), kv, kv, mask) + b_o   (one batch row per step)."""
    x = x_ref[0].astype(jnp.float32)                       # (Sq, D) residual input
    y_q = _layer_norm(x, a_ref[...], b_ref[...])           # normalized query source
    # Self-attn: K/V from LN(x).  Cross-attn: K/V from raw encoder memory.
    y_kv = y_q if self_attn else kv_ref[0].astype(jnp.float32)

    sq, d_model = x.shape
    dk = d_model // head
    scale = 1.0 / math.sqrt(dk)

    out = jnp.zeros((sq, d_model), jnp.float32)
    # Static per-head loop; everything stays VMEM-resident, heads accumulate
    # straight into the output projection (no concat / lane re-slicing).
    for h in range(head):
        q = jnp.dot(y_q, wq_ref[h], preferred_element_type=jnp.float32) + bq_ref[h]
        k = jnp.dot(y_kv, wk_ref[h], preferred_element_type=jnp.float32) + bk_ref[h]
        v = jnp.dot(y_kv, wv_ref[h], preferred_element_type=jnp.float32) + bv_ref[h]
        # Contract last axes directly: no k.T / XLU transpose.
        s = lax.dot_general(q, k, (((1,), (1,)), ((), ())),
                            preferred_element_type=jnp.float32) * scale
        s = jnp.where(m_ref[h] == 0, NEG_INF, s)           # masked_fill(mask==0, -1e9)
        s = s - jnp.max(s, axis=-1, keepdims=True)
        p = jnp.exp(s)
        p = p * pl.reciprocal(jnp.sum(p, axis=-1, keepdims=True), approx=True)
        o_h = jnp.dot(p, v, preferred_element_type=jnp.float32)            # (Sq, dk)
        out = out + jnp.dot(o_h, wo_ref[h], preferred_element_type=jnp.float32)

    o_ref[0] = (x + out + bo_ref[...]).astype(o_ref.dtype)  # residual fused in-kernel


def _ffn_sublayer_kernel(x_ref, a_ref, b_ref, w1_ref, b1_ref, w2_ref, b2_ref, o_ref):
    """out = x + W2 @ relu(W1 @ LN(x) + b1) + b2   (one batch row per step)."""
    x = x_ref[0].astype(jnp.float32)
    y = _layer_norm(x, a_ref[...], b_ref[...])
    h = jnp.dot(y, w1_ref[...], preferred_element_type=jnp.float32) + b1_ref[...]
    h = jnp.maximum(h, 0.0)
    ff = jnp.dot(h, w2_ref[...], preferred_element_type=jnp.float32) + b2_ref[...]
    o_ref[0] = (x + ff).astype(o_ref.dtype)


def _final_norm_kernel(x_ref, a_ref, b_ref, o_ref):
    x = x_ref[0].astype(jnp.float32)
    o_ref[0] = _layer_norm(x, a_ref[...], b_ref[...]).astype(o_ref.dtype)


# ----------------------------- pallas_call wrappers ---------------------------

_PARALLEL = pltpu.CompilerParams(dimension_semantics=("parallel",))


def attention_sublayer(x, kv_src, mask, ln_a, ln_b, mha, *, self_attn):
    """x: (B,Sq,D), kv_src: (B,Sk,D), mask: (H,Sq,Sk).  Returns x + MHA(LN(x),...)."""
    B, Sq, D = x.shape
    Sk = kv_src.shape[1]
    H = mha["head"]
    dk = D // H
    kernel = functools.partial(_attn_sublayer_kernel, head=H, self_attn=self_attn)
    c2 = lambda i: (0, 0)
    c3 = lambda i: (0, 0, 0)
    return pl.pallas_call(
        kernel,
        out_shape=jax.ShapeDtypeStruct((B, Sq, D), x.dtype),
        grid=(B,),
        in_specs=[
            pl.BlockSpec((1, Sq, D), lambda i: (i, 0, 0)),   # x (residual + query src)
            pl.BlockSpec((1, Sk, D), lambda i: (i, 0, 0)),   # kv source (memory / x)
            pl.BlockSpec((H, Sq, Sk), c3),                   # mask, shared over batch
            pl.BlockSpec((1, D), c2),                        # LN a
            pl.BlockSpec((1, D), c2),                        # LN b
            pl.BlockSpec((H, D, dk), c3),                    # Wq per head
            pl.BlockSpec((H, 1, dk), c3),                    # bq per head
            pl.BlockSpec((H, D, dk), c3),                    # Wk per head
            pl.BlockSpec((H, 1, dk), c3),                    # bk per head
            pl.BlockSpec((H, D, dk), c3),                    # Wv per head
            pl.BlockSpec((H, 1, dk), c3),                    # bv per head
            pl.BlockSpec((H, dk, D), c3),                    # Wo per head (row slab)
            pl.BlockSpec((1, D), c2),                        # bo
        ],
        out_specs=pl.BlockSpec((1, Sq, D), lambda i: (i, 0, 0)),
        compiler_params=_PARALLEL,
    )(x, kv_src, mask, ln_a, ln_b,
      mha["wq"], mha["bq"], mha["wk"], mha["bk"], mha["wv"], mha["bv"],
      mha["wo"], mha["bo"])


def ffn_sublayer(x, ln_a, ln_b, ffp):
    B, S, D = x.shape
    DFF = ffp["w1"].shape[1]
    c2 = lambda i: (0, 0)
    return pl.pallas_call(
        _ffn_sublayer_kernel,
        out_shape=jax.ShapeDtypeStruct((B, S, D), x.dtype),
        grid=(B,),
        in_specs=[
            pl.BlockSpec((1, S, D), lambda i: (i, 0, 0)),
            pl.BlockSpec((1, D), c2),
            pl.BlockSpec((1, D), c2),
            pl.BlockSpec((D, DFF), c2),
            pl.BlockSpec((1, DFF), c2),
            pl.BlockSpec((DFF, D), c2),
            pl.BlockSpec((1, D), c2),
        ],
        out_specs=pl.BlockSpec((1, S, D), lambda i: (i, 0, 0)),
        compiler_params=_PARALLEL,
    )(x, ln_a, ln_b, ffp["w1"], ffp["b1"], ffp["w2"], ffp["b2"])


def final_layernorm(x, a, b):
    B, S, D = x.shape
    c2 = lambda i: (0, 0)
    return pl.pallas_call(
        _final_norm_kernel,
        out_shape=jax.ShapeDtypeStruct((B, S, D), x.dtype),
        grid=(B,),
        in_specs=[
            pl.BlockSpec((1, S, D), lambda i: (i, 0, 0)),
            pl.BlockSpec((1, D), c2),
            pl.BlockSpec((1, D), c2),
        ],
        out_specs=pl.BlockSpec((1, S, D), lambda i: (i, 0, 0)),
        compiler_params=_PARALLEL,
    )(x, a, b)


# ------------------------------ decoder forward -------------------------------

def decoder_layer(p, x, memory, source_mask, target_mask):
    # SublayerConnection: x + sublayer(LayerNorm(x))   (dropout = identity)
    x = attention_sublayer(x, x, target_mask, p["ln0_a"], p["ln0_b"],
                           p["self_attn"], self_attn=True)
    x = attention_sublayer(x, memory, source_mask, p["ln1_a"], p["ln1_b"],
                           p["cross_attn"], self_attn=False)
    x = ffn_sublayer(x, p["ln2_a"], p["ln2_b"], p["ff"])
    return x


def decoder_forward(params, x, memory, source_mask, target_mask):
    for lp in params["layers"]:
        x = decoder_layer(lp, x, memory, source_mask, target_mask)
    return final_layernorm(x, params["norm_a"], params["norm_b"])


# ----------------------------- parameter init ---------------------------------

def _init_linear(key, d_in, d_out):
    kw, kb = jax.random.split(key)
    bound = 1.0 / math.sqrt(d_in)
    w = jax.random.uniform(kw, (d_in, d_out), jnp.float32, -bound, bound)
    b = jax.random.uniform(kb, (d_out,), jnp.float32, -bound, bound)
    return w, b


def _init_mha(key, d_model, head):
    """Weights are laid out per-head once at init so kernels never reshape
    or transpose activations: Wq/Wk/Wv -> (H, D, dk), Wo -> (H, dk, D)."""
    dk = d_model // head
    ks = jax.random.split(key, 4)
    wq, bq = _init_linear(ks[0], d_model, d_model)
    wk, bk = _init_linear(ks[1], d_model, d_model)
    wv, bv = _init_linear(ks[2], d_model, d_model)
    wo, bo = _init_linear(ks[3], d_model, d_model)

    def split_out_cols(w, b):   # (D, D) -> (H, D, dk);  (D,) -> (H, 1, dk)
        return (w.reshape(d_model, head, dk).transpose(1, 0, 2),
                b.reshape(head, 1, dk))

    wq_h, bq_h = split_out_cols(wq, bq)
    wk_h, bk_h = split_out_cols(wk, bk)
    wv_h, bv_h = split_out_cols(wv, bv)
    wo_h = wo.reshape(head, dk, d_model)                    # rows grouped by head
    return dict(head=head, wq=wq_h, bq=bq_h, wk=wk_h, bk=bk_h, wv=wv_h, bv=bv_h,
                wo=wo_h, bo=bo.reshape(1, d_model))


def init_decoder_params(key, d_model, head, d_ff, n_layers):
    k_sa, k_ca, k_f1, k_f2 = jax.random.split(key, 4)
    w1, b1 = _init_linear(k_f1, d_model, d_ff)
    w2, b2 = _init_linear(k_f2, d_ff, d_model)
    ones = jnp.ones((1, d_model), jnp.float32)
    zeros = jnp.zeros((1, d_model), jnp.float32)
    layer = dict(
        self_attn=_init_mha(k_sa, d_model, head),
        cross_attn=_init_mha(k_ca, d_model, head),
        ff=dict(w1=w1, b1=b1.reshape(1, d_ff), w2=w2, b2=b2.reshape(1, d_model)),
        ln0_a=ones, ln0_b=zeros,
        ln1_a=ones, ln1_b=zeros,
        ln2_a=ones, ln2_b=zeros,
    )
    # clones(): all N layers are deep copies of the SAME initialized layer.
    return dict(layers=[layer] * n_layers, norm_a=ones, norm_b=zeros)


# --------------------------------- main ----------------------------------------

if __name__ == "__main__":
    B, S, D, H, DFF, NLAYERS = 2, 8, 64, 4, 32, 2

    key = jax.random.PRNGKey(0)
    kx, km, kp = jax.random.split(key, 3)
    x = jax.random.normal(kx, (B, S, D), jnp.float32)
    memory = jax.random.normal(km, (B, S, D), jnp.float32)

    # Masks shaped (head, S, S) as in the reference (broadcast over batch via unsqueeze(0)).
    target_mask = jnp.broadcast_to(jnp.tril(jnp.ones((S, S), jnp.float32)), (H, S, S))
    source_mask = jnp.ones((H, S, S), jnp.float32)

    params = init_decoder_params(kp, D, H, DFF, NLAYERS)

    out = decoder_forward(params, x, memory, source_mask, target_mask)
    out = jax.block_until_ready(out)
    assert out.shape == (B, S, D) and out.dtype == jnp.float32
    assert bool(jnp.all(jnp.isfinite(out)))
    print("KERNEL_OK")
</pallas_src>

<mosaic_0001>
module attributes {stable_mosaic.version = 11 : i64} {
  func.func @_attn_sublayer_kernel(%arg0: i32, %arg1: memref<1x8x64xf32, #tpu.memory_space<vmem>>, %arg2: memref<1x8x64xf32, #tpu.memory_space<vmem>>, %arg3: memref<4x8x8xf32, #tpu.memory_space<vmem>>, %arg4: memref<1x64xf32, #tpu.memory_space<vmem>>, %arg5: memref<1x64xf32, #tpu.memory_space<vmem>>, %arg6: memref<4x64x16xf32, #tpu.memory_space<vmem>>, %arg7: memref<4x1x16xf32, #tpu.memory_space<vmem>>, %arg8: memref<4x64x16xf32, #tpu.memory_space<vmem>>, %arg9: memref<4x1x16xf32, #tpu.memory_space<vmem>>, %arg10: memref<4x64x16xf32, #tpu.memory_space<vmem>>, %arg11: memref<4x1x16xf32, #tpu.memory_space<vmem>>, %arg12: memref<4x16x64xf32, #tpu.memory_space<vmem>>, %arg13: memref<1x64xf32, #tpu.memory_space<vmem>>, %arg14: memref<1x8x64xf32, #tpu.memory_space<vmem>>) attributes {dimension_semantics = [#tpu.dimension_semantics<parallel>], iteration_bounds = array<i64: 2>, scalar_prefetch = 0 : i64, scratch_operands = 0 : i64, tpu.core_type = #tpu.core_type<tc>, window_params = [{transform_indices = @transform_0, window_bounds = array<i64: 1, 8, 64>}, {transform_indices = @transform_1, window_bounds = array<i64: 1, 8, 64>}, {pipeline_mode = #tpu.pipeline_mode<synchronous>, transform_indices = @transform_2, window_bounds = array<i64: 4, 8, 8>}, {pipeline_mode = #tpu.pipeline_mode<synchronous>, transform_indices = @transform_3, window_bounds = array<i64: 1, 64>}, {pipeline_mode = #tpu.pipeline_mode<synchronous>, transform_indices = @transform_4, window_bounds = array<i64: 1, 64>}, {pipeline_mode = #tpu.pipeline_mode<synchronous>, transform_indices = @transform_5, window_bounds = array<i64: 4, 64, 16>}, {pipeline_mode = #tpu.pipeline_mode<synchronous>, transform_indices = @transform_6, window_bounds = array<i64: 4, 1, 16>}, {pipeline_mode = #tpu.pipeline_mode<synchronous>, transform_indices = @transform_7, window_bounds = array<i64: 4, 64, 16>}, {pipeline_mode = #tpu.pipeline_mode<synchronous>, transform_indices = @transform_8, window_bounds = array<i64: 4, 1, 16>}, {pipeline_mode = #tpu.pipeline_mode<synchronous>, transform_indices = @transform_9, window_bounds = array<i64: 4, 64, 16>}, {pipeline_mode = #tpu.pipeline_mode<synchronous>, transform_indices = @transform_10, window_bounds = array<i64: 4, 1, 16>}, {pipeline_mode = #tpu.pipeline_mode<synchronous>, transform_indices = @transform_11, window_bounds = array<i64: 4, 16, 64>}, {pipeline_mode = #tpu.pipeline_mode<synchronous>, transform_indices = @transform_12, window_bounds = array<i64: 1, 64>}, {transform_indices = @transform_13, window_bounds = array<i64: 1, 8, 64>}]} {
    %c0 = arith.constant 0 : index
    %c0_0 = arith.constant 0 : index
    %c0_1 = arith.constant 0 : index
    %0 = vector.load %arg1[%c0, %c0_0, %c0_1] : memref<1x8x64xf32, #tpu.memory_space<vmem>>, vector<1x8x64xf32>
    %1 = vector.shape_cast %0 : vector<1x8x64xf32> to vector<8x64xf32>
    %c0_2 = arith.constant 0 : index
    %c0_3 = arith.constant 0 : index
    %2 = vector.load %arg4[%c0_2, %c0_3] : memref<1x64xf32, #tpu.memory_space<vmem>>, vector<1x64xf32>
    %c0_4 = arith.constant 0 : index
    %c0_5 = arith.constant 0 : index
    %3 = vector.load %arg5[%c0_4, %c0_5] : memref<1x64xf32, #tpu.memory_space<vmem>>, vector<1x64xf32>
    %cst = arith.constant dense<0.000000e+00> : vector<8xf32>
    %4 = vector.multi_reduction <add>, %1, %cst [1] : vector<8x64xf32> to vector<8xf32>
    %5 = vector.shape_cast %4 : vector<8xf32> to vector<8x1xf32>
    %cst_6 = arith.constant 6.400000e+01 : f32
    %6 = vector.broadcast %cst_6 : f32 to vector<8x1xf32>
    %7 = arith.divf %5, %6 : vector<8x1xf32>
    %8 = vector.broadcast %7 : vector<8x1xf32> to vector<8x64xf32>
    %9 = arith.subf %1, %8 : vector<8x64xf32>
    %10 = arith.mulf %9, %9 : vector<8x64xf32>
    %cst_7 = arith.constant dense<0.000000e+00> : vector<8xf32>
    %11 = vector.multi_reduction <add>, %10, %cst_7 [1] : vector<8x64xf32> to vector<8xf32>
    %12 = vector.shape_cast %11 : vector<8xf32> to vector<8x1xf32>
    %cst_8 = arith.constant 0.0158730168 : f32
    %13 = vector.broadcast %cst_8 : f32 to vector<8x1xf32>
    %14 = arith.mulf %12, %13 : vector<8x1xf32>
    %15 = math.sqrt %14 : vector<8x1xf32>
    %16 = vector.broadcast %2 : vector<1x64xf32> to vector<8x64xf32>
    %17 = arith.mulf %16, %9 : vector<8x64xf32>
    %cst_9 = arith.constant 9.99999997E-7 : f32
    %18 = vector.broadcast %cst_9 : f32 to vector<8x1xf32>
    %19 = arith.addf %18, %15 : vector<8x1xf32>
    %20 = tpu.reciprocal %19 {approx = true} : vector<8x1xf32> -> vector<8x1xf32>
    %21 = vector.broadcast %20 : vector<8x1xf32> to vector<8x64xf32>
    %22 = arith.mulf %17, %21 : vector<8x64xf32>
    %23 = vector.broadcast %3 : vector<1x64xf32> to vector<8x64xf32>
    %24 = arith.addf %22, %23 : vector<8x64xf32>
    %cst_10 = arith.constant 0.000000e+00 : f32
    %25 = vector.broadcast %cst_10 : f32 to vector<8x64xf32>
    %c0_11 = arith.constant 0 : index
    %c0_12 = arith.constant 0 : index
    %c0_13 = arith.constant 0 : index
    %26 = vector.load %arg6[%c0_11, %c0_12, %c0_13] : memref<4x64x16xf32, #tpu.memory_space<vmem>>, vector<1x64x16xf32>
    %27 = vector.shape_cast %26 : vector<1x64x16xf32> to vector<64x16xf32>
    %cst_14 = arith.constant dense<0.000000e+00> : vector<8x16xf32>
    %28 = tpu.matmul %24, %27, %cst_14 {dimension_numbers = #tpu.dot_dimension_numbers<[1], [0], [0], [1], [0, 0, 1, 1], [], []>} : vector<8x64xf32>, vector<64x16xf32>, vector<8x16xf32> -> vector<8x16xf32>
    %c0_15 = arith.constant 0 : index
    %c0_16 = arith.constant 0 : index
    %c0_17 = arith.constant 0 : index
    %29 = vector.load %arg7[%c0_15, %c0_16, %c0_17] : memref<4x1x16xf32, #tpu.memory_space<vmem>>, vector<1x1x16xf32>
    %30 = vector.shape_cast %29 : vector<1x1x16xf32> to vector<1x16xf32>
    %31 = vector.broadcast %30 : vector<1x16xf32> to vector<8x16xf32>
    %32 = arith.addf %28, %31 : vector<8x16xf32>
    %c0_18 = arith.constant 0 : index
    %c0_19 = arith.constant 0 : index
    %c0_20 = arith.constant 0 : index
    %33 = vector.load %arg8[%c0_18, %c0_19, %c0_20] : memref<4x64x16xf32, #tpu.memory_space<vmem>>, vector<1x64x16xf32>
    %34 = vector.shape_cast %33 : vector<1x64x16xf32> to vector<64x16xf32>
    %cst_21 = arith.constant dense<0.000000e+00> : vector<8x16xf32>
    %35 = tpu.matmul %24, %34, %cst_21 {dimension_numbers = #tpu.dot_dimension_numbers<[1], [0], [0], [1], [0, 0, 1, 1], [], []>} : vector<8x64xf32>, vector<64x16xf32>, vector<8x16xf32> -> vector<8x16xf32>
    %c0_22 = arith.constant 0 : index
    %c0_23 = arith.constant 0 : index
    %c0_24 = arith.constant 0 : index
    %36 = vector.load %arg9[%c0_22, %c0_23, %c0_24] : memref<4x1x16xf32, #tpu.memory_space<vmem>>, vector<1x1x16xf32>
    %37 = vector.shape_cast %36 : vector<1x1x16xf32> to vector<1x16xf32>
    %38 = vector.broadcast %37 : vector<1x16xf32> to vector<8x16xf32>
    %39 = arith.addf %35, %38 : vector<8x16xf32>
    %c0_25 = arith.constant 0 : index
    %c0_26 = arith.constant 0 : index
    %c0_27 = arith.constant 0 : index
    %40 = vector.load %arg10[%c0_25, %c0_26, %c0_27] : memref<4x64x16xf32, #tpu.memory_space<vmem>>, vector<1x64x16xf32>
    %41 = vector.shape_cast %40 : vector<1x64x16xf32> to vector<64x16xf32>
    %cst_28 = arith.constant dense<0.000000e+00> : vector<8x16xf32>
    %42 = tpu.matmul %24, %41, %cst_28 {dimension_numbers = #tpu.dot_dimension_numbers<[1], [0], [0], [1], [0, 0, 1, 1], [], []>} : vector<8x64xf32>, vector<64x16xf32>, vector<8x16xf32> -> vector<8x16xf32>
    %c0_29 = arith.constant 0 : index
    %c0_30 = arith.constant 0 : index
    %c0_31 = arith.constant 0 : index
    %43 = vector.load %arg11[%c0_29, %c0_30, %c0_31] : memref<4x1x16xf32, #tpu.memory_space<vmem>>, vector<1x1x16xf32>
    %44 = vector.shape_cast %43 : vector<1x1x16xf32> to vector<1x16xf32>
    %45 = vector.broadcast %44 : vector<1x16xf32> to vector<8x16xf32>
    %46 = arith.addf %42, %45 : vector<8x16xf32>
    %cst_32 = arith.constant dense<0.000000e+00> : vector<8x8xf32>
    %47 = tpu.matmul %32, %39, %cst_32 {dimension_numbers = #tpu.dot_dimension_numbers<[1], [1], [0], [0], [0, 0, 1, 0], [], []>} : vector<8x16xf32>, vector<8x16xf32>, vector<8x8xf32> -> vector<8x8xf32>
    %cst_33 = arith.constant 2.500000e-01 : f32
    %48 = vector.broadcast %cst_33 : f32 to vector<8x8xf32>
    %49 = arith.mulf %47, %48 : vector<8x8xf32>
    %c0_34 = arith.constant 0 : index
    %c0_35 = arith.constant 0 : index
    %c0_36 = arith.constant 0 : index
    %50 = vector.load %arg3[%c0_34, %c0_35, %c0_36] : memref<4x8x8xf32, #tpu.memory_space<vmem>>, vector<1x8x8xf32>
    %51 = vector.shape_cast %50 : vector<1x8x8xf32> to vector<8x8xf32>
    %cst_37 = arith.constant 0.000000e+00 : f32
    %52 = vector.broadcast %cst_37 : f32 to vector<8x8xf32>
    %53 = arith.cmpf oeq, %51, %52 : vector<8x8xf32>
    %cst_38 = arith.constant -1.000000e+09 : f32
    %54 = vector.broadcast %cst_38 : f32 to vector<8x8xf32>
    %55 = arith.select %53, %54, %49 : vector<8x8xi1>, vector<8x8xf32>
    %cst_39 = arith.constant dense<0xFF800000> : vector<8xf32>
    %56 = vector.multi_reduction <maximumf>, %55, %cst_39 [1] : vector<8x8xf32> to vector<8xf32>
    %57 = vector.shape_cast %56 : vector<8xf32> to vector<8x1xf32>
    %58 = vector.broadcast %57 : vector<8x1xf32> to vector<8x8xf32>
    %59 = arith.subf %55, %58 : vector<8x8xf32>
    %60 = math.exp %59 : vector<8x8xf32>
    %cst_40 = arith.constant dense<0.000000e+00> : vector<8xf32>
    %61 = vector.multi_reduction <add>, %60, %cst_40 [1] : vector<8x8xf32> to vector<8xf32>
    %62 = vector.shape_cast %61 : vector<8xf32> to vector<8x1xf32>
    %63 = tpu.reciprocal %62 {approx = true} : vector<8x1xf32> -> vector<8x1xf32>
    %64 = vector.broadcast %63 : vector<8x1xf32> to vector<8x8xf32>
    %65 = arith.mulf %60, %64 : vector<8x8xf32>
    %cst_41 = arith.constant dense<0.000000e+00> : vector<8x16xf32>
    %66 = tpu.matmul %65, %46, %cst_41 {dimension_numbers = #tpu.dot_dimension_numbers<[1], [0], [0], [1], [0, 0, 1, 1], [], []>} : vector<8x8xf32>, vector<8x16xf32>, vector<8x16xf32> -> vector<8x16xf32>
    %c0_42 = arith.constant 0 : index
    %c0_43 = arith.constant 0 : index
    %c0_44 = arith.constant 0 : index
    %67 = vector.load %arg12[%c0_42, %c0_43, %c0_44] : memref<4x16x64xf32, #tpu.memory_space<vmem>>, vector<1x16x64xf32>
    %68 = vector.shape_cast %67 : vector<1x16x64xf32> to vector<16x64xf32>
    %cst_45 = arith.constant dense<0.000000e+00> : vector<8x64xf32>
    %69 = tpu.matmul %66, %68, %cst_45 {dimension_numbers = #tpu.dot_dimension_numbers<[1], [0], [0], [1], [0, 0, 1, 1], [], []>} : vector<8x16xf32>, vector<16x64xf32>, vector<8x64xf32> -> vector<8x64xf32>
    %70 = arith.addf %25, %69 : vector<8x64xf32>
    %c1 = arith.constant 1 : index
    %c0_46 = arith.constant 0 : index
    %c0_47 = arith.constant 0 : index
    %71 = vector.load %arg6[%c1, %c0_46, %c0_47] : memref<4x64x16xf32, #tpu.memory_space<vmem>>, vector<1x64x16xf32>
    %72 = vector.shape_cast %71 : vector<1x64x16xf32> to vector<64x16xf32>
    %cst_48 = arith.constant dense<0.000000e+00> : vector<8x16xf32>
    %73 = tpu.matmul %24, %72, %cst_48 {dimension_numbers = #tpu.dot_dimension_numbers<[1], [0], [0], [1], [0, 0, 1, 1], [], []>} : vector<8x64xf32>, vector<64x16xf32>, vector<8x16xf32> -> vector<8x16xf32>
    %c1_49 = arith.constant 1 : index
    %c0_50 = arith.constant 0 : index
    %c0_51 = arith.constant 0 : index
    %74 = vector.load %arg7[%c1_49, %c0_50, %c0_51] : memref<4x1x16xf32, #tpu.memory_space<vmem>>, vector<1x1x16xf32>
    %75 = vector.shape_cast %74 : vector<1x1x16xf32> to vector<1x16xf32>
    %76 = vector.broadcast %75 : vector<1x16xf32> to vector<8x16xf32>
    %77 = arith.addf %73, %76 : vector<8x16xf32>
    %c1_52 = arith.constant 1 : index
    %c0_53 = arith.constant 0 : index
    %c0_54 = arith.constant 0 : index
    %78 = vector.load %arg8[%c1_52, %c0_53, %c0_54] : memref<4x64x16xf32, #tpu.memory_space<vmem>>, vector<1x64x16xf32>
    %79 = vector.shape_cast %78 : vector<1x64x16xf32> to vector<64x16xf32>
    %cst_55 = arith.constant dense<0.000000e+00> : vector<8x16xf32>
    %80 = tpu.matmul %24, %79, %cst_55 {dimension_numbers = #tpu.dot_dimension_numbers<[1], [0], [0], [1], [0, 0, 1, 1], [], []>} : vector<8x64xf32>, vector<64x16xf32>, vector<8x16xf32> -> vector<8x16xf32>
    %c1_56 = arith.constant 1 : index
    %c0_57 = arith.constant 0 : index
    %c0_58 = arith.constant 0 : index
    %81 = vector.load %arg9[%c1_56, %c0_57, %c0_58] : memref<4x1x16xf32, #tpu.memory_space<vmem>>, vector<1x1x16xf32>
    %82 = vector.shape_cast %81 : vector<1x1x16xf32> to vector<1x16xf32>
    %83 = vector.broadcast %82 : vector<1x16xf32> to vector<8x16xf32>
    %84 = arith.addf %80, %83 : vector<8x16xf32>
    %c1_59 = arith.constant 1 : index
    %c0_60 = arith.constant 0 : index
    %c0_61 = arith.constant 0 : index
    %85 = vector.load %arg10[%c1_59, %c0_60, %c0_61] : memref<4x64x16xf32, #tpu.memory_space<vmem>>, vector<1x64x16xf32>
    %86 = vector.shape_cast %85 : vector<1x64x16xf32> to vector<64x16xf32>
    %cst_62 = arith.constant dense<0.000000e+00> : vector<8x16xf32>
    %87 = tpu.matmul %24, %86, %cst_62 {dimension_numbers = #tpu.dot_dimension_numbers<[1], [0], [0], [1], [0, 0, 1, 1], [], []>} : vector<8x64xf32>, vector<64x16xf32>, vector<8x16xf32> -> vector<8x16xf32>
    %c1_63 = arith.constant 1 : index
    %c0_64 = arith.constant 0 : index
    %c0_65 = arith.constant 0 : index
    %88 = vector.load %arg11[%c1_63, %c0_64, %c0_65] : memref<4x1x16xf32, #tpu.memory_space<vmem>>, vector<1x1x16xf32>
    %89 = vector.shape_cast %88 : vector<1x1x16xf32> to vector<1x16xf32>
    %90 = vector.broadcast %89 : vector<1x16xf32> to vector<8x16xf32>
    %91 = arith.addf %87, %90 : vector<8x16xf32>
    %cst_66 = arith.constant dense<0.000000e+00> : vector<8x8xf32>
    %92 = tpu.matmul %77, %84, %cst_66 {dimension_numbers = #tpu.dot_dimension_numbers<[1], [1], [0], [0], [0, 0, 1, 0], [], []>} : vector<8x16xf32>, vector<8x16xf32>, vector<8x8xf32> -> vector<8x8xf32>
    %cst_67 = arith.constant 2.500000e-01 : f32
    %93 = vector.broadcast %cst_67 : f32 to vector<8x8xf32>
    %94 = arith.mulf %92, %93 : vector<8x8xf32>
    %c1_68 = arith.constant 1 : index
    %c0_69 = arith.constant 0 : index
    %c0_70 = arith.constant 0 : index
    %95 = vector.load %arg3[%c1_68, %c0_69, %c0_70] : memref<4x8x8xf32, #tpu.memory_space<vmem>>, vector<1x8x8xf32>
    %96 = vector.shape_cast %95 : vector<1x8x8xf32> to vector<8x8xf32>
    %cst_71 = arith.constant 0.000000e+00 : f32
    %97 = vector.broadcast %cst_71 : f32 to vector<8x8xf32>
    %98 = arith.cmpf oeq, %96, %97 : vector<8x8xf32>
    %cst_72 = arith.constant -1.000000e+09 : f32
    %99 = vector.broadcast %cst_72 : f32 to vector<8x8xf32>
    %100 = arith.select %98, %99, %94 : vector<8x8xi1>, vector<8x8xf32>
    %cst_73 = arith.constant dense<0xFF800000> : vector<8xf32>
    %101 = vector.multi_reduction <maximumf>, %100, %cst_73 [1] : vector<8x8xf32> to vector<8xf32>
    %102 = vector.shape_cast %101 : vector<8xf32> to vector<8x1xf32>
    %103 = vector.broadcast %102 : vector<8x1xf32> to vector<8x8xf32>
    %104 = arith.subf %100, %103 : vector<8x8xf32>
    %105 = math.exp %104 : vector<8x8xf32>
    %cst_74 = arith.constant dense<0.000000e+00> : vector<8xf32>
    %106 = vector.multi_reduction <add>, %105, %cst_74 [1] : vector<8x8xf32> to vector<8xf32>
    %107 = vector.shape_cast %106 : vector<8xf32> to vector<8x1xf32>
    %108 = tpu.reciprocal %107 {approx = true} : vector<8x1xf32> -> vector<8x1xf32>
    %109 = vector.broadcast %108 : vector<8x1xf32> to vector<8x8xf32>
    %110 = arith.mulf %105, %109 : vector<8x8xf32>
    %cst_75 = arith.constant dense<0.000000e+00> : vector<8x16xf32>
    %111 = tpu.matmul %110, %91, %cst_75 {dimension_numbers = #tpu.dot_dimension_numbers<[1], [0], [0], [1], [0, 0, 1, 1], [], []>} : vector<8x8xf32>, vector<8x16xf32>, vector<8x16xf32> -> vector<8x16xf32>
    %c1_76 = arith.constant 1 : index
    %c0_77 = arith.constant 0 : index
    %c0_78 = arith.constant 0 : index
    %112 = vector.load %arg12[%c1_76, %c0_77, %c0_78] : memref<4x16x64xf32, #tpu.memory_space<vmem>>, vector<1x16x64xf32>
    %113 = vector.shape_cast %112 : vector<1x16x64xf32> to vector<16x64xf32>
    %cst_79 = arith.constant dense<0.000000e+00> : vector<8x64xf32>
    %114 = tpu.matmul %111, %113, %cst_79 {dimension_numbers = #tpu.dot_dimension_numbers<[1], [0], [0], [1], [0, 0, 1, 1], [], []>} : vector<8x16xf32>, vector<16x64xf32>, vector<8x64xf32> -> vector<8x64xf32>
    %115 = arith.addf %70, %114 : vector<8x64xf32>
    %c2 = arith.constant 2 : index
    %c0_80 = arith.constant 0 : index
    %c0_81 = arith.constant 0 : index
    %116 = vector.load %arg6[%c2, %c0_80, %c0_81] : memref<4x64x16xf32, #tpu.memory_space<vmem>>, vector<1x64x16xf32>
    %117 = vector.shape_cast %116 : vector<1x64x16xf32> to vector<64x16xf32>
    %cst_82 = arith.constant dense<0.000000e+00> : vector<8x16xf32>
    %118 = tpu.matmul %24, %117, %cst_82 {dimension_numbers = #tpu.dot_dimension_numbers<[1], [0], [0], [1], [0, 0, 1, 1], [], []>} : vector<8x64xf32>, vector<64x16xf32>, vector<8x16xf32> -> vector<8x16xf32>
    %c2_83 = arith.constant 2 : index
    %c0_84 = arith.constant 0 : index
    %c0_85 = arith.constant 0 : index
    %119 = vector.load %arg7[%c2_83, %c0_84, %c0_85] : memref<4x1x16xf32, #tpu.memory_space<vmem>>, vector<1x1x16xf32>
    %120 = vector.shape_cast %119 : vector<1x1x16xf32> to vector<1x16xf32>
    %121 = vector.broadcast %120 : vector<1x16xf32> to vector<8x16xf32>
    %122 = arith.addf %118, %121 : vector<8x16xf32>
    %c2_86 = arith.constant 2 : index
    %c0_87 = arith.constant 0 : index
    %c0_88 = arith.constant 0 : index
    %123 = vector.load %arg8[%c2_86, %c0_87, %c0_88] : memref<4x64x16xf32, #tpu.memory_space<vmem>>, vector<1x64x16xf32>
    %124 = vector.shape_cast %123 : vector<1x64x16xf32> to vector<64x16xf32>
    %cst_89 = arith.constant dense<0.000000e+00> : vector<8x16xf32>
    %125 = tpu.matmul %24, %124, %cst_89 {dimension_numbers = #tpu.dot_dimension_numbers<[1], [0], [0], [1], [0, 0, 1, 1], [], []>} : vector<8x64xf32>, vector<64x16xf32>, vector<8x16xf32> -> vector<8x16xf32>
    %c2_90 = arith.constant 2 : index
    %c0_91 = arith.constant 0 : index
    %c0_92 = arith.constant 0 : index
    %126 = vector.load %arg9[%c2_90, %c0_91, %c0_92] : memref<4x1x16xf32, #tpu.memory_space<vmem>>, vector<1x1x16xf32>
    %127 = vector.shape_cast %126 : vector<1x1x16xf32> to vector<1x16xf32>
    %128 = vector.broadcast %127 : vector<1x16xf32> to vector<8x16xf32>
    %129 = arith.addf %125, %128 : vector<8x16xf32>
    %c2_93 = arith.constant 2 : index
    %c0_94 = arith.constant 0 : index
    %c0_95 = arith.constant 0 : index
    %130 = vector.load %arg10[%c2_93, %c0_94, %c0_95] : memref<4x64x16xf32, #tpu.memory_space<vmem>>, vector<1x64x16xf32>
    %131 = vector.shape_cast %130 : vector<1x64x16xf32> to vector<64x16xf32>
    %cst_96 = arith.constant dense<0.000000e+00> : vector<8x16xf32>
    %132 = tpu.matmul %24, %131, %cst_96 {dimension_numbers = #tpu.dot_dimension_numbers<[1], [0], [0], [1], [0, 0, 1, 1], [], []>} : vector<8x64xf32>, vector<64x16xf32>, vector<8x16xf32> -> vector<8x16xf32>
    %c2_97 = arith.constant 2 : index
    %c0_98 = arith.constant 0 : index
    %c0_99 = arith.constant 0 : index
    %133 = vector.load %arg11[%c2_97, %c0_98, %c0_99] : memref<4x1x16xf32, #tpu.memory_space<vmem>>, vector<1x1x16xf32>
    %134 = vector.shape_cast %133 : vector<1x1x16xf32> to vector<1x16xf32>
    %135 = vector.broadcast %134 : vector<1x16xf32> to vector<8x16xf32>
    %136 = arith.addf %132, %135 : vector<8x16xf32>
    %cst_100 = arith.constant dense<0.000000e+00> : vector<8x8xf32>
    %137 = tpu.matmul %122, %129, %cst_100 {dimension_numbers = #tpu.dot_dimension_numbers<[1], [1], [0], [0], [0, 0, 1, 0], [], []>} : vector<8x16xf32>, vector<8x16xf32>, vector<8x8xf32> -> vector<8x8xf32>
    %cst_101 = arith.constant 2.500000e-01 : f32
    %138 = vector.broadcast %cst_101 : f32 to vector<8x8xf32>
    %139 = arith.mulf %137, %138 : vector<8x8xf32>
    %c2_102 = arith.constant 2 : index
    %c0_103 = arith.constant 0 : index
    %c0_104 = arith.constant 0 : index
    %140 = vector.load %arg3[%c2_102, %c0_103, %c0_104] : memref<4x8x8xf32, #tpu.memory_space<vmem>>, vector<1x8x8xf32>
    %141 = vector.shape_cast %140 : vector<1x8x8xf32> to vector<8x8xf32>
    %cst_105 = arith.constant 0.000000e+00 : f32
    %142 = vector.broadcast %cst_105 : f32 to vector<8x8xf32>
    %143 = arith.cmpf oeq, %141, %142 : vector<8x8xf32>
    %cst_106 = arith.constant -1.000000e+09 : f32
    %144 = vector.broadcast %cst_106 : f32 to vector<8x8xf32>
    %145 = arith.select %143, %144, %139 : vector<8x8xi1>, vector<8x8xf32>
    %cst_107 = arith.constant dense<0xFF800000> : vector<8xf32>
    %146 = vector.multi_reduction <maximumf>, %145, %cst_107 [1] : vector<8x8xf32> to vector<8xf32>
    %147 = vector.shape_cast %146 : vector<8xf32> to vector<8x1xf32>
    %148 = vector.broadcast %147 : vector<8x1xf32> to vector<8x8xf32>
    %149 = arith.subf %145, %148 : vector<8x8xf32>
    %150 = math.exp %149 : vector<8x8xf32>
    %cst_108 = arith.constant dense<0.000000e+00> : vector<8xf32>
    %151 = vector.multi_reduction <add>, %150, %cst_108 [1] : vector<8x8xf32> to vector<8xf32>
    %152 = vector.shape_cast %151 : vector<8xf32> to vector<8x1xf32>
    %153 = tpu.reciprocal %152 {approx = true} : vector<8x1xf32> -> vector<8x1xf32>
    %154 = vector.broadcast %153 : vector<8x1xf32> to vector<8x8xf32>
    %155 = arith.mulf %150, %154 : vector<8x8xf32>
    %cst_109 = arith.constant dense<0.000000e+00> : vector<8x16xf32>
    %156 = tpu.matmul %155, %136, %cst_109 {dimension_numbers = #tpu.dot_dimension_numbers<[1], [0], [0], [1], [0, 0, 1, 1], [], []>} : vector<8x8xf32>, vector<8x16xf32>, vector<8x16xf32> -> vector<8x16xf32>
    %c2_110 = arith.constant 2 : index
    %c0_111 = arith.constant 0 : index
    %c0_112 = arith.constant 0 : index
    %157 = vector.load %arg12[%c2_110, %c0_111, %c0_112] : memref<4x16x64xf32, #tpu.memory_space<vmem>>, vector<1x16x64xf32>
    %158 = vector.shape_cast %157 : vector<1x16x64xf32> to vector<16x64xf32>
    %cst_113 = arith.constant dense<0.000000e+00> : vector<8x64xf32>
    %159 = tpu.matmul %156, %158, %cst_113 {dimension_numbers = #tpu.dot_dimension_numbers<[1], [0], [0], [1], [0, 0, 1, 1], [], []>} : vector<8x16xf32>, vector<16x64xf32>, vector<8x64xf32> -> vector<8x64xf32>
    %160 = arith.addf %115, %159 : vector<8x64xf32>
    %c3 = arith.constant 3 : index
    %c0_114 = arith.constant 0 : index
    %c0_115 = arith.constant 0 : index
    %161 = vector.load %arg6[%c3, %c0_114, %c0_115] : memref<4x64x16xf32, #tpu.memory_space<vmem>>, vector<1x64x16xf32>
    %162 = vector.shape_cast %161 : vector<1x64x16xf32> to vector<64x16xf32>
    %cst_116 = arith.constant dense<0.000000e+00> : vector<8x16xf32>
    %163 = tpu.matmul %24, %162, %cst_116 {dimension_numbers = #tpu.dot_dimension_numbers<[1], [0], [0], [1], [0, 0, 1, 1], [], []>} : vector<8x64xf32>, vector<64x16xf32>, vector<8x16xf32> -> vector<8x16xf32>
    %c3_117 = arith.constant 3 : index
    %c0_118 = arith.constant 0 : index
    %c0_119 = arith.constant 0 : index
    %164 = vector.load %arg7[%c3_117, %c0_118, %c0_119] : memref<4x1x16xf32, #tpu.memory_space<vmem>>, vector<1x1x16xf32>
    %165 = vector.shape_cast %164 : vector<1x1x16xf32> to vector<1x16xf32>
    %166 = vector.broadcast %165 : vector<1x16xf32> to vector<8x16xf32>
    %167 = arith.addf %163, %166 : vector<8x16xf32>
    %c3_120 = arith.constant 3 : index
    %c0_121 = arith.constant 0 : index
    %c0_122 = arith.constant 0 : index
    %168 = vector.load %arg8[%c3_120, %c0_121, %c0_122] : memref<4x64x16xf32, #tpu.memory_space<vmem>>, vector<1x64x16xf32>
    %169 = vector.shape_cast %168 : vector<1x64x16xf32> to vector<64x16xf32>
    %cst_123 = arith.constant dense<0.000000e+00> : vector<8x16xf32>
    %170 = tpu.matmul %24, %169, %cst_123 {dimension_numbers = #tpu.dot_dimension_numbers<[1], [0], [0], [1], [0, 0, 1, 1], [], []>} : vector<8x64xf32>, vector<64x16xf32>, vector<8x16xf32> -> vector<8x16xf32>
    %c3_124 = arith.constant 3 : index
    %c0_125 = arith.constant 0 : index
    %c0_126 = arith.constant 0 : index
    %171 = vector.load %arg9[%c3_124, %c0_125, %c0_126] : memref<4x1x16xf32, #tpu.memory_space<vmem>>, vector<1x1x16xf32>
    %172 = vector.shape_cast %171 : vector<1x1x16xf32> to vector<1x16xf32>
    %173 = vector.broadcast %172 : vector<1x16xf32> to vector<8x16xf32>
    %174 = arith.addf %170, %173 : vector<8x16xf32>
    %c3_127 = arith.constant 3 : index
    %c0_128 = arith.constant 0 : index
    %c0_129 = arith.constant 0 : index
    %175 = vector.load %arg10[%c3_127, %c0_128, %c0_129] : memref<4x64x16xf32, #tpu.memory_space<vmem>>, vector<1x64x16xf32>
    %176 = vector.shape_cast %175 : vector<1x64x16xf32> to vector<64x16xf32>
    %cst_130 = arith.constant dense<0.000000e+00> : vector<8x16xf32>
    %177 = tpu.matmul %24, %176, %cst_130 {dimension_numbers = #tpu.dot_dimension_numbers<[1], [0], [0], [1], [0, 0, 1, 1], [], []>} : vector<8x64xf32>, vector<64x16xf32>, vector<8x16xf32> -> vector<8x16xf32>
    %c3_131 = arith.constant 3 : index
    %c0_132 = arith.constant 0 : index
    %c0_133 = arith.constant 0 : index
    %178 = vector.load %arg11[%c3_131, %c0_132, %c0_133] : memref<4x1x16xf32, #tpu.memory_space<vmem>>, vector<1x1x16xf32>
    %179 = vector.shape_cast %178 : vector<1x1x16xf32> to vector<1x16xf32>
    %180 = vector.broadcast %179 : vector<1x16xf32> to vector<8x16xf32>
    %181 = arith.addf %177, %180 : vector<8x16xf32>
    %cst_134 = arith.constant dense<0.000000e+00> : vector<8x8xf32>
    %182 = tpu.matmul %167, %174, %cst_134 {dimension_numbers = #tpu.dot_dimension_numbers<[1], [1], [0], [0], [0, 0, 1, 0], [], []>} : vector<8x16xf32>, vector<8x16xf32>, vector<8x8xf32> -> vector<8x8xf32>
    %cst_135 = arith.constant 2.500000e-01 : f32
    %183 = vector.broadcast %cst_135 : f32 to vector<8x8xf32>
    %184 = arith.mulf %182, %183 : vector<8x8xf32>
    %c3_136 = arith.constant 3 : index
    %c0_137 = arith.constant 0 : index
    %c0_138 = arith.constant 0 : index
    %185 = vector.load %arg3[%c3_136, %c0_137, %c0_138] : memref<4x8x8xf32, #tpu.memory_space<vmem>>, vector<1x8x8xf32>
    %186 = vector.shape_cast %185 : vector<1x8x8xf32> to vector<8x8xf32>
    %cst_139 = arith.constant 0.000000e+00 : f32
    %187 = vector.broadcast %cst_139 : f32 to vector<8x8xf32>
    %188 = arith.cmpf oeq, %186, %187 : vector<8x8xf32>
    %cst_140 = arith.constant -1.000000e+09 : f32
    %189 = vector.broadcast %cst_140 : f32 to vector<8x8xf32>
    %190 = arith.select %188, %189, %184 : vector<8x8xi1>, vector<8x8xf32>
    %cst_141 = arith.constant dense<0xFF800000> : vector<8xf32>
    %191 = vector.multi_reduction <maximumf>, %190, %cst_141 [1] : vector<8x8xf32> to vector<8xf32>
    %192 = vector.shape_cast %191 : vector<8xf32> to vector<8x1xf32>
    %193 = vector.broadcast %192 : vector<8x1xf32> to vector<8x8xf32>
    %194 = arith.subf %190, %193 : vector<8x8xf32>
    %195 = math.exp %194 : vector<8x8xf32>
    %cst_142 = arith.constant dense<0.000000e+00> : vector<8xf32>
    %196 = vector.multi_reduction <add>, %195, %cst_142 [1] : vector<8x8xf32> to vector<8xf32>
    %197 = vector.shape_cast %196 : vector<8xf32> to vector<8x1xf32>
    %198 = tpu.reciprocal %197 {approx = true} : vector<8x1xf32> -> vector<8x1xf32>
    %199 = vector.broadcast %198 : vector<8x1xf32> to vector<8x8xf32>
    %200 = arith.mulf %195, %199 : vector<8x8xf32>
    %cst_143 = arith.constant dense<0.000000e+00> : vector<8x16xf32>
    %201 = tpu.matmul %200, %181, %cst_143 {dimension_numbers = #tpu.dot_dimension_numbers<[1], [0], [0], [1], [0, 0, 1, 1], [], []>} : vector<8x8xf32>, vector<8x16xf32>, vector<8x16xf32> -> vector<8x16xf32>
    %c3_144 = arith.constant 3 : index
    %c0_145 = arith.constant 0 : index
    %c0_146 = arith.constant 0 : index
    %202 = vector.load %arg12[%c3_144, %c0_145, %c0_146] : memref<4x16x64xf32, #tpu.memory_space<vmem>>, vector<1x16x64xf32>
    %203 = vector.shape_cast %202 : vector<1x16x64xf32> to vector<16x64xf32>
    %cst_147 = arith.constant dense<0.000000e+00> : vector<8x64xf32>
    %204 = tpu.matmul %201, %203, %cst_147 {dimension_numbers = #tpu.dot_dimension_numbers<[1], [0], [0], [1], [0, 0, 1, 1], [], []>} : vector<8x16xf32>, vector<16x64xf32>, vector<8x64xf32> -> vector<8x64xf32>
    %205 = arith.addf %160, %204 : vector<8x64xf32>
    %206 = arith.addf %1, %205 : vector<8x64xf32>
    %c0_148 = arith.constant 0 : index
    %c0_149 = arith.constant 0 : index
    %207 = vector.load %arg13[%c0_148, %c0_149] : memref<1x64xf32, #tpu.memory_space<vmem>>, vector<1x64xf32>
    %208 = vector.broadcast %207 : vector<1x64xf32> to vector<8x64xf32>
    %209 = arith.addf %206, %208 : vector<8x64xf32>
    %c0_150 = arith.constant 0 : index
    %c0_151 = arith.constant 0 : index
    %c0_152 = arith.constant 0 : index
    %210 = vector.load %arg14[%c0_150, %c0_151, %c0_152] : memref<1x8x64xf32, #tpu.memory_space<vmem>>, vector<1x8x64xf32>
    %211 = vector.shape_cast %210 : vector<1x8x64xf32> to vector<8x64xf32>
    %212 = vector.shape_cast %209 : vector<8x64xf32> to vector<1x8x64xf32>
    tpu.vector_store %arg14[%c0_150, %c0_151, %c0_152], %212 {strides = array<i32>} : memref<1x8x64xf32, #tpu.memory_space<vmem>>, vector<1x8x64xf32>,
    return
  }
  func.func @transform_0(%arg0: i32) -> (i32, i32, i32) {
    %c0_i32 = arith.constant 0 : i32
    %c0_i32_0 = arith.constant 0 : i32
    %c0_i32_1 = arith.constant 0 : i32
    return %arg0, %c0_i32, %c0_i32_0 : i32, i32, i32
  }
  func.func @transform_1(%arg0: i32) -> (i32, i32, i32) {
    %c0_i32 = arith.constant 0 : i32
    %c0_i32_0 = arith.constant 0 : i32
    %c0_i32_1 = arith.constant 0 : i32
    return %arg0, %c0_i32, %c0_i32_0 : i32, i32, i32
  }
  func.func @transform_2(%arg0: i32) -> (i32, i32, i32) {
    %c0_i32 = arith.constant 0 : i32
    %c0_i32_0 = arith.constant 0 : i32
    %c0_i32_1 = arith.constant 0 : i32
    %c0_i32_2 = arith.constant 0 : i32
    return %c0_i32, %c0_i32_0, %c0_i32_1 : i32, i32, i32
  }
  func.func @transform_3(%arg0: i32) -> (i32, i32) {
    %c0_i32 = arith.constant 0 : i32
    %c0_i32_0 = arith.constant 0 : i32
    %c0_i32_1 = arith.constant 0 : i32
    return %c0_i32, %c0_i32_0 : i32, i32
  }
  func.func @transform_4(%arg0: i32) -> (i32, i32) {
    %c0_i32 = arith.constant 0 : i32
    %c0_i32_0 = arith.constant 0 : i32
    %c0_i32_1 = arith.constant 0 : i32
    return %c0_i32, %c0_i32_0 : i32, i32
  }
  func.func @transform_5(%arg0: i32) -> (i32, i32, i32) {
    %c0_i32 = arith.constant 0 : i32
    %c0_i32_0 = arith.constant 0 : i32
    %c0_i32_1 = arith.constant 0 : i32
    %c0_i32_2 = arith.constant 0 : i32
    return %c0_i32, %c0_i32_0, %c0_i32_1 : i32, i32, i32
  }
  func.func @transform_6(%arg0: i32) -> (i32, i32, i32) {
    %c0_i32 = arith.constant 0 : i32
    %c0_i32_0 = arith.constant 0 : i32
    %c0_i32_1 = arith.constant 0 : i32
    %c0_i32_2 = arith.constant 0 : i32
    return %c0_i32, %c0_i32_0, %c0_i32_1 : i32, i32, i32
  }
  func.func @transform_7(%arg0: i32) -> (i32, i32, i32) {
    %c0_i32 = arith.constant 0 : i32
    %c0_i32_0 = arith.constant 0 : i32
    %c0_i32_1 = arith.constant 0 : i32
    %c0_i32_2 = arith.constant 0 : i32
    return %c0_i32, %c0_i32_0, %c0_i32_1 : i32, i32, i32
  }
  func.func @transform_8(%arg0: i32) -> (i32, i32, i32) {
    %c0_i32 = arith.constant 0 : i32
    %c0_i32_0 = arith.constant 0 : i32
    %c0_i32_1 = arith.constant 0 : i32
    %c0_i32_2 = arith.constant 0 : i32
    return %c0_i32, %c0_i32_0, %c0_i32_1 : i32, i32, i32
  }
  func.func @transform_9(%arg0: i32) -> (i32, i32, i32) {
    %c0_i32 = arith.constant 0 : i32
    %c0_i32_0 = arith.constant 0 : i32
    %c0_i32_1 = arith.constant 0 : i32
    %c0_i32_2 = arith.constant 0 : i32
    return %c0_i32, %c0_i32_0, %c0_i32_1 : i32, i32, i32
  }
  func.func @transform_10(%arg0: i32) -> (i32, i32, i32) {
    %c0_i32 = arith.constant 0 : i32
    %c0_i32_0 = arith.constant 0 : i32
    %c0_i32_1 = arith.constant 0 : i32
    %c0_i32_2 = arith.constant 0 : i32
    return %c0_i32, %c0_i32_0, %c0_i32_1 : i32, i32, i32
  }
  func.func @transform_11(%arg0: i32) -> (i32, i32, i32) {
    %c0_i32 = arith.constant 0 : i32
    %c0_i32_0 = arith.constant 0 : i32
    %c0_i32_1 = arith.constant 0 : i32
    %c0_i32_2 = arith.constant 0 : i32
    return %c0_i32, %c0_i32_0, %c0_i32_1 : i32, i32, i32
  }
  func.func @transform_12(%arg0: i32) -> (i32, i32) {
    %c0_i32 = arith.constant 0 : i32
    %c0_i32_0 = arith.constant 0 : i32
    %c0_i32_1 = arith.constant 0 : i32
    return %c0_i32, %c0_i32_0 : i32, i32
  }
  func.func @transform_13(%arg0: i32) -> (i32, i32, i32) {
    %c0_i32 = arith.constant 0 : i32
    %c0_i32_0 = arith.constant 0 : i32
    %c0_i32_1 = arith.constant 0 : i32
    return %arg0, %c0_i32, %c0_i32_0 : i32, i32, i32
  }
}

</mosaic_0001>

<llo_original>
// kernel: tpu_custom_call.1
$region0: #{tpu_custom_call.1}
  #allocation0 [shape = 'u32[]', space=smem, size = 0x4, offset = 0x4, fixed_abs, tag = 'smem constant byte address 0x4 - core index']
  #allocation1 [shape = 'u32[144,128]{1,0:T(1,128)}', space=vmem, size = 0x12000, scoped, tag = 'internal scratch']
  %s0 = inlined_call_operand.vmem [shape: f32[2,8,64], index: 0, kind: input, shape index: {}]
  %s1 = inlined_call_operand.vmem [shape: f32[2,8,64], index: 1, kind: input, shape index: {}]
  %s2 = inlined_call_operand.vmem [shape: f32[4,8,8], index: 2, kind: input, shape index: {}]
  %s3 = inlined_call_operand.vmem [shape: f32[1,64], index: 3, kind: input, shape index: {}]
  %s4 = inlined_call_operand.vmem [shape: f32[1,64], index: 4, kind: input, shape index: {}]
  %s5 = inlined_call_operand.vmem [shape: f32[4,64,16], index: 5, kind: input, shape index: {}]
  %s6 = inlined_call_operand.vmem [shape: f32[4,1,16], index: 6, kind: input, shape index: {}]
  %s7 = inlined_call_operand.vmem [shape: f32[4,64,16], index: 7, kind: input, shape index: {}]
  %s8 = inlined_call_operand.vmem [shape: f32[4,1,16], index: 8, kind: input, shape index: {}]
  %s9 = inlined_call_operand.vmem [shape: f32[4,64,16], index: 9, kind: input, shape index: {}]
  %s10 = inlined_call_operand.vmem [shape: f32[4,1,16], index: 10, kind: input, shape index: {}]
  %s11 = inlined_call_operand.vmem [shape: f32[4,16,64], index: 11, kind: input, shape index: {}]
  %s12 = inlined_call_operand.vmem [shape: f32[1,64], index: 12, kind: input, shape index: {}]
  %s13 = inlined_call_operand.hbm [shape: f32[2,8,64], index: 13, kind: output, shape index: {}]
  %s14 = sld [smem:[#allocation0]]
  $region85: #{tpu_custom_call.1} parent=0
    _
  %s16 = ssub.s32 1, %s14
  %s17 = scalar_select 0, %s16, %s14
  $region1: #{tpu_custom_call.1} parent=0
    #allocation2 [shape = 'u8[8192]{0}', space=vmem, size = 0x2000, scoped, tag = 'output window, operand 0']
    #allocation3 [shape = 's32[2]{0}', space=sflag, size = 0x8, scoped, tag = 'scoped memory for tpu_custom_call.1']
    %18 = vsyncpa [#allocation3], 0
    %s19 = scalar_lea.sflag [#allocation3], 1
    %20 = vsyncpa %s19, 0
    loop: start=0, step=1, limit=4
    $region2: #{tpu_custom_call.1} parent=1 // loop_pre_header
      _
    $region3: #{tpu_custom_call.1} parent=1 // loop_header
      %s22 = sphi 0, %s26
      %p23 = scmp.ge.s32.totalorder %s22, 4
      %s32 = sphi 0, %s34
      %s35 = sphi 0, %s32
      %s36 = sphi 0, %s35
      %s52 = sphi 0, %s36
      %s58 = sphi 0, %s60
      %s61 = sphi 0, %s58
      %s62 = sphi 0, %s61
      %s78 = sphi 0, %s62
      %s82 = sphi 0, %s82
      %s84 = sphi 0, %s82
      %s85 = sphi 0, %s84
      %s99 = sphi 0, %s85
      %s103 = sphi 0, %s103
      %s105 = sphi 0, %s103
      %s106 = sphi 0, %s105
      %s120 = sphi 0, %s106
      %s124 = sphi 0, %s124
      %s126 = sphi 0, %s124
      %s127 = sphi 0, %s126
      %s141 = sphi 0, %s127
      %s145 = sphi 0, %s145
      %s147 = sphi 0, %s145
      %s148 = sphi 0, %s147
      %s162 = sphi 0, %s148
      %s166 = sphi 0, %s166
      %s168 = sphi 0, %s166
      %s169 = sphi 0, %s168
      %s183 = sphi 0, %s169
      %s187 = sphi 0, %s187
      %s189 = sphi 0, %s187
      %s190 = sphi 0, %s189
      %s204 = sphi 0, %s190
      %s208 = sphi 0, %s208
      %s210 = sphi 0, %s208
      %s211 = sphi 0, %s210
      %s225 = sphi 0, %s211
      %s229 = sphi 0, %s229
      %s231 = sphi 0, %s229
      %s232 = sphi 0, %s231
      %s246 = sphi 0, %s232
      %s250 = sphi 0, %s250
      %s252 = sphi 0, %s250
      %s253 = sphi 0, %s252
      %s267 = sphi 0, %s253
      %s271 = sphi 0, %s271
      %s273 = sphi 0, %s271
      %s274 = sphi 0, %s273
      %s288 = sphi 0, %s274
      %s292 = sphi 0, %s292
      %s294 = sphi 0, %s292
      %s295 = sphi 0, %s294
      %s309 = sphi 0, %s295
      %s315 = sphi 0, %s317
      %s318 = sphi 0, %s315
      %s319 = sphi 0, %s318
      %s335 = sphi 0, %s319
    $region4: #{tpu_custom_call.1} parent=1 // loop_header_branch
      %25 = sbr.rel (%p23) target = $region8
    $region5: #{tpu_custom_call.1} parent=1 // loop_body
      %s27 = ssub.s32 %s22, 1
      %s28 = ssub.s32 %s22, 2
      %s29 = sadd.s32 %s22, 1
      %s30 = ssub.s32 %s22, %s29
      %p31 = scmp.eq.s32.totalorder %s30, 0
      %s33 = sadd.s32 %s32, 1
      %s34 = scalar_select %p31, %s32, %s33
      %p37 = pneg %p31
      %p38 = scmp.eq.s32.totalorder %s22, 1
      %p39 = por %p37, %p38
      %p40 = scmp.ne.s32.totalorder %s32, %s35
      %p41 = scmp.eq.s32.totalorder %s22, 0
      %p42 = por %p40, %p41
      %p43 = scmp.ne.s32.totalorder %s32, %s35
      %p44 = scmp.eq.s32.totalorder %s27, 1
      %p45 = por %p43, %p44
      %p46 = scmp.ne.s32.totalorder %s35, %s36
      %p47 = scmp.eq.s32.totalorder %s27, 0
      %p48 = por %p46, %p47
      %p49 = scmp.ne.s32.totalorder %s35, %s36
      %p50 = scmp.eq.s32.totalorder %s28, 1
      %p51 = por %p49, %p50
      %p53 = scmp.ne.s32.totalorder %s36, %s52
      %p54 = scmp.eq.s32.totalorder %s28, 0
      %p55 = por %p53, %p54
      %s56 = ssub.s32 %s22, %s29
      %p57 = scmp.eq.s32.totalorder %s56, 0
      %s59 = sadd.s32 %s58, 1
      %s60 = scalar_select %p57, %s58, %s59
      %p63 = pneg %p57
      %p64 = scmp.eq.s32.totalorder %s22, 1
      %p65 = por %p63, %p64
      %p66 = scmp.ne.s32.totalorder %s58, %s61
      %p67 = scmp.eq.s32.totalorder %s22, 0
      %p68 = por %p66, %p67
      %p69 = scmp.ne.s32.totalorder %s58, %s61
      %p70 = scmp.eq.s32.totalorder %s27, 1
      %p71 = por %p69, %p70
      %p72 = scmp.ne.s32.totalorder %s61, %s62
      %p73 = scmp.eq.s32.totalorder %s27, 0
      %p74 = por %p72, %p73
      %p75 = scmp.ne.s32.totalorder %s61, %s62
      %p76 = scmp.eq.s32.totalorder %s28, 1
      %p77 = por %p75, %p76
      %p79 = scmp.ne.s32.totalorder %s62, %s78
      %p80 = scmp.eq.s32.totalorder %s28, 0
      %p81 = por %p79, %p80
      %s83 = sadd.s32 %s82, 1
      %p86 = scmp.eq.s32.totalorder %s22, 1
      %p87 = scmp.ne.s32.totalorder %s82, %s84
      %p88 = scmp.eq.s32.totalorder %s22, 0
      %p89 = por %p87, %p88
      %p90 = scmp.ne.s32.totalorder %s82, %s84
      %p91 = scmp.eq.s32.totalorder %s27, 1
      %p92 = por %p90, %p91
      %p93 = scmp.ne.s32.totalorder %s84, %s85
      %p94 = scmp.eq.s32.totalorder %s27, 0
      %p95 = por %p93, %p94
      %p96 = scmp.ne.s32.totalorder %s84, %s85
      %p97 = scmp.eq.s32.totalorder %s28, 1
      %p98 = por %p96, %p97
      %p100 = scmp.ne.s32.totalorder %s85, %s99
      %p101 = scmp.eq.s32.totalorder %s28, 0
      %p102 = por %p100, %p101
      %s104 = sadd.s32 %s103, 1
      %p107 = scmp.eq.s32.totalorder %s22, 1
      %p108 = scmp.ne.s32.totalorder %s103, %s105
      %p109 = scmp.eq.s32.totalorder %s22, 0
      %p110 = por %p108, %p109
      %p111 = scmp.ne.s32.totalorder %s103, %s105
      %p112 = scmp.eq.s32.totalorder %s27, 1
      %p113 = por %p111, %p112
      %p114 = scmp.ne.s32.totalorder %s105, %s106
      %p115 = scmp.eq.s32.totalorder %s27, 0
      %p116 = por %p114, %p115
      %p117 = scmp.ne.s32.totalorder %s105, %s106
      %p118 = scmp.eq.s32.totalorder %s28, 1
      %p119 = por %p117, %p118
      %p121 = scmp.ne.s32.totalorder %s106, %s120
      %p122 = scmp.eq.s32.totalorder %s28, 0
      %p123 = por %p121, %p122
      %s125 = sadd.s32 %s124, 1
      %p128 = scmp.eq.s32.totalorder %s22, 1
      %p129 = scmp.ne.s32.totalorder %s124, %s126
      %p130 = scmp.eq.s32.totalorder %s22, 0
      %p131 = por %p129, %p130
      %p132 = scmp.ne.s32.totalorder %s124, %s126
      %p133 = scmp.eq.s32.totalorder %s27, 1
      %p134 = por %p132, %p133
      %p135 = scmp.ne.s32.totalorder %s126, %s127
      %p136 = scmp.eq.s32.totalorder %s27, 0
      %p137 = por %p135, %p136
      %p138 = scmp.ne.s32.totalorder %s126, %s127
      %p139 = scmp.eq.s32.totalorder %s28, 1
      %p140 = por %p138, %p139
      %p142 = scmp.ne.s32.totalorder %s127, %s141
      %p143 = scmp.eq.s32.totalorder %s28, 0
      %p144 = por %p142, %p143
      %s146 = sadd.s32 %s145, 1
      %p149 = scmp.eq.s32.totalorder %s22, 1
      %p150 = scmp.ne.s32.totalorder %s145, %s147
      %p151 = scmp.eq.s32.totalorder %s22, 0
      %p152 = por %p150, %p151
      %p153 = scmp.ne.s32.totalorder %s145, %s147
      %p154 = scmp.eq.s32.totalorder %s27, 1
      %p155 = por %p153, %p154
      %p156 = scmp.ne.s32.totalorder %s147, %s148
      %p157 = scmp.eq.s32.totalorder %s27, 0
      %p158 = por %p156, %p157
      %p159 = scmp.ne.s32.totalorder %s147, %s148
      %p160 = scmp.eq.s32.totalorder %s28, 1
      %p161 = por %p159, %p160
      %p163 = scmp.ne.s32.totalorder %s148, %s162
      %p164 = scmp.eq.s32.totalorder %s28, 0
      %p165 = por %p163, %p164
      %s167 = sadd.s32 %s166, 1
      %p170 = scmp.eq.s32.totalorder %s22, 1
      %p171 = scmp.ne.s32.totalorder %s166, %s168
      %p172 = scmp.eq.s32.totalorder %s22, 0
      %p173 = por %p171, %p172
      %p174 = scmp.ne.s32.totalorder %s166, %s168
      %p175 = scmp.eq.s32.totalorder %s27, 1
      %p176 = por %p174, %p175
      %p177 = scmp.ne.s32.totalorder %s168, %s169
      %p178 = scmp.eq.s32.totalorder %s27, 0
      %p179 = por %p177, %p178
      %p180 = scmp.ne.s32.totalorder %s168, %s169
      %p181 = scmp.eq.s32.totalorder %s28, 1
      %p182 = por %p180, %p181
      %p184 = scmp.ne.s32.totalorder %s169, %s183
      %p185 = scmp.eq.s32.totalorder %s28, 0
      %p186 = por %p184, %p185
      %s188 = sadd.s32 %s187, 1
      %p191 = scmp.eq.s32.totalorder %s22, 1
      %p192 = scmp.ne.s32.totalorder %s187, %s189
      %p193 = scmp.eq.s32.totalorder %s22, 0
      %p194 = por %p192, %p193
      %p195 = scmp.ne.s32.totalorder %s187, %s189
      %p196 = scmp.eq.s32.totalorder %s27, 1
      %p197 = por %p195, %p196
      %p198 = scmp.ne.s32.totalorder %s189, %s190
      %p199 = scmp.eq.s32.totalorder %s27, 0
      %p200 = por %p198, %p199
      %p201 = scmp.ne.s32.totalorder %s189, %s190
      %p202 = scmp.eq.s32.totalorder %s28, 1
      %p203 = por %p201, %p202
      %p205 = scmp.ne.s32.totalorder %s190, %s204
      %p206 = scmp.eq.s32.totalorder %s28, 0
      %p207 = por %p205, %p206
      %s209 = sadd.s32 %s208, 1
      %p212 = scmp.eq.s32.totalorder %s22, 1
      %p213 = scmp.ne.s32.totalorder %s208, %s210
      %p214 = scmp.eq.s32.totalorder %s22, 0
      %p215 = por %p213, %p214
      %p216 = scmp.ne.s32.totalorder %s208, %s210
      %p217 = scmp.eq.s32.totalorder %s27, 1
      %p218 = por %p216, %p217
      %p219 = scmp.ne.s32.totalorder %s210, %s211
      %p220 = scmp.eq.s32.totalorder %s27, 0
      %p221 = por %p219, %p220
      %p222 = scmp.ne.s32.totalorder %s210, %s211
      %p223 = scmp.eq.s32.totalorder %s28, 1
      %p224 = por %p222, %p223
      %p226 = scmp.ne.s32.totalorder %s211, %s225
      %p227 = scmp.eq.s32.totalorder %s28, 0
      %p228 = por %p226, %p227
      %s230 = sadd.s32 %s229, 1
      %p233 = scmp.eq.s32.totalorder %s22, 1
      %p234 = scmp.ne.s32.totalorder %s229, %s231
      %p235 = scmp.eq.s32.totalorder %s22, 0
      %p236 = por %p234, %p235
      %p237 = scmp.ne.s32.totalorder %s229, %s231
      %p238 = scmp.eq.s32.totalorder %s27, 1
      %p239 = por %p237, %p238
      %p240 = scmp.ne.s32.totalorder %s231, %s232
      %p241 = scmp.eq.s32.totalorder %s27, 0
      %p242 = por %p240, %p241
      %p243 = scmp.ne.s32.totalorder %s231, %s232
      %p244 = scmp.eq.s32.totalorder %s28, 1
      %p245 = por %p243, %p244
      %p247 = scmp.ne.s32.totalorder %s232, %s246
      %p248 = scmp.eq.s32.totalorder %s28, 0
      %p249 = por %p247, %p248
      %s251 = sadd.s32 %s250, 1
      %p254 = scmp.eq.s32.totalorder %s22, 1
      %p255 = scmp.ne.s32.totalorder %s250, %s252
      %p256 = scmp.eq.s32.totalorder %s22, 0
      %p257 = por %p255, %p256
      %p258 = scmp.ne.s32.totalorder %s250, %s252
      %p259 = scmp.eq.s32.totalorder %s27, 1
      %p260 = por %p258, %p259
      %p261 = scmp.ne.s32.totalorder %s252, %s253
      %p262 = scmp.eq.s32.totalorder %s27, 0
      %p263 = por %p261, %p262
      %p264 = scmp.ne.s32.totalorder %s252, %s253
      %p265 = scmp.eq.s32.totalorder %s28, 1
      %p266 = por %p264, %p265
      %p268 = scmp.ne.s32.totalorder %s253, %s267
      %p269 = scmp.eq.s32.totalorder %s28, 0
      %p270 = por %p268, %p269
      %s272 = sadd.s32 %s271, 1
      %p275 = scmp.eq.s32.totalorder %s22, 1
      %p276 = scmp.ne.s32.totalorder %s271, %s273
      %p277 = scmp.eq.s32.totalorder %s22, 0
      %p278 = por %p276, %p277
      %p279 = scmp.ne.s32.totalorder %s271, %s273
      %p280 = scmp.eq.s32.totalorder %s27, 1
      %p281 = por %p279, %p280
      %p282 = scmp.ne.s32.totalorder %s273, %s274
      %p283 = scmp.eq.s32.totalorder %s27, 0
      %p284 = por %p282, %p283
      %p285 = scmp.ne.s32.totalorder %s273, %s274
      %p286 = scmp.eq.s32.totalorder %s28, 1
      %p287 = por %p285, %p286
      %p289 = scmp.ne.s32.totalorder %s274, %s288
      %p290 = scmp.eq.s32.totalorder %s28, 0
      %p291 = por %p289, %p290
      %s293 = sadd.s32 %s292, 1
      %p296 = scmp.eq.s32.totalorder %s22, 1
      %p297 = scmp.ne.s32.totalorder %s292, %s294
      %p298 = scmp.eq.s32.totalorder %s22, 0
      %p299 = por %p297, %p298
      %p300 = scmp.ne.s32.totalorder %s292, %s294
      %p301 = scmp.eq.s32.totalorder %s27, 1
      %p302 = por %p300, %p301
      %p303 = scmp.ne.s32.totalorder %s294, %s295
      %p304 = scmp.eq.s32.totalorder %s27, 0
      %p305 = por %p303, %p304
      %p306 = scmp.ne.s32.totalorder %s294, %s295
      %p307 = scmp.eq.s32.totalorder %s28, 1
      %p308 = por %p306, %p307
      %p310 = scmp.ne.s32.totalorder %s295, %s309
      %p311 = scmp.eq.s32.totalorder %s28, 0
      %p312 = por %p310, %p311
      %s313 = ssub.s32 %s22, %s29
      %p314 = scmp.eq.s32.totalorder %s313, 0
      %s316 = sadd.s32 %s315, 1
      %s317 = scalar_select %p314, %s315, %s316
      %p320 = pneg %p314
      %p321 = scmp.eq.s32.totalorder %s22, 1
      %p322 = por %p320, %p321
      %p323 = scmp.ne.s32.totalorder %s315, %s318
      %p324 = scmp.eq.s32.totalorder %s22, 0
      %p325 = por %p323, %p324
      %p326 = scmp.ne.s32.totalorder %s315, %s318
      %p327 = scmp.eq.s32.totalorder %s27, 1
      %p328 = por %p326, %p327
      %p329 = scmp.ne.s32.totalorder %s318, %s319
      %p330 = scmp.eq.s32.totalorder %s27, 0
      %p331 = por %p329, %p330
      %p332 = scmp.ne.s32.totalorder %s318, %s319
      %p333 = scmp.eq.s32.totalorder %s28, 1
      %p334 = por %p332, %p333
      %p336 = scmp.ne.s32.totalorder %s319, %s335
      %p337 = scmp.eq.s32.totalorder %s28, 0
      %p338 = por %p336, %p337
      %p339 = scmp.le.s32.totalorder 1, %s22
      %p340 = scmp.lt.s32.totalorder %s22, 3
      %p341 = pnand %p339, %p340
      %p342 = pneg %p341
      // Predicated region
      $region9: #{tpu_custom_call.1} parent=5 // pred_check
        _
      $region10: #{tpu_custom_call.1} parent=5 // pred_check_branch
        %344 = sbr.rel (%p341) target = $region12
      $region11: #{tpu_custom_call.1} parent=5 // pred_region
        %s345 = ssub.s32 %s22, 1
        // Predicated region
        $region13: #{tpu_custom_call.1} parent=11 // pred_check
          %p346 = pneg %p95
        $region14: #{tpu_custom_call.1} parent=11 // pred_check_branch
          %348 = sbr.rel (%p346) target = $region16
        $region15: #{tpu_custom_call.1} parent=11 // pred_region
          _
        $region16: #{tpu_custom_call.1} parent=11 // pred_fallthru
          _
        // Predicated region
        $region17: #{tpu_custom_call.1} parent=11 // pred_check
          %p349 = pneg %p116
        $region18: #{tpu_custom_call.1} parent=11 // pred_check_branch
          %351 = sbr.rel (%p349) target = $region20
        $region19: #{tpu_custom_call.1} parent=11 // pred_region
          _
        $region20: #{tpu_custom_call.1} parent=11 // pred_fallthru
          _
        // Predicated region
        $region21: #{tpu_custom_call.1} parent=11 // pred_check
          %p352 = pneg %p137
        $region22: #{tpu_custom_call.1} parent=11 // pred_check_branch
          %354 = sbr.rel (%p352) target = $region24
        $region23: #{tpu_custom_call.1} parent=11 // pred_region
          _
        $region24: #{tpu_custom_call.1} parent=11 // pred_fallthru
          _
        // Predicated region
        $region25: #{tpu_custom_call.1} parent=11 // pred_check
          %p355 = pneg %p158
        $region26: #{tpu_custom_call.1} parent=11 // pred_check_branch
          %357 = sbr.rel (%p355) target = $region28
        $region27: #{tpu_custom_call.1} parent=11 // pred_region
          _
        $region28: #{tpu_custom_call.1} parent=11 // pred_fallthru
          _
        // Predicated region
        $region29: #{tpu_custom_call.1} parent=11 // pred_check
          %p358 = pneg %p179
        $region30: #{tpu_custom_call.1} parent=11 // pred_check_branch
          %360 = sbr.rel (%p358) target = $region32
        $region31: #{tpu_custom_call.1} parent=11 // pred_region
          _
        $region32: #{tpu_custom_call.1} parent=11 // pred_fallthru
          _
        // Predicated region
        $region33: #{tpu_custom_call.1} parent=11 // pred_check
          %p361 = pneg %p200
        $region34: #{tpu_custom_call.1} parent=11 // pred_check_branch
          %363 = sbr.rel (%p361) target = $region36
        $region35: #{tpu_custom_call.1} parent=11 // pred_region
          _
        $region36: #{tpu_custom_call.1} parent=11 // pred_fallthru
          _
        // Predicated region
        $region37: #{tpu_custom_call.1} parent=11 // pred_check
          %p364 = pneg %p221
        $region38: #{tpu_custom_call.1} parent=11 // pred_check_branch
          %366 = sbr.rel (%p364) target = $region40
        $region39: #{tpu_custom_call.1} parent=11 // pred_region
          _
        $region40: #{tpu_custom_call.1} parent=11 // pred_fallthru
          _
        // Predicated region
        $region41: #{tpu_custom_call.1} parent=11 // pred_check
          %p367 = pneg %p242
        $region42: #{tpu_custom_call.1} parent=11 // pred_check_branch
          %369 = sbr.rel (%p367) target = $region44
        $region43: #{tpu_custom_call.1} parent=11 // pred_region
          _
        $region44: #{tpu_custom_call.1} parent=11 // pred_fallthru
          _
        // Predicated region
        $region45: #{tpu_custom_call.1} parent=11 // pred_check
          %p370 = pneg %p263
        $region46: #{tpu_custom_call.1} parent=11 // pred_check_branch
          %372 = sbr.rel (%p370) target = $region48
        $region47: #{tpu_custom_call.1} parent=11 // pred_region
          _
        $region48: #{tpu_custom_call.1} parent=11 // pred_fallthru
          _
        // Predicated region
        $region49: #{tpu_custom_call.1} parent=11 // pred_check
          %p373 = pneg %p284
        $region50: #{tpu_custom_call.1} parent=11 // pred_check_branch
          %375 = sbr.rel (%p373) target = $region52
        $region51: #{tpu_custom_call.1} parent=11 // pred_region
          _
        $region52: #{tpu_custom_call.1} parent=11 // pred_fallthru
          _
        // Predicated region
        $region53: #{tpu_custom_call.1} parent=11 // pred_check
          %p376 = pneg %p305
        $region54: #{tpu_custom_call.1} parent=11 // pred_check_branch
          %378 = sbr.rel (%p376) target = $region56
        $region55: #{tpu_custom_call.1} parent=11 // pred_region
          _
        $region56: #{tpu_custom_call.1} parent=11 // pred_fallthru
          _
      $region12: #{tpu_custom_call.1} parent=5 // pred_fallthru
        _
      %p379 = scmp.lt.s32.totalorder %s22, 2
      // Predicated region
      $region57: #{tpu_custom_call.1} parent=5 // pred_check
        %p380 = pneg %p379
      $region58: #{tpu_custom_call.1} parent=5 // pred_check_branch
        %382 = sbr.rel (%p380) target = $region60
      $region59: #{tpu_custom_call.1} parent=5 // pred_region
        // Predicated region
        $region61: #{tpu_custom_call.1} parent=59 // pred_check
          %p383 = pneg %p42
        $region62: #{tpu_custom_call.1} parent=59 // pred_check_branch
          %385 = sbr.rel (%p383) target = $region64
        $region63: #{tpu_custom_call.1} parent=59 // pred_region
          %p386 = scmp.lt.s32.totalorder %s22, 1
          %s387 = scalar_select %p386, %s22, 1
          %s388 = smul.addr %s387, 8
          %s389 = scalar_lea.vmem %s0, %s388
        $region64: #{tpu_custom_call.1} parent=59 // pred_fallthru
          _
        // Predicated region
        $region65: #{tpu_custom_call.1} parent=59 // pred_check
          %p390 = pneg %p68
        $region66: #{tpu_custom_call.1} parent=59 // pred_check_branch
          %392 = sbr.rel (%p390) target = $region68
        $region67: #{tpu_custom_call.1} parent=59 // pred_region
          %p393 = scmp.lt.s32.totalorder %s22, 1
          %s394 = scalar_select %p393, %s22, 1
          %s395 = smul.addr %s394, 8
          %s396 = scalar_lea.vmem %s1, %s395
        $region68: #{tpu_custom_call.1} parent=59 // pred_fallthru
          _
      $region60: #{tpu_custom_call.1} parent=5 // pred_fallthru
        _
      %p397 = scmp.le.s32.totalorder 1, %s22
      %p398 = scmp.lt.s32.totalorder %s22, 3
      %p399 = pnand %p397, %p398
      %p400 = pneg %p399
      // Predicated region
      $region69: #{tpu_custom_call.1} parent=5 // pred_check
        _
      $region70: #{tpu_custom_call.1} parent=5 // pred_check_branch
        %402 = sbr.rel (%p399) target = $region72
      $region71: #{tpu_custom_call.1} parent=5 // pred_region
        %s403 = ssub.s32 %s22, 1
        %p404 = scmp.lt.s32.totalorder %s27, 1
        %s405 = scalar_select %p404, %s27, 1
        %s406 = smul.addr %s405, 8
        %s407 = scalar_lea.vmem %s0, %s406
        %p408 = pneg %p48
        %p409 = pneg %p45
        %p410 = scmp.lt.s32.totalorder %s27, 1
        %s411 = scalar_select %p410, %s27, 1
        %s412 = smul.addr %s411, 8
        %s413 = scalar_lea.vmem %s1, %s412
        %p414 = pneg %p74
        %p415 = pneg %p71
        %p416 = pneg %p95
        %p417 = pneg %p92
        %p418 = pneg %p116
        %p419 = pneg %p113
        %p420 = pneg %p137
        %p421 = pneg %p134
        %p422 = pneg %p158
        %p423 = pneg %p155
        %p424 = pneg %p179
        %p425 = pneg %p176
        %p426 = pneg %p200
        %p427 = pneg %p197
        %p428 = pneg %p221
        %p429 = pneg %p218
        %p430 = pneg %p242
        %p431 = pneg %p239
        %p432 = pneg %p263
        %p433 = pneg %p260
        %p434 = pneg %p284
        %p435 = pneg %p281
        %p436 = pneg %p305
        %p437 = pneg %p302
        %p438 = pneg %p331
        %p439 = pneg %p328
        %s440 = sand.u32 %s318, 1
        %s441 = scalar_lea.sflag [#allocation3], %s440
        %s442 = sand.u32 %s318, 1
        %s443 = smul.addr %s442, 8
        %s444 = scalar_lea.vmem [#allocation2], %s443
        %p445 = scmp.lt.s32.totalorder %s27, 1
        %s446 = scalar_select %p445, %s27, 1
        %s447 = smul.addr %s446, 8
        %s448 = scalar_lea.vmem %s0, %s447
        %p449 = scmp.lt.s32.totalorder %s27, 1
        %s450 = scalar_select %p449, %s27, 1
        %s451 = smul.addr %s450, 8
        %s452 = scalar_lea.vmem %s1, %s451
        %v453 = vld [vmem:[%s448] sm:$0xff]
        %v454 = vld [vmem:[%s3] sm:$0x1]
        %v455 = vld [vmem:[%s4] sm:$0x1]
        %vm456 = vcmask 523264
        %v457 = vsel %vm456, %v453, 0.0
        %458 = vadd.xlane.f32.xlu0 %v457
        %v459 = vpop.xlane.xlu0 %458
        %v460 = vrcp.pop 64.0
        %v461 = vmul.f32 %v459, %v460
        %v462 = vsub.f32 %v453, %v461
        %v463 = vmul.f32 %v462, %v462
        %v464 = vsel %vm456, %v463, 0.0
        %465 = vadd.xlane.f32.xlu0 %v464
        %v466 = vpop.xlane.xlu0 %465
        %v467 = vmul.f32 %v466, 0.015873017
        %v468 = vrsqrt.pop %v467
        %v469 = vmul.f32 %v467, %v468
        %vm470 = vcmp.eq.f32.partialorder %v467, inf
        %v471 = vsel %vm470, %v467, %v469
        %vm472 = vcmp.eq.f32.partialorder %v467, 0.0
        %v473 = vand.u32 %v467, 2147483648
        %v474 = vsel %vm472, %v473, %v471
        %v476 = vlaneseq
        %v477 = vshrl.u32 %v476, 7
        %v478 = vsub.s32 0, %v477
        %v479 = vrot.slane %v454, %v478
        %v481 = vmul.f32 %v479, %v462
        %v482 = vadd.f32 %v474, 1e-06
        %v483 = vrcp.pop %v482
        %v484 = vmul.f32 %v481, %v483
        %v486 = vlaneseq
        %v487 = vshrl.u32 %v486, 7
        %v488 = vsub.s32 0, %v487
        %v489 = vrot.slane %v455, %v488
        %v491 = vadd.f32 %v484, %v489
        %v492 = vld [vmem:[%s5] sm:$0xff]
        %v493 = vld [vmem:[%s5 + $0x8] sm:$0xff]
        %v494 = vld [vmem:[%s5 + $0x10] sm:$0xff]
        %v495 = vld [vmem:[%s5 + $0x18] sm:$0xff]
        %v496 = vld [vmem:[%s5 + $0x20] sm:$0xff]
        %v497 = vld [vmem:[%s5 + $0x28] sm:$0xff]
        %v498 = vld [vmem:[%s5 + $0x30] sm:$0xff]
        %v499 = vld [vmem:[%s5 + $0x38] sm:$0xff]
        %v500 = vld [vmem:[%s6] sm:$0x1]
        %v502 = vlaneseq
        %v503 = vshrl.u32 %v502, 7
        %v504 = vsub.s32 0, %v503
        %v505 = vrot.slane %v500, %v504
        %v508 = vsel %vm456, %v491, 0
        %510 = vmatprep.subr.mxu0 0.0
        %511 = vmatpush1.msra.mxu0 %v492
        %512 = vmatprep.subr.mxu0 0.0
        %513 = vmatpush1.msra.mxu0 %v493
        %514 = vmatprep.subr.mxu0 0.0
        %515 = vmatpush1.msra.mxu0 %v494
        %516 = vmatprep.subr.mxu0 0.0
        %517 = vmatpush1.msra.mxu0 %v495
        %518 = vmatprep.subr.mxu0 0.0
        %519 = vmatpush1.msra.mxu0 %v496
        %520 = vmatprep.subr.mxu0 0.0
        %521 = vmatpush1.msra.mxu0 %v497
        %522 = vmatprep.subr.mxu0 0.0
        %523 = vmatpush1.msra.mxu0 %v498
        %524 = vmatprep.subr.mxu0 0.0
        %525 = vmatpush1.msra.mxu0 %v499
        %526 = vmatprep.subr.mxu0 0.0
        %527 = vmatpush1.msra.mxu0 0.0
        %528 = vmatprep.subr.mxu0 0.0
        %529 = vmatpush1.msra.mxu0 0.0
        %530 = vmatprep.subr.mxu0 0.0
        %531 = vmatpush1.msra.mxu0 0.0
        %532 = vmatprep.subr.mxu0 0.0
        %533 = vmatpush1.msra.mxu0 0.0
        %534 = vmatprep.subr.mxu0 0.0
        %535 = vmatpush1.msra.mxu0 0.0
        %536 = vmatprep.subr.mxu0 0.0
        %537 = vmatpush1.msra.mxu0 0.0
        %538 = vmatprep.subr.mxu0 0.0
        %539 = vmatpush1.msra.mxu0 0.0
        %540 = vmatprep.subr.mxu0 0.0
        %541 = vmatpush1.msra.mxu0 0.0
        %542 = vmatprep.subr.mxu0 0.0
        %543 = vmatpush1.msra.mxu0 0.0
        %544 = vmatprep.subr.mxu0 0.0
        %545 = vmatpush1.msra.mxu0 0.0
        %546 = vmatprep.subr.mxu0 0.0
        %547 = vmatpush1.msra.mxu0 0.0
        %548 = vmatprep.subr.mxu0 0.0
        %549 = vmatpush1.msra.mxu0 0.0
        %550 = vmatprep.subr.mxu0 0.0
        %551 = vmatpush1.msra.mxu0 0.0
        %552 = vmatprep.subr.mxu0 0.0
        %553 = vmatpush1.msra.mxu0 0.0
        %554 = vmatprep.subr.mxu0 0.0
        %555 = vmatpush1.msra.mxu0 0.0
        %556 = vmatprep.subr.mxu0 0.0
        %557 = vmatpush1.msra.mxu0 0.0
        %558 = vmatprep.subr.mxu0 0.0
        %559 = vmatpush1.msra.mxu0 0.0
        %560 = vmatprep.subr.mxu0 0.0
        %561 = vmatpush1.msra.mxu0 0.0
        %562 = vmatprep.subr.mxu0 0.0
        %563 = vmatpush1.msra.mxu0 0.0
        %564 = vmatprep.subr.mxu0 0.0
        %565 = vmatpush1.msra.mxu0 0.0
        %566 = vmatprep.subr.mxu0 0.0
        %567 = vmatpush1.msra.mxu0 0.0
        %568 = vmatprep.subr.mxu0 0.0
        %569 = vmatpush1.msra.mxu0 0.0
        %570 = vmatprep.subr.mxu0 0.0
        %571 = vmatpush1.msra.mxu0 0.0
        %572 = vmatprep.subr.mxu0 0.0
        %573 = vmatpush1.msra.mxu0 0.0
        %574 = vmatprep.mubr.f32.mxu0 0.0
        %575 = vmatmul.mubr.f32.gmra.mrb[0].mxu0 %v508
        %v576 = vpop.f32.mrb[0].mxu0
        %v577 = vadd.f32 %v505, %v576
        %v578 = vpop.f32.mrb[0].mxu0
        %579 = vdwg.mxu0
        %v580 = vld [vmem:[%s7] sm:$0xff]
        %v581 = vld [vmem:[%s7 + $0x8] sm:$0xff]
        %v582 = vld [vmem:[%s7 + $0x10] sm:$0xff]
        %v583 = vld [vmem:[%s7 + $0x18] sm:$0xff]
        %v584 = vld [vmem:[%s7 + $0x20] sm:$0xff]
        %v585 = vld [vmem:[%s7 + $0x28] sm:$0xff]
        %v586 = vld [vmem:[%s7 + $0x30] sm:$0xff]
        %v587 = vld [vmem:[%s7 + $0x38] sm:$0xff]
        %v588 = vld [vmem:[%s8] sm:$0x1]
        %v590 = vlaneseq
        %v591 = vshrl.u32 %v590, 7
        %v592 = vsub.s32 0, %v591
        %v593 = vrot.slane %v588, %v592
        %595 = vmatprep.subr.mxu0 0.0
        %596 = vmatpush1.msra.mxu0 %v580
        %597 = vmatprep.subr.mxu0 0.0
        %598 = vmatpush1.msra.mxu0 %v581
        %599 = vmatprep.subr.mxu0 0.0
        %600 = vmatpush1.msra.mxu0 %v582
        %601 = vmatprep.subr.mxu0 0.0
        %602 = vmatpush1.msra.mxu0 %v583
        %603 = vmatprep.subr.mxu0 0.0
        %604 = vmatpush1.msra.mxu0 %v584
        %605 = vmatprep.subr.mxu0 0.0
        %606 = vmatpush1.msra.mxu0 %v585
        %607 = vmatprep.subr.mxu0 0.0
        %608 = vmatpush1.msra.mxu0 %v586
        %609 = vmatprep.subr.mxu0 0.0
        %610 = vmatpush1.msra.mxu0 %v587
        %611 = vmatprep.subr.mxu0 0.0
        %612 = vmatpush1.msra.mxu0 0.0
        %613 = vmatprep.subr.mxu0 0.0
        %614 = vmatpush1.msra.mxu0 0.0
        %615 = vmatprep.subr.mxu0 0.0
        %616 = vmatpush1.msra.mxu0 0.0
        %617 = vmatprep.subr.mxu0 0.0
        %618 = vmatpush1.msra.mxu0 0.0
        %619 = vmatprep.subr.mxu0 0.0
        %620 = vmatpush1.msra.mxu0 0.0
        %621 = vmatprep.subr.mxu0 0.0
        %622 = vmatpush1.msra.mxu0 0.0
        %623 = vmatprep.subr.mxu0 0.0
        %624 = vmatpush1.msra.mxu0 0.0
        %625 = vmatprep.subr.mxu0 0.0
        %626 = vmatpush1.msra.mxu0 0.0
        %627 = vmatprep.subr.mxu0 0.0
        %628 = vmatpush1.msra.mxu0 0.0
        %629 = vmatprep.subr.mxu0 0.0
        %630 = vmatpush1.msra.mxu0 0.0
        %631 = vmatprep.subr.mxu0 0.0
        %632 = vmatpush1.msra.mxu0 0.0
        %633 = vmatprep.subr.mxu0 0.0
        %634 = vmatpush1.msra.mxu0 0.0
        %635 = vmatprep.subr.mxu0 0.0
        %636 = vmatpush1.msra.mxu0 0.0
        %637 = vmatprep.subr.mxu0 0.0
        %638 = vmatpush1.msra.mxu0 0.0
        %639 = vmatprep.subr.mxu0 0.0
        %640 = vmatpush1.msra.mxu0 0.0
        %641 = vmatprep.subr.mxu0 0.0
        %642 = vmatpush1.msra.mxu0 0.0
        %643 = vmatprep.subr.mxu0 0.0
        %644 = vmatpush1.msra.mxu0 0.0
        %645 = vmatprep.subr.mxu0 0.0
        %646 = vmatpush1.msra.mxu0 0.0
        %647 = vmatprep.subr.mxu0 0.0
        %648 = vmatpush1.msra.mxu0 0.0
        %649 = vmatprep.subr.mxu0 0.0
        %650 = vmatpush1.msra.mxu0 0.0
        %651 = vmatprep.subr.mxu0 0.0
        %652 = vmatpush1.msra.mxu0 0.0
        %653 = vmatprep.subr.mxu0 0.0
        %654 = vmatpush1.msra.mxu0 0.0
        %655 = vmatprep.subr.mxu0 0.0
        %656 = vmatpush1.msra.mxu0 0.0
        %657 = vmatprep.subr.mxu0 0.0
        %658 = vmatpush1.msra.mxu0 0.0
        %659 = vmatprep.mubr.f32.mxu0 0.0
        %660 = vmatmul.mubr.f32.gmra.mrb[0].mxu0 %v508
        %v661 = vpop.f32.mrb[0].mxu0
        %v662 = vadd.f32 %v593, %v661
        %v663 = vpop.f32.mrb[0].mxu0
        %664 = vdwg.mxu0
        %v665 = vld [vmem:[%s9] sm:$0xff]
        %v666 = vld [vmem:[%s9 + $0x8] sm:$0xff]
        %v667 = vld [vmem:[%s9 + $0x10] sm:$0xff]
        %v668 = vld [vmem:[%s9 + $0x18] sm:$0xff]
        %v669 = vld [vmem:[%s9 + $0x20] sm:$0xff]
        %v670 = vld [vmem:[%s9 + $0x28] sm:$0xff]
        %v671 = vld [vmem:[%s9 + $0x30] sm:$0xff]
        %v672 = vld [vmem:[%s9 + $0x38] sm:$0xff]
        %v673 = vld [vmem:[%s10] sm:$0x1]
        %v675 = vlaneseq
        %v676 = vshrl.u32 %v675, 7
        %v677 = vsub.s32 0, %v676
        %v678 = vrot.slane %v673, %v677
        %680 = vmatprep.subr.mxu0 0.0
        %681 = vmatpush1.msra.mxu0 %v665
        %682 = vmatprep.subr.mxu0 0.0
        %683 = vmatpush1.msra.mxu0 %v666
        %684 = vmatprep.subr.mxu0 0.0
        %685 = vmatpush1.msra.mxu0 %v667
        %686 = vmatprep.subr.mxu0 0.0
        %687 = vmatpush1.msra.mxu0 %v668
        %688 = vmatprep.subr.mxu0 0.0
        %689 = vmatpush1.msra.mxu0 %v669
        %690 = vmatprep.subr.mxu0 0.0
        %691 = vmatpush1.msra.mxu0 %v670
        %692 = vmatprep.subr.mxu0 0.0
        %693 = vmatpush1.msra.mxu0 %v671
        %694 = vmatprep.subr.mxu0 0.0
        %695 = vmatpush1.msra.mxu0 %v672
        %696 = vmatprep.subr.mxu0 0.0
        %697 = vmatpush1.msra.mxu0 0.0
        %698 = vmatprep.subr.mxu0 0.0
        %699 = vmatpush1.msra.mxu0 0.0
        %700 = vmatprep.subr.mxu0 0.0
        %701 = vmatpush1.msra.mxu0 0.0
        %702 = vmatprep.subr.mxu0 0.0
        %703 = vmatpush1.msra.mxu0 0.0
        %704 = vmatprep.subr.mxu0 0.0
        %705 = vmatpush1.msra.mxu0 0.0
        %706 = vmatprep.subr.mxu0 0.0
        %707 = vmatpush1.msra.mxu0 0.0
        %708 = vmatprep.subr.mxu0 0.0
        %709 = vmatpush1.msra.mxu0 0.0
        %710 = vmatprep.subr.mxu0 0.0
        %711 = vmatpush1.msra.mxu0 0.0
        %712 = vmatprep.subr.mxu0 0.0
        %713 = vmatpush1.msra.mxu0 0.0
        %714 = vmatprep.subr.mxu0 0.0
        %715 = vmatpush1.msra.mxu0 0.0
        %716 = vmatprep.subr.mxu0 0.0
        %717 = vmatpush1.msra.mxu0 0.0
        %718 = vmatprep.subr.mxu0 0.0
        %719 = vmatpush1.msra.mxu0 0.0
        %720 = vmatprep.subr.mxu0 0.0
        %721 = vmatpush1.msra.mxu0 0.0
        %722 = vmatprep.subr.mxu0 0.0
        %723 = vmatpush1.msra.mxu0 0.0
        %724 = vmatprep.subr.mxu0 0.0
        %725 = vmatpush1.msra.mxu0 0.0
        %726 = vmatprep.subr.mxu0 0.0
        %727 = vmatpush1.msra.mxu0 0.0
        %728 = vmatprep.subr.mxu0 0.0
        %729 = vmatpush1.msra.mxu0 0.0
        %730 = vmatprep.subr.mxu0 0.0
        %731 = vmatpush1.msra.mxu0 0.0
        %732 = vmatprep.subr.mxu0 0.0
        %733 = vmatpush1.msra.mxu0 0.0
        %734 = vmatprep.subr.mxu0 0.0
        %735 = vmatpush1.msra.mxu0 0.0
        %736 = vmatprep.subr.mxu0 0.0
        %737 = vmatpush1.msra.mxu0 0.0
        %738 = vmatprep.subr.mxu0 0.0
        %739 = vmatpush1.msra.mxu0 0.0
        %740 = vmatprep.subr.mxu0 0.0
        %741 = vmatpush1.msra.mxu0 0.0
        %742 = vmatprep.subr.mxu0 0.0
        %743 = vmatpush1.msra.mxu0 0.0
        %744 = vmatprep.mubr.f32.mxu0 0.0
        %745 = vmatmul.mubr.f32.gmra.mrb[0].mxu0 %v508
        %v746 = vpop.f32.mrb[0].mxu0
        %v747 = vadd.f32 %v678, %v746
        %v748 = vpop.f32.mrb[0].mxu0
        %749 = vdwg.mxu0
        %vm750 = vcmask 130048
        %v752 = vsel %vm750, %v577, 0
        %v755 = vsel %vm750, %v662, 0
        %757 = vmatprep.subr.mxu0 0.0
        %758 = vmatpush1.xpose.msra.mxu0 %v755
        %759 = vmatprep.subr.mxu0 0.0
        %760 = vmatpush1.xpose.msra.mxu0 0.0
        %761 = vmatprep.subr.mxu0 0.0
        %762 = vmatpush1.xpose.msra.mxu0 0.0
        %763 = vmatprep.subr.mxu0 0.0
        %764 = vmatpush1.xpose.msra.mxu0 0.0
        %765 = vmatprep.subr.mxu0 0.0
        %766 = vmatpush1.xpose.msra.mxu0 0.0
        %767 = vmatprep.subr.mxu0 0.0
        %768 = vmatpush1.xpose.msra.mxu0 0.0
        %769 = vmatprep.subr.mxu0 0.0
        %770 = vmatpush1.xpose.msra.mxu0 0.0
        %771 = vmatprep.subr.mxu0 0.0
        %772 = vmatpush1.xpose.msra.mxu0 0.0
        %773 = vmatprep.subr.mxu0 0.0
        %774 = vmatpush1.xpose.msra.mxu0 0.0
        %775 = vmatprep.subr.mxu0 0.0
        %776 = vmatpush1.xpose.msra.mxu0 0.0
        %777 = vmatprep.subr.mxu0 0.0
        %778 = vmatpush1.xpose.msra.mxu0 0.0
        %779 = vmatprep.subr.mxu0 0.0
        %780 = vmatpush1.xpose.msra.mxu0 0.0
        %781 = vmatprep.subr.mxu0 0.0
        %782 = vmatpush1.xpose.msra.mxu0 0.0
        %783 = vmatprep.subr.mxu0 0.0
        %784 = vmatpush1.xpose.msra.mxu0 0.0
        %785 = vmatprep.subr.mxu0 0.0
        %786 = vmatpush1.xpose.msra.mxu0 0.0
        %787 = vmatprep.subr.mxu0 0.0
        %788 = vmatpush1.xpose.msra.mxu0 0.0
        %789 = vmatprep.subr.mxu0 0.0
        %790 = vmatpush1.xpose.msra.mxu0 0.0
        %791 = vmatprep.subr.mxu0 0.0
        %792 = vmatpush1.xpose.msra.mxu0 0.0
        %793 = vmatprep.subr.mxu0 0.0
        %794 = vmatpush1.xpose.msra.mxu0 0.0
        %795 = vmatprep.subr.mxu0 0.0
        %796 = vmatpush1.xpose.msra.mxu0 0.0
        %797 = vmatprep.subr.mxu0 0.0
        %798 = vmatpush1.xpose.msra.mxu0 0.0
        %799 = vmatprep.subr.mxu0 0.0
        %800 = vmatpush1.xpose.msra.mxu0 0.0
        %801 = vmatprep.subr.mxu0 0.0
        %802 = vmatpush1.xpose.msra.mxu0 0.0
        %803 = vmatprep.subr.mxu0 0.0
        %804 = vmatpush1.xpose.msra.mxu0 0.0
        %805 = vmatprep.subr.mxu0 0.0
        %806 = vmatpush1.xpose.msra.mxu0 0.0
        %807 = vmatprep.subr.mxu0 0.0
        %808 = vmatpush1.xpose.msra.mxu0 0.0
        %809 = vmatprep.subr.mxu0 0.0
        %810 = vmatpush1.xpose.msra.mxu0 0.0
        %811 = vmatprep.subr.mxu0 0.0
        %812 = vmatpush1.xpose.msra.mxu0 0.0
        %813 = vmatprep.subr.mxu0 0.0
        %814 = vmatpush1.xpose.msra.mxu0 0.0
        %815 = vmatprep.subr.mxu0 0.0
        %816 = vmatpush1.xpose.msra.mxu0 0.0
        %817 = vmatprep.subr.mxu0 0.0
        %818 = vmatpush1.xpose.msra.mxu0 0.0
        %819 = vmatprep.subr.mxu0 0.0
        %820 = vmatpush1.xpose.msra.mxu0 0.0
        %821 = vmatprep.mubr.f32.mxu0 0.0
        %822 = vmatmul.mubr.f32.gmra.mrb[0].mxu0 %v752
        %v823 = vpop.f32.mrb[0].mxu0
        %v824 = vadd.f32 0.0, %v823
        %v825 = vpop.f32.mrb[0].mxu0
        %826 = vdwg.mxu0
        %v827 = vmul.f32 %v824, 0.25
        %v828 = vld [vmem:[%s2] sm:$0xff]
        %vm829 = vcmp.eq.f32.partialorder %v828, 0.0
        %v830 = vsel %vm829, -1e+09, %v827
        %vm831 = vcmask 64512
        %v832 = vsel %vm831, %v830, -inf
        %833 = vmax.xlane.f32.xlu0 %v832
        %v834 = vpop.xlane.xlu0 %833
        %v835 = vsub.f32 %v830, %v834
        %v836 = vmul.f32 %v835, 1.442695
        %v837 = vpow.pop %v836
        %v838 = vsel %vm831, %v837, 0.0
        %839 = vadd.xlane.f32.xlu0 %v838
        %v840 = vpop.xlane.xlu0 %839
        %v841 = vrcp.pop %v840
        %v842 = vmul.f32 %v837, %v841
        %v844 = vsel %vm831, %v842, 0
        %846 = vmatprep.subr.mxu0 0.0
        %847 = vmatpush1.msra.mxu0 %v747
        %848 = vmatprep.subr.mxu0 0.0
        %849 = vmatpush1.msra.mxu0 0.0
        %850 = vmatprep.subr.mxu0 0.0
        %851 = vmatpush1.msra.mxu0 0.0
        %852 = vmatprep.subr.mxu0 0.0
        %853 = vmatpush1.msra.mxu0 0.0
        %854 = vmatprep.subr.mxu0 0.0
        %855 = vmatpush1.msra.mxu0 0.0
        %856 = vmatprep.subr.mxu0 0.0
        %857 = vmatpush1.msra.mxu0 0.0
        %858 = vmatprep.subr.mxu0 0.0
        %859 = vmatpush1.msra.mxu0 0.0
        %860 = vmatprep.subr.mxu0 0.0
        %861 = vmatpush1.msra.mxu0 0.0
        %862 = vmatprep.subr.mxu0 0.0
        %863 = vmatpush1.msra.mxu0 0.0
        %864 = vmatprep.subr.mxu0 0.0
        %865 = vmatpush1.msra.mxu0 0.0
        %866 = vmatprep.subr.mxu0 0.0
        %867 = vmatpush1.msra.mxu0 0.0
        %868 = vmatprep.subr.mxu0 0.0
        %869 = vmatpush1.msra.mxu0 0.0
        %870 = vmatprep.subr.mxu0 0.0
        %871 = vmatpush1.msra.mxu0 0.0
        %872 = vmatprep.subr.mxu0 0.0
        %873 = vmatpush1.msra.mxu0 0.0
        %874 = vmatprep.subr.mxu0 0.0
        %875 = vmatpush1.msra.mxu0 0.0
        %876 = vmatprep.subr.mxu0 0.0
        %877 = vmatpush1.msra.mxu0 0.0
        %878 = vmatprep.subr.mxu0 0.0
        %879 = vmatpush1.msra.mxu0 0.0
        %880 = vmatprep.subr.mxu0 0.0
        %881 = vmatpush1.msra.mxu0 0.0
        %882 = vmatprep.subr.mxu0 0.0
        %883 = vmatpush1.msra.mxu0 0.0
        %884 = vmatprep.subr.mxu0 0.0
        %885 = vmatpush1.msra.mxu0 0.0
        %886 = vmatprep.subr.mxu0 0.0
        %887 = vmatpush1.msra.mxu0 0.0
        %888 = vmatprep.subr.mxu0 0.0
        %889 = vmatpush1.msra.mxu0 0.0
        %890 = vmatprep.subr.mxu0 0.0
        %891 = vmatpush1.msra.mxu0 0.0
        %892 = vmatprep.subr.mxu0 0.0
        %893 = vmatpush1.msra.mxu0 0.0
        %894 = vmatprep.subr.mxu0 0.0
        %895 = vmatpush1.msra.mxu0 0.0
        %896 = vmatprep.subr.mxu0 0.0
        %897 = vmatpush1.msra.mxu0 0.0
        %898 = vmatprep.subr.mxu0 0.0
        %899 = vmatpush1.msra.mxu0 0.0
        %900 = vmatprep.subr.mxu0 0.0
        %901 = vmatpush1.msra.mxu0 0.0
        %902 = vmatprep.subr.mxu0 0.0
        %903 = vmatpush1.msra.mxu0 0.0
        %904 = vmatprep.subr.mxu0 0.0
        %905 = vmatpush1.msra.mxu0 0.0
        %906 = vmatprep.subr.mxu0 0.0
        %907 = vmatpush1.msra.mxu0 0.0
        %908 = vmatprep.subr.mxu0 0.0
        %909 = vmatpush1.msra.mxu0 0.0
        %910 = vmatprep.mubr.f32.mxu0 0.0
        %911 = vmatmul.mubr.f32.gmra.mrb[0].mxu0 %v844
        %v912 = vpop.f32.mrb[0].mxu0
        %v913 = vadd.f32 0.0, %v912
        %v914 = vpop.f32.mrb[0].mxu0
        %915 = vdwg.mxu0
        %v916 = vld [vmem:[%s11] sm:$0xff]
        %v917 = vld [vmem:[%s11 + $0x8] sm:$0xff]
        %s918 = scalar_lea.vmem %s5, 64
        %v919 = vld [vmem:[%s918] sm:$0xff]
        %v920 = vld [vmem:[%s918 + $0x8] sm:$0xff]
        %v921 = vld [vmem:[%s918 + $0x10] sm:$0xff]
        %v922 = vld [vmem:[%s918 + $0x18] sm:$0xff]
        %v923 = vld [vmem:[%s918 + $0x20] sm:$0xff]
        %v924 = vld [vmem:[%s918 + $0x28] sm:$0xff]
        %v925 = vld [vmem:[%s918 + $0x30] sm:$0xff]
        %v926 = vld [vmem:[%s918 + $0x38] sm:$0xff]
        %s927 = scalar_lea.vmem %s6, 1
        %v928 = vld [vmem:[%s927] sm:$0x1]
        %v930 = vlaneseq
        %v931 = vshrl.u32 %v930, 7
        %v932 = vsub.s32 0, %v931
        %v933 = vrot.slane %v928, %v932
        %935 = vmatprep.subr.mxu0 0.0
        %936 = vmatpush1.msra.mxu0 %v919
        %937 = vmatprep.subr.mxu0 0.0
        %938 = vmatpush1.msra.mxu0 %v920
        %939 = vmatprep.subr.mxu0 0.0
        %940 = vmatpush1.msra.mxu0 %v921
        %941 = vmatprep.subr.mxu0 0.0
        %942 = vmatpush1.msra.mxu0 %v922
        %943 = vmatprep.subr.mxu0 0.0
        %944 = vmatpush1.msra.mxu0 %v923
        %945 = vmatprep.subr.mxu0 0.0
        %946 = vmatpush1.msra.mxu0 %v924
        %947 = vmatprep.subr.mxu0 0.0
        %948 = vmatpush1.msra.mxu0 %v925
        %949 = vmatprep.subr.mxu0 0.0
        %950 = vmatpush1.msra.mxu0 %v926
        %951 = vmatprep.subr.mxu0 0.0
        %952 = vmatpush1.msra.mxu0 0.0
        %953 = vmatprep.subr.mxu0 0.0
        %954 = vmatpush1.msra.mxu0 0.0
        %955 = vmatprep.subr.mxu0 0.0
        %956 = vmatpush1.msra.mxu0 0.0
        %957 = vmatprep.subr.mxu0 0.0
        %958 = vmatpush1.msra.mxu0 0.0
        %959 = vmatprep.subr.mxu0 0.0
        %960 = vmatpush1.msra.mxu0 0.0
        %961 = vmatprep.subr.mxu0 0.0
        %962 = vmatpush1.msra.mxu0 0.0
        %963 = vmatprep.subr.mxu0 0.0
        %964 = vmatpush1.msra.mxu0 0.0
        %965 = vmatprep.subr.mxu0 0.0
        %966 = vmatpush1.msra.mxu0 0.0
        %967 = vmatprep.subr.mxu0 0.0
        %968 = vmatpush1.msra.mxu0 0.0
        %969 = vmatprep.subr.mxu0 0.0
        %970 = vmatpush1.msra.mxu0 0.0
        %971 = vmatprep.subr.mxu0 0.0
        %972 = vmatpush1.msra.mxu0 0.0
        %973 = vmatprep.subr.mxu0 0.0
        %974 = vmatpush1.msra.mxu0 0.0
        %975 = vmatprep.subr.mxu0 0.0
        %976 = vmatpush1.msra.mxu0 0.0
        %977 = vmatprep.subr.mxu0 0.0
        %978 = vmatpush1.msra.mxu0 0.0
        %979 = vmatprep.subr.mxu0 0.0
        %980 = vmatpush1.msra.mxu0 0.0
        %981 = vmatprep.subr.mxu0 0.0
        %982 = vmatpush1.msra.mxu0 0.0
        %983 = vmatprep.subr.mxu0 0.0
        %984 = vmatpush1.msra.mxu0 0.0
        %985 = vmatprep.subr.mxu0 0.0
        %986 = vmatpush1.msra.mxu0 0.0
        %987 = vmatprep.subr.mxu0 0.0
        %988 = vmatpush1.msra.mxu0 0.0
        %989 = vmatprep.subr.mxu0 0.0
        %990 = vmatpush1.msra.mxu0 0.0
        %991 = vmatprep.subr.mxu0 0.0
        %992 = vmatpush1.msra.mxu0 0.0
        %993 = vmatprep.subr.mxu0 0.0
        %994 = vmatpush1.msra.mxu0 0.0
        %995 = vmatprep.subr.mxu0 0.0
        %996 = vmatpush1.msra.mxu0 0.0
        %997 = vmatprep.subr.mxu0 0.0
        %998 = vmatpush1.msra.mxu0 0.0
        %999 = vmatprep.mubr.f32.mxu0 0.0
        %1000 = vmatmul.mubr.f32.gmra.mrb[0].mxu0 %v508
        %v1001 = vpop.f32.mrb[0].mxu0
        %v1002 = vadd.f32 %v933, %v1001
        %v1003 = vpop.f32.mrb[0].mxu0
        %1004 = vdwg.mxu0
        %s1005 = scalar_lea.vmem %s7, 64
        %v1006 = vld [vmem:[%s1005] sm:$0xff]
        %v1007 = vld [vmem:[%s1005 + $0x8] sm:$0xff]
        %v1008 = vld [vmem:[%s1005 + $0x10] sm:$0xff]
        %v1009 = vld [vmem:[%s1005 + $0x18] sm:$0xff]
        %v1010 = vld [vmem:[%s1005 + $0x20] sm:$0xff]
        %v1011 = vld [vmem:[%s1005 + $0x28] sm:$0xff]
        %v1012 = vld [vmem:[%s1005 + $0x30] sm:$0xff]
        %v1013 = vld [vmem:[%s1005 + $0x38] sm:$0xff]
        %s1014 = scalar_lea.vmem %s8, 1
        %v1015 = vld [vmem:[%s1014] sm:$0x1]
        %v1017 = vlaneseq
        %v1018 = vshrl.u32 %v1017, 7
        %v1019 = vsub.s32 0, %v1018
        %v1020 = vrot.slane %v1015, %v1019
        %1022 = vmatprep.subr.mxu0 0.0
        %1023 = vmatpush1.msra.mxu0 %v1006
        %1024 = vmatprep.subr.mxu0 0.0
        %1025 = vmatpush1.msra.mxu0 %v1007
        %1026 = vmatprep.subr.mxu0 0.0
        %1027 = vmatpush1.msra.mxu0 %v1008
        %1028 = vmatprep.subr.mxu0 0.0
        %1029 = vmatpush1.msra.mxu0 %v1009
        %1030 = vmatprep.subr.mxu0 0.0
        %1031 = vmatpush1.msra.mxu0 %v1010
        %1032 = vmatprep.subr.mxu0 0.0
        %1033 = vmatpush1.msra.mxu0 %v1011
        %1034 = vmatprep.subr.mxu0 0.0
        %1035 = vmatpush1.msra.mxu0 %v1012
        %1036 = vmatprep.subr.mxu0 0.0
        %1037 = vmatpush1.msra.mxu0 %v1013
        %1038 = vmatprep.subr.mxu0 0.0
        %1039 = vmatpush1.msra.mxu0 0.0
        %1040 = vmatprep.subr.mxu0 0.0
        %1041 = vmatpush1.msra.mxu0 0.0
        %1042 = vmatprep.subr.mxu0 0.0
        %1043 = vmatpush1.msra.mxu0 0.0
        %1044 = vmatprep.subr.mxu0 0.0
        %1045 = vmatpush1.msra.mxu0 0.0
        %1046 = vmatprep.subr.mxu0 0.0
        %1047 = vmatpush1.msra.mxu0 0.0
        %1048 = vmatprep.subr.mxu0 0.0
        %1049 = vmatpush1.msra.mxu0 0.0
        %1050 = vmatprep.subr.mxu0 0.0
        %1051 = vmatpush1.msra.mxu0 0.0
        %1052 = vmatprep.subr.mxu0 0.0
        %1053 = vmatpush1.msra.mxu0 0.0
        %1054 = vmatprep.subr.mxu0 0.0
        %1055 = vmatpush1.msra.mxu0 0.0
        %1056 = vmatprep.subr.mxu0 0.0
        %1057 = vmatpush1.msra.mxu0 0.0
        %1058 = vmatprep.subr.mxu0 0.0
        %1059 = vmatpush1.msra.mxu0 0.0
        %1060 = vmatprep.subr.mxu0 0.0
        %1061 = vmatpush1.msra.mxu0 0.0
        %1062 = vmatprep.subr.mxu0 0.0
        %1063 = vmatpush1.msra.mxu0 0.0
        %1064 = vmatprep.subr.mxu0 0.0
        %1065 = vmatpush1.msra.mxu0 0.0
        %1066 = vmatprep.subr.mxu0 0.0
        %1067 = vmatpush1.msra.mxu0 0.0
        %1068 = vmatprep.subr.mxu0 0.0
        %1069 = vmatpush1.msra.mxu0 0.0
        %1070 = vmatprep.subr.mxu0 0.0
        %1071 = vmatpush1.msra.mxu0 0.0
        %1072 = vmatprep.subr.mxu0 0.0
        %1073 = vmatpush1.msra.mxu0 0.0
        %1074 = vmatprep.subr.mxu0 0.0
        %1075 = vmatpush1.msra.mxu0 0.0
        %1076 = vmatprep.subr.mxu0 0.0
        %1077 = vmatpush1.msra.mxu0 0.0
        %1078 = vmatprep.subr.mxu0 0.0
        %1079 = vmatpush1.msra.mxu0 0.0
        %1080 = vmatprep.subr.mxu0 0.0
        %1081 = vmatpush1.msra.mxu0 0.0
        %1082 = vmatprep.subr.mxu0 0.0
        %1083 = vmatpush1.msra.mxu0 0.0
        %1084 = vmatprep.subr.mxu0 0.0
        %1085 = vmatpush1.msra.mxu0 0.0
        %1086 = vmatprep.mubr.f32.mxu0 0.0
        %1087 = vmatmul.mubr.f32.gmra.mrb[0].mxu0 %v508
        %v1088 = vpop.f32.mrb[0].mxu0
        %v1089 = vadd.f32 %v1020, %v1088
        %v1090 = vpop.f32.mrb[0].mxu0
        %1091 = vdwg.mxu0
        %s1092 = scalar_lea.vmem %s9, 64
        %v1093 = vld [vmem:[%s1092] sm:$0xff]
        %v1094 = vld [vmem:[%s1092 + $0x8] sm:$0xff]
        %v1095 = vld [vmem:[%s1092 + $0x10] sm:$0xff]
        %v1096 = vld [vmem:[%s1092 + $0x18] sm:$0xff]
        %v1097 = vld [vmem:[%s1092 + $0x20] sm:$0xff]
        %v1098 = vld [vmem:[%s1092 + $0x28] sm:$0xff]
        %v1099 = vld [vmem:[%s1092 + $0x30] sm:$0xff]
        %v1100 = vld [vmem:[%s1092 + $0x38] sm:$0xff]
        %s1101 = scalar_lea.vmem %s10, 1
        %v1102 = vld [vmem:[%s1101] sm:$0x1]
        %v1104 = vlaneseq
        %v1105 = vshrl.u32 %v1104, 7
        %v1106 = vsub.s32 0, %v1105
        %v1107 = vrot.slane %v1102, %v1106
        %1109 = vmatprep.subr.mxu0 0.0
        %1110 = vmatpush1.msra.mxu0 %v1093
        %1111 = vmatprep.subr.mxu0 0.0
        %1112 = vmatpush1.msra.mxu0 %v1094
        %1113 = vmatprep.subr.mxu0 0.0
        %1114 = vmatpush1.msra.mxu0 %v1095
        %1115 = vmatprep.subr.mxu0 0.0
        %1116 = vmatpush1.msra.mxu0 %v1096
        %1117 = vmatprep.subr.mxu0 0.0
        %1118 = vmatpush1.msra.mxu0 %v1097
        %1119 = vmatprep.subr.mxu0 0.0
        %1120 = vmatpush1.msra.mxu0 %v1098
        %1121 = vmatprep.subr.mxu0 0.0
        %1122 = vmatpush1.msra.mxu0 %v1099
        %1123 = vmatprep.subr.mxu0 0.0
        %1124 = vmatpush1.msra.mxu0 %v1100
        %1125 = vmatprep.subr.mxu0 0.0
        %1126 = vmatpush1.msra.mxu0 0.0
        %1127 = vmatprep.subr.mxu0 0.0
        %1128 = vmatpush1.msra.mxu0 0.0
        %1129 = vmatprep.subr.mxu0 0.0
        %1130 = vmatpush1.msra.mxu0 0.0
        %1131 = vmatprep.subr.mxu0 0.0
        %1132 = vmatpush1.msra.mxu0 0.0
        %1133 = vmatprep.subr.mxu0 0.0
        %1134 = vmatpush1.msra.mxu0 0.0
        %1135 = vmatprep.subr.mxu0 0.0
        %1136 = vmatpush1.msra.mxu0 0.0
        %1137 = vmatprep.subr.mxu0 0.0
        %1138 = vmatpush1.msra.mxu0 0.0
        %1139 = vmatprep.subr.mxu0 0.0
        %1140 = vmatpush1.msra.mxu0 0.0
        %1141 = vmatprep.subr.mxu0 0.0
        %1142 = vmatpush1.msra.mxu0 0.0
        %1143 = vmatprep.subr.mxu0 0.0
        %1144 = vmatpush1.msra.mxu0 0.0
        %1145 = vmatprep.subr.mxu0 0.0
        %1146 = vmatpush1.msra.mxu0 0.0
        %1147 = vmatprep.subr.mxu0 0.0
        %1148 = vmatpush1.msra.mxu0 0.0
        %1149 = vmatprep.subr.mxu0 0.0
        %1150 = vmatpush1.msra.mxu0 0.0
        %1151 = vmatprep.subr.mxu0 0.0
        %1152 = vmatpush1.msra.mxu0 0.0
        %1153 = vmatprep.subr.mxu0 0.0
        %1154 = vmatpush1.msra.mxu0 0.0
        %1155 = vmatprep.subr.mxu0 0.0
        %1156 = vmatpush1.msra.mxu0 0.0
        %1157 = vmatprep.subr.mxu0 0.0
        %1158 = vmatpush1.msra.mxu0 0.0
        %1159 = vmatprep.subr.mxu0 0.0
        %1160 = vmatpush1.msra.mxu0 0.0
        %1161 = vmatprep.subr.mxu0 0.0
        %1162 = vmatpush1.msra.mxu0 0.0
        %1163 = vmatprep.subr.mxu0 0.0
        %1164 = vmatpush1.msra.mxu0 0.0
        %1165 = vmatprep.subr.mxu0 0.0
        %1166 = vmatpush1.msra.mxu0 0.0
        %1167 = vmatprep.subr.mxu0 0.0
        %1168 = vmatpush1.msra.mxu0 0.0
        %1169 = vmatprep.subr.mxu0 0.0
        %1170 = vmatpush1.msra.mxu0 0.0
        %1171 = vmatprep.subr.mxu0 0.0
        %1172 = vmatpush1.msra.mxu0 0.0
        %1173 = vmatprep.mubr.f32.mxu0 0.0
        %1174 = vmatmul.mubr.f32.gmra.mrb[0].mxu0 %v508
        %v1175 = vpop.f32.mrb[0].mxu0
        %v1176 = vadd.f32 %v1107, %v1175
        %v1177 = vpop.f32.mrb[0].mxu0
        %1178 = vdwg.mxu0
        %v1180 = vsel %vm750, %v1002, 0
        %v1183 = vsel %vm750, %v1089, 0
        %1185 = vmatprep.subr.mxu0 0.0
        %1186 = vmatpush1.xpose.msra.mxu0 %v1183
        %1187 = vmatprep.subr.mxu0 0.0
        %1188 = vmatpush1.xpose.msra.mxu0 0.0
        %1189 = vmatprep.subr.mxu0 0.0
        %1190 = vmatpush1.xpose.msra.mxu0 0.0
        %1191 = vmatprep.subr.mxu0 0.0
        %1192 = vmatpush1.xpose.msra.mxu0 0.0
        %1193 = vmatprep.subr.mxu0 0.0
        %1194 = vmatpush1.xpose.msra.mxu0 0.0
        %1195 = vmatprep.subr.mxu0 0.0
        %1196 = vmatpush1.xpose.msra.mxu0 0.0
        %1197 = vmatprep.subr.mxu0 0.0
        %1198 = vmatpush1.xpose.msra.mxu0 0.0
        %1199 = vmatprep.subr.mxu0 0.0
        %1200 = vmatpush1.xpose.msra.mxu0 0.0
        %1201 = vmatprep.subr.mxu0 0.0
        %1202 = vmatpush1.xpose.msra.mxu0 0.0
        %1203 = vmatprep.subr.mxu0 0.0
        %1204 = vmatpush1.xpose.msra.mxu0 0.0
        %1205 = vmatprep.subr.mxu0 0.0
        %1206 = vmatpush1.xpose.msra.mxu0 0.0
        %1207 = vmatprep.subr.mxu0 0.0
        %1208 = vmatpush1.xpose.msra.mxu0 0.0
        %1209 = vmatprep.subr.mxu0 0.0
        %1210 = vmatpush1.xpose.msra.mxu0 0.0
        %1211 = vmatprep.subr.mxu0 0.0
        %1212 = vmatpush1.xpose.msra.mxu0 0.0
        %1213 = vmatprep.subr.mxu0 0.0
        %1214 = vmatpush1.xpose.msra.mxu0 0.0
        %1215 = vmatprep.subr.mxu0 0.0
        %1216 = vmatpush1.xpose.msra.mxu0 0.0
        %1217 = vmatprep.subr.mxu0 0.0
        %1218 = vmatpush1.xpose.msra.mxu0 0.0
        %1219 = vmatprep.subr.mxu0 0.0
        %1220 = vmatpush1.xpose.msra.mxu0 0.0
        %1221 = vmatprep.subr.mxu0 0.0
        %1222 = vmatpush1.xpose.msra.mxu0 0.0
        %1223 = vmatprep.subr.mxu0 0.0
        %1224 = vmatpush1.xpose.msra.mxu0 0.0
        %1225 = vmatprep.subr.mxu0 0.0
        %1226 = vmatpush1.xpose.msra.mxu0 0.0
        %1227 = vmatprep.subr.mxu0 0.0
        %1228 = vmatpush1.xpose.msra.mxu0 0.0
        %1229 = vmatprep.subr.mxu0 0.0
        %1230 = vmatpush1.xpose.msra.mxu0 0.0
        %1231 = vmatprep.subr.mxu0 0.0
        %1232 = vmatpush1.xpose.msra.mxu0 0.0
        %1233 = vmatprep.subr.mxu0 0.0
        %1234 = vmatpush1.xpose.msra.mxu0 0.0
        %1235 = vmatprep.subr.mxu0 0.0
        %1236 = vmatpush1.xpose.msra.mxu0 0.0
        %1237 = vmatprep.subr.mxu0 0.0
        %1238 = vmatpush1.xpose.msra.mxu0 0.0
        %1239 = vmatprep.subr.mxu0 0.0
        %1240 = vmatpush1.xpose.msra.mxu0 0.0
        %1241 = vmatprep.subr.mxu0 0.0
        %1242 = vmatpush1.xpose.msra.mxu0 0.0
        %1243 = vmatprep.subr.mxu0 0.0
        %1244 = vmatpush1.xpose.msra.mxu0 0.0
        %1245 = vmatprep.subr.mxu0 0.0
        %1246 = vmatpush1.xpose.msra.mxu0 0.0
        %1247 = vmatprep.subr.mxu0 0.0
        %1248 = vmatpush1.xpose.msra.mxu0 0.0
        %1249 = vmatprep.mubr.f32.mxu0 0.0
        %1250 = vmatmul.mubr.f32.gmra.mrb[0].mxu0 %v1180
        %v1251 = vpop.f32.mrb[0].mxu0
        %v1252 = vadd.f32 0.0, %v1251
        %v1253 = vpop.f32.mrb[0].mxu0
        %1254 = vdwg.mxu0
        %v1255 = vmul.f32 %v1252, 0.25
        %s1256 = scalar_lea.vmem %s2, 8
        %v1257 = vld [vmem:[%s1256] sm:$0xff]
        %vm1258 = vcmp.eq.f32.partialorder %v1257, 0.0
        %v1259 = vsel %vm1258, -1e+09, %v1255
        %v1260 = vsel %vm831, %v1259, -inf
        %1261 = vmax.xlane.f32.xlu0 %v1260
        %v1262 = vpop.xlane.xlu0 %1261
        %v1263 = vsub.f32 %v1259, %v1262
        %v1264 = vmul.f32 %v1263, 1.442695
        %v1265 = vpow.pop %v1264
        %v1266 = vsel %vm831, %v1265, 0.0
        %1267 = vadd.xlane.f32.xlu0 %v1266
        %v1268 = vpop.xlane.xlu0 %1267
        %v1269 = vrcp.pop %v1268
        %v1270 = vmul.f32 %v1265, %v1269
        %v1272 = vsel %vm831, %v1270, 0
        %1274 = vmatprep.subr.mxu0 0.0
        %1275 = vmatpush1.msra.mxu0 %v1176
        %1276 = vmatprep.subr.mxu0 0.0
        %1277 = vmatpush1.msra.mxu0 0.0
        %1278 = vmatprep.subr.mxu0 0.0
        %1279 = vmatpush1.msra.mxu0 0.0
        %1280 = vmatprep.subr.mxu0 0.0
        %1281 = vmatpush1.msra.mxu0 0.0
        %1282 = vmatprep.subr.mxu0 0.0
        %1283 = vmatpush1.msra.mxu0 0.0
        %1284 = vmatprep.subr.mxu0 0.0
        %1285 = vmatpush1.msra.mxu0 0.0
        %1286 = vmatprep.subr.mxu0 0.0
        %1287 = vmatpush1.msra.mxu0 0.0
        %1288 = vmatprep.subr.mxu0 0.0
        %1289 = vmatpush1.msra.mxu0 0.0
        %1290 = vmatprep.subr.mxu0 0.0
        %1291 = vmatpush1.msra.mxu0 0.0
        %1292 = vmatprep.subr.mxu0 0.0
        %1293 = vmatpush1.msra.mxu0 0.0
        %1294 = vmatprep.subr.mxu0 0.0
        %1295 = vmatpush1.msra.mxu0 0.0
        %1296 = vmatprep.subr.mxu0 0.0
        %1297 = vmatpush1.msra.mxu0 0.0
        %1298 = vmatprep.subr.mxu0 0.0
        %1299 = vmatpush1.msra.mxu0 0.0
        %1300 = vmatprep.subr.mxu0 0.0
        %1301 = vmatpush1.msra.mxu0 0.0
        %1302 = vmatprep.subr.mxu0 0.0
        %1303 = vmatpush1.msra.mxu0 0.0
        %1304 = vmatprep.subr.mxu0 0.0
        %1305 = vmatpush1.msra.mxu0 0.0
        %1306 = vmatprep.subr.mxu0 0.0
        %1307 = vmatpush1.msra.mxu0 0.0
        %1308 = vmatprep.subr.mxu0 0.0
        %1309 = vmatpush1.msra.mxu0 0.0
        %1310 = vmatprep.subr.mxu0 0.0
        %1311 = vmatpush1.msra.mxu0 0.0
        %1312 = vmatprep.subr.mxu0 0.0
        %1313 = vmatpush1.msra.mxu0 0.0
        %1314 = vmatprep.subr.mxu0 0.0
        %1315 = vmatpush1.msra.mxu0 0.0
        %1316 = vmatprep.subr.mxu0 0.0
        %1317 = vmatpush1.msra.mxu0 0.0
        %1318 = vmatprep.subr.mxu0 0.0
        %1319 = vmatpush1.msra.mxu0 0.0
        %1320 = vmatprep.subr.mxu0 0.0
        %1321 = vmatpush1.msra.mxu0 0.0
        %1322 = vmatprep.subr.mxu0 0.0
        %1323 = vmatpush1.msra.mxu0 0.0
        %1324 = vmatprep.subr.mxu0 0.0
        %1325 = vmatpush1.msra.mxu0 0.0
        %1326 = vmatprep.subr.mxu0 0.0
        %1327 = vmatpush1.msra.mxu0 0.0
        %1328 = vmatprep.subr.mxu0 0.0
        %1329 = vmatpush1.msra.mxu0 0.0
        %1330 = vmatprep.subr.mxu0 0.0
        %1331 = vmatpush1.msra.mxu0 0.0
        %1332 = vmatprep.subr.mxu0 0.0
        %1333 = vmatpush1.msra.mxu0 0.0
        %1334 = vmatprep.subr.mxu0 0.0
        %1335 = vmatpush1.msra.mxu0 0.0
        %1336 = vmatprep.subr.mxu0 0.0
        %1337 = vmatpush1.msra.mxu0 0.0
        %1338 = vmatprep.mubr.f32.mxu0 0.0
        %1339 = vmatmul.mubr.f32.gmra.mrb[0].mxu0 %v1272
        %v1340 = vpop.f32.mrb[0].mxu0
        %v1341 = vadd.f32 0.0, %v1340
        %v1342 = vpop.f32.mrb[0].mxu0
        %1343 = vdwg.mxu0
        %s1344 = scalar_lea.vmem %s11, 16
        %v1345 = vld [vmem:[%s1344] sm:$0xff]
        %v1346 = vld [vmem:[%s1344 + $0x8] sm:$0xff]
        %v1348 = vsel %vm750, %v1341, 0
        %1350 = vmatprep.subr.mxu0 0.0
        %1351 = vmatpush1.msra.mxu0 %v1345
        %1352 = vmatprep.subr.mxu0 0.0
        %1353 = vmatpush1.msra.mxu0 %v1346
        %1354 = vmatprep.subr.mxu0 0.0
        %1355 = vmatpush1.msra.mxu0 0.0
        %1356 = vmatprep.subr.mxu0 0.0
        %1357 = vmatpush1.msra.mxu0 0.0
        %1358 = vmatprep.subr.mxu0 0.0
        %1359 = vmatpush1.msra.mxu0 0.0
        %1360 = vmatprep.subr.mxu0 0.0
        %1361 = vmatpush1.msra.mxu0 0.0
        %1362 = vmatprep.subr.mxu0 0.0
        %1363 = vmatpush1.msra.mxu0 0.0
        %1364 = vmatprep.subr.mxu0 0.0
        %1365 = vmatpush1.msra.mxu0 0.0
        %1366 = vmatprep.subr.mxu0 0.0
        %1367 = vmatpush1.msra.mxu0 0.0
        %1368 = vmatprep.subr.mxu0 0.0
        %1369 = vmatpush1.msra.mxu0 0.0
        %1370 = vmatprep.subr.mxu0 0.0
        %1371 = vmatpush1.msra.mxu0 0.0
        %1372 = vmatprep.subr.mxu0 0.0
        %1373 = vmatpush1.msra.mxu0 0.0
        %1374 = vmatprep.subr.mxu0 0.0
        %1375 = vmatpush1.msra.mxu0 0.0
        %1376 = vmatprep.subr.mxu0 0.0
        %1377 = vmatpush1.msra.mxu0 0.0
        %1378 = vmatprep.subr.mxu0 0.0
        %1379 = vmatpush1.msra.mxu0 0.0
        %1380 = vmatprep.subr.mxu0 0.0
        %1381 = vmatpush1.msra.mxu0 0.0
        %1382 = vmatprep.subr.mxu0 0.0
        %1383 = vmatpush1.msra.mxu0 0.0
        %1384 = vmatprep.subr.mxu0 0.0
        %1385 = vmatpush1.msra.mxu0 0.0
        %1386 = vmatprep.subr.mxu0 0.0
        %1387 = vmatpush1.msra.mxu0 0.0
        %1388 = vmatprep.subr.mxu0 0.0
        %1389 = vmatpush1.msra.mxu0 0.0
        %1390 = vmatprep.subr.mxu0 0.0
        %1391 = vmatpush1.msra.mxu0 0.0
        %1392 = vmatprep.subr.mxu0 0.0
        %1393 = vmatpush1.msra.mxu0 0.0
        %1394 = vmatprep.subr.mxu0 0.0
        %1395 = vmatpush1.msra.mxu0 0.0
        %1396 = vmatprep.subr.mxu0 0.0
        %1397 = vmatpush1.msra.mxu0 0.0
        %1398 = vmatprep.subr.mxu0 0.0
        %1399 = vmatpush1.msra.mxu0 0.0
        %1400 = vmatprep.subr.mxu0 0.0
        %1401 = vmatpush1.msra.mxu0 0.0
        %1402 = vmatprep.subr.mxu0 0.0
        %1403 = vmatpush1.msra.mxu0 0.0
        %1404 = vmatprep.subr.mxu0 0.0
        %1405 = vmatpush1.msra.mxu0 0.0
        %1406 = vmatprep.subr.mxu0 0.0
        %1407 = vmatpush1.msra.mxu0 0.0
        %1408 = vmatprep.subr.mxu0 0.0
        %1409 = vmatpush1.msra.mxu0 0.0
        %1410 = vmatprep.subr.mxu0 0.0
        %1411 = vmatpush1.msra.mxu0 0.0
        %1412 = vmatprep.subr.mxu0 0.0
        %1413 = vmatpush1.msra.mxu0 0.0
        %1414 = vmatprep.mubr.f32.mxu0 0.0
        %1415 = vmatmul.mubr.f32.gmra.mrb[0].mxu0 %v1348
        %v1416 = vpop.f32.mrb[0].mxu0
        %v1417 = vadd.f32 0.0, %v1416
        %v1418 = vpop.f32.mrb[0].mxu0
        %1419 = vdwg.mxu0
        %v1421 = vsel %vm750, %v913, 0
        %1423 = vmatprep.subr.mxu0 0.0
        %1424 = vmatpush1.msra.mxu0 %v916
        %1425 = vmatprep.subr.mxu0 0.0
        %1426 = vmatpush1.msra.mxu0 %v917
        %1427 = vmatprep.subr.mxu0 0.0
        %1428 = vmatpush1.msra.mxu0 0.0
        %1429 = vmatprep.subr.mxu0 0.0
        %1430 = vmatpush1.msra.mxu0 0.0
        %1431 = vmatprep.subr.mxu0 0.0
        %1432 = vmatpush1.msra.mxu0 0.0
        %1433 = vmatprep.subr.mxu0 0.0
        %1434 = vmatpush1.msra.mxu0 0.0
        %1435 = vmatprep.subr.mxu0 0.0
        %1436 = vmatpush1.msra.mxu0 0.0
        %1437 = vmatprep.subr.mxu0 0.0
        %1438 = vmatpush1.msra.mxu0 0.0
        %1439 = vmatprep.subr.mxu0 0.0
        %1440 = vmatpush1.msra.mxu0 0.0
        %1441 = vmatprep.subr.mxu0 0.0
        %1442 = vmatpush1.msra.mxu0 0.0
        %1443 = vmatprep.subr.mxu0 0.0
        %1444 = vmatpush1.msra.mxu0 0.0
        %1445 = vmatprep.subr.mxu0 0.0
        %1446 = vmatpush1.msra.mxu0 0.0
        %1447 = vmatprep.subr.mxu0 0.0
        %1448 = vmatpush1.msra.mxu0 0.0
        %1449 = vmatprep.subr.mxu0 0.0
        %1450 = vmatpush1.msra.mxu0 0.0
        %1451 = vmatprep.subr.mxu0 0.0
        %1452 = vmatpush1.msra.mxu0 0.0
        %1453 = vmatprep.subr.mxu0 0.0
        %1454 = vmatpush1.msra.mxu0 0.0
        %1455 = vmatprep.subr.mxu0 0.0
        %1456 = vmatpush1.msra.mxu0 0.0
        %1457 = vmatprep.subr.mxu0 0.0
        %1458 = vmatpush1.msra.mxu0 0.0
        %1459 = vmatprep.subr.mxu0 0.0
        %1460 = vmatpush1.msra.mxu0 0.0
        %1461 = vmatprep.subr.mxu0 0.0
        %1462 = vmatpush1.msra.mxu0 0.0
        %1463 = vmatprep.subr.mxu0 0.0
        %1464 = vmatpush1.msra.mxu0 0.0
        %1465 = vmatprep.subr.mxu0 0.0
        %1466 = vmatpush1.msra.mxu0 0.0
        %1467 = vmatprep.subr.mxu0 0.0
        %1468 = vmatpush1.msra.mxu0 0.0
        %1469 = vmatprep.subr.mxu0 0.0
        %1470 = vmatpush1.msra.mxu0 0.0
        %1471 = vmatprep.subr.mxu0 0.0
        %1472 = vmatpush1.msra.mxu0 0.0
        %1473 = vmatprep.subr.mxu0 0.0
        %1474 = vmatpush1.msra.mxu0 0.0
        %1475 = vmatprep.subr.mxu0 0.0
        %1476 = vmatpush1.msra.mxu0 0.0
        %1477 = vmatprep.subr.mxu0 0.0
        %1478 = vmatpush1.msra.mxu0 0.0
        %1479 = vmatprep.subr.mxu0 0.0
        %1480 = vmatpush1.msra.mxu0 0.0
        %1481 = vmatprep.subr.mxu0 0.0
        %1482 = vmatpush1.msra.mxu0 0.0
        %1483 = vmatprep.subr.mxu0 0.0
        %1484 = vmatpush1.msra.mxu0 0.0
        %1485 = vmatprep.subr.mxu0 0.0
        %1486 = vmatpush1.msra.mxu0 0.0
        %1487 = vmatprep.mubr.f32.mxu0 0.0
        %1488 = vmatmul.mubr.f32.gmra.mrb[0].mxu0 %v1421
        %v1489 = vpop.f32.mrb[0].mxu0
        %v1490 = vadd.f32 %v1417, %v1489
        %v1491 = vpop.f32.mrb[0].mxu0
        %1492 = vdwg.mxu0
        %s1493 = scalar_lea.vmem %s5, 128
        %v1494 = vld [vmem:[%s1493] sm:$0xff]
        %v1495 = vld [vmem:[%s1493 + $0x8] sm:$0xff]
        %v1496 = vld [vmem:[%s1493 + $0x10] sm:$0xff]
        %v1497 = vld [vmem:[%s1493 + $0x18] sm:$0xff]
        %v1498 = vld [vmem:[%s1493 + $0x20] sm:$0xff]
        %v1499 = vld [vmem:[%s1493 + $0x28] sm:$0xff]
        %v1500 = vld [vmem:[%s1493 + $0x30] sm:$0xff]
        %v1501 = vld [vmem:[%s1493 + $0x38] sm:$0xff]
        %s1502 = scalar_lea.vmem %s6, 2
        %v1503 = vld [vmem:[%s1502] sm:$0x1]
        %v1505 = vlaneseq
        %v1506 = vshrl.u32 %v1505, 7
        %v1507 = vsub.s32 0, %v1506
        %v1508 = vrot.slane %v1503, %v1507
        %1510 = vmatprep.subr.mxu0 0.0
        %1511 = vmatpush1.msra.mxu0 %v1494
        %1512 = vmatprep.subr.mxu0 0.0
        %1513 = vmatpush1.msra.mxu0 %v1495
        %1514 = vmatprep.subr.mxu0 0.0
        %1515 = vmatpush1.msra.mxu0 %v1496
        %1516 = vmatprep.subr.mxu0 0.0
        %1517 = vmatpush1.msra.mxu0 %v1497
        %1518 = vmatprep.subr.mxu0 0.0
        %1519 = vmatpush1.msra.mxu0 %v1498
        %1520 = vmatprep.subr.mxu0 0.0
        %1521 = vmatpush1.msra.mxu0 %v1499
        %1522 = vmatprep.subr.mxu0 0.0
        %1523 = vmatpush1.msra.mxu0 %v1500
        %1524 = vmatprep.subr.mxu0 0.0
        %1525 = vmatpush1.msra.mxu0 %v1501
        %1526 = vmatprep.subr.mxu0 0.0
        %1527 = vmatpush1.msra.mxu0 0.0
        %1528 = vmatprep.subr.mxu0 0.0
        %1529 = vmatpush1.msra.mxu0 0.0
        %1530 = vmatprep.subr.mxu0 0.0
        %1531 = vmatpush1.msra.mxu0 0.0
        %1532 = vmatprep.subr.mxu0 0.0
        %1533 = vmatpush1.msra.mxu0 0.0
        %1534 = vmatprep.subr.mxu0 0.0
        %1535 = vmatpush1.msra.mxu0 0.0
        %1536 = vmatprep.subr.mxu0 0.0
        %1537 = vmatpush1.msra.mxu0 0.0
        %1538 = vmatprep.subr.mxu0 0.0
        %1539 = vmatpush1.msra.mxu0 0.0
        %1540 = vmatprep.subr.mxu0 0.0
        %1541 = vmatpush1.msra.mxu0 0.0
        %1542 = vmatprep.subr.mxu0 0.0
        %1543 = vmatpush1.msra.mxu0 0.0
        %1544 = vmatprep.subr.mxu0 0.0
        %1545 = vmatpush1.msra.mxu0 0.0
        %1546 = vmatprep.subr.mxu0 0.0
        %1547 = vmatpush1.msra.mxu0 0.0
        %1548 = vmatprep.subr.mxu0 0.0
        %1549 = vmatpush1.msra.mxu0 0.0
        %1550 = vmatprep.subr.mxu0 0.0
        %1551 = vmatpush1.msra.mxu0 0.0
        %1552 = vmatprep.subr.mxu0 0.0
        %1553 = vmatpush1.msra.mxu0 0.0
        %1554 = vmatprep.subr.mxu0 0.0
        %1555 = vmatpush1.msra.mxu0 0.0
        %1556 = vmatprep.subr.mxu0 0.0
        %1557 = vmatpush1.msra.mxu0 0.0
        %1558 = vmatprep.subr.mxu0 0.0
        %1559 = vmatpush1.msra.mxu0 0.0
        %1560 = vmatprep.subr.mxu0 0.0
        %1561 = vmatpush1.msra.mxu0 0.0
        %1562 = vmatprep.subr.mxu0 0.0
        %1563 = vmatpush1.msra.mxu0 0.0
        %1564 = vmatprep.subr.mxu0 0.0
        %1565 = vmatpush1.msra.mxu0 0.0
        %1566 = vmatprep.subr.mxu0 0.0
        %1567 = vmatpush1.msra.mxu0 0.0
        %1568 = vmatprep.subr.mxu0 0.0
        %1569 = vmatpush1.msra.mxu0 0.0
        %1570 = vmatprep.subr.mxu0 0.0
        %1571 = vmatpush1.msra.mxu0 0.0
        %1572 = vmatprep.subr.mxu0 0.0
        %1573 = vmatpush1.msra.mxu0 0.0
        %1574 = vmatprep.mubr.f32.mxu0 0.0
        %1575 = vmatmul.mubr.f32.gmra.mrb[0].mxu0 %v508
        %v1576 = vpop.f32.mrb[0].mxu0
        %v1577 = vadd.f32 %v1508, %v1576
        %v1578 = vpop.f32.mrb[0].mxu0
        %1579 = vdwg.mxu0
        %s1580 = scalar_lea.vmem %s7, 128
        %v1581 = vld [vmem:[%s1580] sm:$0xff]
        %v1582 = vld [vmem:[%s1580 + $0x8] sm:$0xff]
        %v1583 = vld [vmem:[%s1580 + $0x10] sm:$0xff]
        %v1584 = vld [vmem:[%s1580 + $0x18] sm:$0xff]
        %v1585 = vld [vmem:[%s1580 + $0x20] sm:$0xff]
        %v1586 = vld [vmem:[%s1580 + $0x28] sm:$0xff]
        %v1587 = vld [vmem:[%s1580 + $0x30] sm:$0xff]
        %v1588 = vld [vmem:[%s1580 + $0x38] sm:$0xff]
        %s1589 = scalar_lea.vmem %s8, 2
        %v1590 = vld [vmem:[%s1589] sm:$0x1]
        %v1592 = vlaneseq
        %v1593 = vshrl.u32 %v1592, 7
        %v1594 = vsub.s32 0, %v1593
        %v1595 = vrot.slane %v1590, %v1594
        %1597 = vmatprep.subr.mxu0 0.0
        %1598 = vmatpush1.msra.mxu0 %v1581
        %1599 = vmatprep.subr.mxu0 0.0
        %1600 = vmatpush1.msra.mxu0 %v1582
        %1601 = vmatprep.subr.mxu0 0.0
        %1602 = vmatpush1.msra.mxu0 %v1583
        %1603 = vmatprep.subr.mxu0 0.0
        %1604 = vmatpush1.msra.mxu0 %v1584
        %1605 = vmatprep.subr.mxu0 0.0
        %1606 = vmatpush1.msra.mxu0 %v1585
        %1607 = vmatprep.subr.mxu0 0.0
        %1608 = vmatpush1.msra.mxu0 %v1586
        %1609 = vmatprep.subr.mxu0 0.0
        %1610 = vmatpush1.msra.mxu0 %v1587
        %1611 = vmatprep.subr.mxu0 0.0
        %1612 = vmatpush1.msra.mxu0 %v1588
        %1613 = vmatprep.subr.mxu0 0.0
        %1614 = vmatpush1.msra.mxu0 0.0
        %1615 = vmatprep.subr.mxu0 0.0
        %1616 = vmatpush1.msra.mxu0 0.0
        %1617 = vmatprep.subr.mxu0 0.0
        %1618 = vmatpush1.msra.mxu0 0.0
        %1619 = vmatprep.subr.mxu0 0.0
        %1620 = vmatpush1.msra.mxu0 0.0
        %1621 = vmatprep.subr.mxu0 0.0
        %1622 = vmatpush1.msra.mxu0 0.0
        %1623 = vmatprep.subr.mxu0 0.0
        %1624 = vmatpush1.msra.mxu0 0.0
        %1625 = vmatprep.subr.mxu0 0.0
        %1626 = vmatpush1.msra.mxu0 0.0
        %1627 = vmatprep.subr.mxu0 0.0
        %1628 = vmatpush1.msra.mxu0 0.0
        %1629 = vmatprep.subr.mxu0 0.0
        %1630 = vmatpush1.msra.mxu0 0.0
        %1631 = vmatprep.subr.mxu0 0.0
        %1632 = vmatpush1.msra.mxu0 0.0
        %1633 = vmatprep.subr.mxu0 0.0
        %1634 = vmatpush1.msra.mxu0 0.0
        %1635 = vmatprep.subr.mxu0 0.0
        %1636 = vmatpush1.msra.mxu0 0.0
        %1637 = vmatprep.subr.mxu0 0.0
        %1638 = vmatpush1.msra.mxu0 0.0
        %1639 = vmatprep.subr.mxu0 0.0
        %1640 = vmatpush1.msra.mxu0 0.0
        %1641 = vmatprep.subr.mxu0 0.0
        %1642 = vmatpush1.msra.mxu0 0.0
        %1643 = vmatprep.subr.mxu0 0.0
        %1644 = vmatpush1.msra.mxu0 0.0
        %1645 = vmatprep.subr.mxu0 0.0
        %1646 = vmatpush1.msra.mxu0 0.0
        %1647 = vmatprep.subr.mxu0 0.0
        %1648 = vmatpush1.msra.mxu0 0.0
        %1649 = vmatprep.subr.mxu0 0.0
        %1650 = vmatpush1.msra.mxu0 0.0
        %1651 = vmatprep.subr.mxu0 0.0
        %1652 = vmatpush1.msra.mxu0 0.0
        %1653 = vmatprep.subr.mxu0 0.0
        %1654 = vmatpush1.msra.mxu0 0.0
        %1655 = vmatprep.subr.mxu0 0.0
        %1656 = vmatpush1.msra.mxu0 0.0
        %1657 = vmatprep.subr.mxu0 0.0
        %1658 = vmatpush1.msra.mxu0 0.0
        %1659 = vmatprep.subr.mxu0 0.0
        %1660 = vmatpush1.msra.mxu0 0.0
        %1661 = vmatprep.mubr.f32.mxu0 0.0
        %1662 = vmatmul.mubr.f32.gmra.mrb[0].mxu0 %v508
        %v1663 = vpop.f32.mrb[0].mxu0
        %v1664 = vadd.f32 %v1595, %v1663
        %v1665 = vpop.f32.mrb[0].mxu0
        %1666 = vdwg.mxu0
        %s1667 = scalar_lea.vmem %s9, 128
        %v1668 = vld [vmem:[%s1667] sm:$0xff]
        %v1669 = vld [vmem:[%s1667 + $0x8] sm:$0xff]
        %v1670 = vld [vmem:[%s1667 + $0x10] sm:$0xff]
        %v1671 = vld [vmem:[%s1667 + $0x18] sm:$0xff]
        %v1672 = vld [vmem:[%s1667 + $0x20] sm:$0xff]
        %v1673 = vld [vmem:[%s1667 + $0x28] sm:$0xff]
        %v1674 = vld [vmem:[%s1667 + $0x30] sm:$0xff]
        %v1675 = vld [vmem:[%s1667 + $0x38] sm:$0xff]
        %s1676 = scalar_lea.vmem %s10, 2
        %v1677 = vld [vmem:[%s1676] sm:$0x1]
        %v1679 = vlaneseq
        %v1680 = vshrl.u32 %v1679, 7
        %v1681 = vsub.s32 0, %v1680
        %v1682 = vrot.slane %v1677, %v1681
        %1684 = vmatprep.subr.mxu0 0.0
        %1685 = vmatpush1.msra.mxu0 %v1668
        %1686 = vmatprep.subr.mxu0 0.0
        %1687 = vmatpush1.msra.mxu0 %v1669
        %1688 = vmatprep.subr.mxu0 0.0
        %1689 = vmatpush1.msra.mxu0 %v1670
        %1690 = vmatprep.subr.mxu0 0.0
        %1691 = vmatpush1.msra.mxu0 %v1671
        %1692 = vmatprep.subr.mxu0 0.0
        %1693 = vmatpush1.msra.mxu0 %v1672
        %1694 = vmatprep.subr.mxu0 0.0
        %1695 = vmatpush1.msra.mxu0 %v1673
        %1696 = vmatprep.subr.mxu0 0.0
        %1697 = vmatpush1.msra.mxu0 %v1674
        %1698 = vmatprep.subr.mxu0 0.0
        %1699 = vmatpush1.msra.mxu0 %v1675
        %1700 = vmatprep.subr.mxu0 0.0
        %1701 = vmatpush1.msra.mxu0 0.0
        %1702 = vmatprep.subr.mxu0 0.0
        %1703 = vmatpush1.msra.mxu0 0.0
        %1704 = vmatprep.subr.mxu0 0.0
        %1705 = vmatpush1.msra.mxu0 0.0
        %1706 = vmatprep.subr.mxu0 0.0
        %1707 = vmatpush1.msra.mxu0 0.0
        %1708 = vmatprep.subr.mxu0 0.0
        %1709 = vmatpush1.msra.mxu0 0.0
        %1710 = vmatprep.subr.mxu0 0.0
        %1711 = vmatpush1.msra.mxu0 0.0
        %1712 = vmatprep.subr.mxu0 0.0
        %1713 = vmatpush1.msra.mxu0 0.0
        %1714 = vmatprep.subr.mxu0 0.0
        %1715 = vmatpush1.msra.mxu0 0.0
        %1716 = vmatprep.subr.mxu0 0.0
        %1717 = vmatpush1.msra.mxu0 0.0
        %1718 = vmatprep.subr.mxu0 0.0
        %1719 = vmatpush1.msra.mxu0 0.0
        %1720 = vmatprep.subr.mxu0 0.0
        %1721 = vmatpush1.msra.mxu0 0.0
        %1722 = vmatprep.subr.mxu0 0.0
        %1723 = vmatpush1.msra.mxu0 0.0
        %1724 = vmatprep.subr.mxu0 0.0
        %1725 = vmatpush1.msra.mxu0 0.0
        %1726 = vmatprep.subr.mxu0 0.0
        %1727 = vmatpush1.msra.mxu0 0.0
        %1728 = vmatprep.subr.mxu0 0.0
        %1729 = vmatpush1.msra.mxu0 0.0
        %1730 = vmatprep.subr.mxu0 0.0
        %1731 = vmatpush1.msra.mxu0 0.0
        %1732 = vmatprep.subr.mxu0 0.0
        %1733 = vmatpush1.msra.mxu0 0.0
        %1734 = vmatprep.subr.mxu0 0.0
        %1735 = vmatpush1.msra.mxu0 0.0
        %1736 = vmatprep.subr.mxu0 0.0
        %1737 = vmatpush1.msra.mxu0 0.0
        %1738 = vmatprep.subr.mxu0 0.0
        %1739 = vmatpush1.msra.mxu0 0.0
        %1740 = vmatprep.subr.mxu0 0.0
        %1741 = vmatpush1.msra.mxu0 0.0
        %1742 = vmatprep.subr.mxu0 0.0
        %1743 = vmatpush1.msra.mxu0 0.0
        %1744 = vmatprep.subr.mxu0 0.0
        %1745 = vmatpush1.msra.mxu0 0.0
        %1746 = vmatprep.subr.mxu0 0.0
        %1747 = vmatpush1.msra.mxu0 0.0
        %1748 = vmatprep.mubr.f32.mxu0 0.0
        %1749 = vmatmul.mubr.f32.gmra.mrb[0].mxu0 %v508
        %v1750 = vpop.f32.mrb[0].mxu0
        %v1751 = vadd.f32 %v1682, %v1750
        %v1752 = vpop.f32.mrb[0].mxu0
        %1753 = vdwg.mxu0
        %v1755 = vsel %vm750, %v1577, 0
        %v1758 = vsel %vm750, %v1664, 0
        %1760 = vmatprep.subr.mxu0 0.0
        %1761 = vmatpush1.xpose.msra.mxu0 %v1758
        %1762 = vmatprep.subr.mxu0 0.0
        %1763 = vmatpush1.xpose.msra.mxu0 0.0
        %1764 = vmatprep.subr.mxu0 0.0
        %1765 = vmatpush1.xpose.msra.mxu0 0.0
        %1766 = vmatprep.subr.mxu0 0.0
        %1767 = vmatpush1.xpose.msra.mxu0 0.0
        %1768 = vmatprep.subr.mxu0 0.0
        %1769 = vmatpush1.xpose.msra.mxu0 0.0
        %1770 = vmatprep.subr.mxu0 0.0
        %1771 = vmatpush1.xpose.msra.mxu0 0.0
        %1772 = vmatprep.subr.mxu0 0.0
        %1773 = vmatpush1.xpose.msra.mxu0 0.0
        %1774 = vmatprep.subr.mxu0 0.0
        %1775 = vmatpush1.xpose.msra.mxu0 0.0
        %1776 = vmatprep.subr.mxu0 0.0
        %1777 = vmatpush1.xpose.msra.mxu0 0.0
        %1778 = vmatprep.subr.mxu0 0.0
        %1779 = vmatpush1.xpose.msra.mxu0 0.0
        %1780 = vmatprep.subr.mxu0 0.0
        %1781 = vmatpush1.xpose.msra.mxu0 0.0
        %1782 = vmatprep.subr.mxu0 0.0
        %1783 = vmatpush1.xpose.msra.mxu0 0.0
        %1784 = vmatprep.subr.mxu0 0.0
        %1785 = vmatpush1.xpose.msra.mxu0 0.0
        %1786 = vmatprep.subr.mxu0 0.0
        %1787 = vmatpush1.xpose.msra.mxu0 0.0
        %1788 = vmatprep.subr.mxu0 0.0
        %1789 = vmatpush1.xpose.msra.mxu0 0.0
        %1790 = vmatprep.subr.mxu0 0.0
        %1791 = vmatpush1.xpose.msra.mxu0 0.0
        %1792 = vmatprep.subr.mxu0 0.0
        %1793 = vmatpush1.xpose.msra.mxu0 0.0
        %1794 = vmatprep.subr.mxu0 0.0
        %1795 = vmatpush1.xpose.msra.mxu0 0.0
        %1796 = vmatprep.subr.mxu0 0.0
        %1797 = vmatpush1.xpose.msra.mxu0 0.0
        %1798 = vmatprep.subr.mxu0 0.0
        %1799 = vmatpush1.xpose.msra.mxu0 0.0
        %1800 = vmatprep.subr.mxu0 0.0
        %1801 = vmatpush1.xpose.msra.mxu0 0.0
        %1802 = vmatprep.subr.mxu0 0.0
        %1803 = vmatpush1.xpose.msra.mxu0 0.0
        %1804 = vmatprep.subr.mxu0 0.0
        %1805 = vmatpush1.xpose.msra.mxu0 0.0
        %1806 = vmatprep.subr.mxu0 0.0
        %1807 = vmatpush1.xpose.msra.mxu0 0.0
        %1808 = vmatprep.subr.mxu0 0.0
        %1809 = vmatpush1.xpose.msra.mxu0 0.0
        %1810 = vmatprep.subr.mxu0 0.0
        %1811 = vmatpush1.xpose.msra.mxu0 0.0
        %1812 = vmatprep.subr.mxu0 0.0
        %1813 = vmatpush1.xpose.msra.mxu0 0.0
        %1814 = vmatprep.subr.mxu0 0.0
        %1815 = vmatpush1.xpose.msra.mxu0 0.0
        %1816 = vmatprep.subr.mxu0 0.0
        %1817 = vmatpush1.xpose.msra.mxu0 0.0
        %1818 = vmatprep.subr.mxu0 0.0
        %1819 = vmatpush1.xpose.msra.mxu0 0.0
        %1820 = vmatprep.subr.mxu0 0.0
        %1821 = vmatpush1.xpose.msra.mxu0 0.0
        %1822 = vmatprep.subr.mxu0 0.0
        %1823 = vmatpush1.xpose.msra.mxu0 0.0
        %1824 = vmatprep.mubr.f32.mxu0 0.0
        %1825 = vmatmul.mubr.f32.gmra.mrb[0].mxu0 %v1755
        %v1826 = vpop.f32.mrb[0].mxu0
        %v1827 = vadd.f32 0.0, %v1826
        %v1828 = vpop.f32.mrb[0].mxu0
        %1829 = vdwg.mxu0
        %v1830 = vmul.f32 %v1827, 0.25
        %s1831 = scalar_lea.vmem %s2, 16
        %v1832 = vld [vmem:[%s1831] sm:$0xff]
        %vm1833 = vcmp.eq.f32.partialorder %v1832, 0.0
        %v1834 = vsel %vm1833, -1e+09, %v1830
        %v1835 = vsel %vm831, %v1834, -inf
        %1836 = vmax.xlane.f32.xlu0 %v1835
        %v1837 = vpop.xlane.xlu0 %1836
        %v1838 = vsub.f32 %v1834, %v1837
        %v1839 = vmul.f32 %v1838, 1.442695
        %v1840 = vpow.pop %v1839
        %v1841 = vsel %vm831, %v1840, 0.0
        %1842 = vadd.xlane.f32.xlu0 %v1841
        %v1843 = vpop.xlane.xlu0 %1842
        %v1844 = vrcp.pop %v1843
        %v1845 = vmul.f32 %v1840, %v1844
        %v1847 = vsel %vm831, %v1845, 0
        %1849 = vmatprep.subr.mxu0 0.0
        %1850 = vmatpush1.msra.mxu0 %v1751
        %1851 = vmatprep.subr.mxu0 0.0
        %1852 = vmatpush1.msra.mxu0 0.0
        %1853 = vmatprep.subr.mxu0 0.0
        %1854 = vmatpush1.msra.mxu0 0.0
        %1855 = vmatprep.subr.mxu0 0.0
        %1856 = vmatpush1.msra.mxu0 0.0
        %1857 = vmatprep.subr.mxu0 0.0
        %1858 = vmatpush1.msra.mxu0 0.0
        %1859 = vmatprep.subr.mxu0 0.0
        %1860 = vmatpush1.msra.mxu0 0.0
        %1861 = vmatprep.subr.mxu0 0.0
        %1862 = vmatpush1.msra.mxu0 0.0
        %1863 = vmatprep.subr.mxu0 0.0
        %1864 = vmatpush1.msra.mxu0 0.0
        %1865 = vmatprep.subr.mxu0 0.0
        %1866 = vmatpush1.msra.mxu0 0.0
        %1867 = vmatprep.subr.mxu0 0.0
        %1868 = vmatpush1.msra.mxu0 0.0
        %1869 = vmatprep.subr.mxu0 0.0
        %1870 = vmatpush1.msra.mxu0 0.0
        %1871 = vmatprep.subr.mxu0 0.0
        %1872 = vmatpush1.msra.mxu0 0.0
        %1873 = vmatprep.subr.mxu0 0.0
        %1874 = vmatpush1.msra.mxu0 0.0
        %1875 = vmatprep.subr.mxu0 0.0
        %1876 = vmatpush1.msra.mxu0 0.0
        %1877 = vmatprep.subr.mxu0 0.0
        %1878 = vmatpush1.msra.mxu0 0.0
        %1879 = vmatprep.subr.mxu0 0.0
        %1880 = vmatpush1.msra.mxu0 0.0
        %1881 = vmatprep.subr.mxu0 0.0
        %1882 = vmatpush1.msra.mxu0 0.0
        %1883 = vmatprep.subr.mxu0 0.0
        %1884 = vmatpush1.msra.mxu0 0.0
        %1885 = vmatprep.subr.mxu0 0.0
        %1886 = vmatpush1.msra.mxu0 0.0
        %1887 = vmatprep.subr.mxu0 0.0
        %1888 = vmatpush1.msra.mxu0 0.0
        %1889 = vmatprep.subr.mxu0 0.0
        %1890 = vmatpush1.msra.mxu0 0.0
        %1891 = vmatprep.subr.mxu0 0.0
        %1892 = vmatpush1.msra.mxu0 0.0
        %1893 = vmatprep.subr.mxu0 0.0
        %1894 = vmatpush1.msra.mxu0 0.0
        %1895 = vmatprep.subr.mxu0 0.0
        %1896 = vmatpush1.msra.mxu0 0.0
        %1897 = vmatprep.subr.mxu0 0.0
        %1898 = vmatpush1.msra.mxu0 0.0
        %1899 = vmatprep.subr.mxu0 0.0
        %1900 = vmatpush1.msra.mxu0 0.0
        %1901 = vmatprep.subr.mxu0 0.0
        %1902 = vmatpush1.msra.mxu0 0.0
        %1903 = vmatprep.subr.mxu0 0.0
        %1904 = vmatpush1.msra.mxu0 0.0
        %1905 = vmatprep.subr.mxu0 0.0
        %1906 = vmatpush1.msra.mxu0 0.0
        %1907 = vmatprep.subr.mxu0 0.0
        %1908 = vmatpush1.msra.mxu0 0.0
        %1909 = vmatprep.subr.mxu0 0.0
        %1910 = vmatpush1.msra.mxu0 0.0
        %1911 = vmatprep.subr.mxu0 0.0
        %1912 = vmatpush1.msra.mxu0 0.0
        %1913 = vmatprep.mubr.f32.mxu0 0.0
        %1914 = vmatmul.mubr.f32.gmra.mrb[0].mxu0 %v1847
        %v1915 = vpop.f32.mrb[0].mxu0
        %v1916 = vadd.f32 0.0, %v1915
        %v1917 = vpop.f32.mrb[0].mxu0
        %1918 = vdwg.mxu0
        %s1919 = scalar_lea.vmem %s11, 32
        %v1920 = vld [vmem:[%s1919] sm:$0xff]
        %v1921 = vld [vmem:[%s1919 + $0x8] sm:$0xff]
        %v1923 = vsel %vm750, %v1916, 0
        %1925 = vmatprep.subr.mxu0 0.0
        %1926 = vmatpush1.msra.mxu0 %v1920
        %1927 = vmatprep.subr.mxu0 0.0
        %1928 = vmatpush1.msra.mxu0 %v1921
        %1929 = vmatprep.subr.mxu0 0.0
        %1930 = vmatpush1.msra.mxu0 0.0
        %1931 = vmatprep.subr.mxu0 0.0
        %1932 = vmatpush1.msra.mxu0 0.0
        %1933 = vmatprep.subr.mxu0 0.0
        %1934 = vmatpush1.msra.mxu0 0.0
        %1935 = vmatprep.subr.mxu0 0.0
        %1936 = vmatpush1.msra.mxu0 0.0
        %1937 = vmatprep.subr.mxu0 0.0
        %1938 = vmatpush1.msra.mxu0 0.0
        %1939 = vmatprep.subr.mxu0 0.0
        %1940 = vmatpush1.msra.mxu0 0.0
        %1941 = vmatprep.subr.mxu0 0.0
        %1942 = vmatpush1.msra.mxu0 0.0
        %1943 = vmatprep.subr.mxu0 0.0
        %1944 = vmatpush1.msra.mxu0 0.0
        %1945 = vmatprep.subr.mxu0 0.0
        %1946 = vmatpush1.msra.mxu0 0.0
        %1947 = vmatprep.subr.mxu0 0.0
        %1948 = vmatpush1.msra.mxu0 0.0
        %1949 = vmatprep.subr.mxu0 0.0
        %1950 = vmatpush1.msra.mxu0 0.0
        %1951 = vmatprep.subr.mxu0 0.0
        %1952 = vmatpush1.msra.mxu0 0.0
        %1953 = vmatprep.subr.mxu0 0.0
        %1954 = vmatpush1.msra.mxu0 0.0
        %1955 = vmatprep.subr.mxu0 0.0
        %1956 = vmatpush1.msra.mxu0 0.0
        %1957 = vmatprep.subr.mxu0 0.0
        %1958 = vmatpush1.msra.mxu0 0.0
        %1959 = vmatprep.subr.mxu0 0.0
        %1960 = vmatpush1.msra.mxu0 0.0
        %1961 = vmatprep.subr.mxu0 0.0
        %1962 = vmatpush1.msra.mxu0 0.0
        %1963 = vmatprep.subr.mxu0 0.0
        %1964 = vmatpush1.msra.mxu0 0.0
        %1965 = vmatprep.subr.mxu0 0.0
        %1966 = vmatpush1.msra.mxu0 0.0
        %1967 = vmatprep.subr.mxu0 0.0
        %1968 = vmatpush1.msra.mxu0 0.0
        %1969 = vmatprep.subr.mxu0 0.0
        %1970 = vmatpush1.msra.mxu0 0.0
        %1971 = vmatprep.subr.mxu0 0.0
        %1972 = vmatpush1.msra.mxu0 0.0
        %1973 = vmatprep.subr.mxu0 0.0
        %1974 = vmatpush1.msra.mxu0 0.0
        %1975 = vmatprep.subr.mxu0 0.0
        %1976 = vmatpush1.msra.mxu0 0.0
        %1977 = vmatprep.subr.mxu0 0.0
        %1978 = vmatpush1.msra.mxu0 0.0
        %1979 = vmatprep.subr.mxu0 0.0
        %1980 = vmatpush1.msra.mxu0 0.0
        %1981 = vmatprep.subr.mxu0 0.0
        %1982 = vmatpush1.msra.mxu0 0.0
        %1983 = vmatprep.subr.mxu0 0.0
        %1984 = vmatpush1.msra.mxu0 0.0
        %1985 = vmatprep.subr.mxu0 0.0
        %1986 = vmatpush1.msra.mxu0 0.0
        %1987 = vmatprep.subr.mxu0 0.0
        %1988 = vmatpush1.msra.mxu0 0.0
        %1989 = vmatprep.mubr.f32.mxu0 0.0
        %1990 = vmatmul.mubr.f32.gmra.mrb[0].mxu0 %v1923
        %v1991 = vpop.f32.mrb[0].mxu0
        %v1992 = vadd.f32 0.0, %v1991
        %v1993 = vpop.f32.mrb[0].mxu0
        %1994 = vdwg.mxu0
        %v1995 = vadd.f32 %v1490, %v1992
        %s1996 = scalar_lea.vmem %s5, 192
        %v1997 = vld [vmem:[%s1996] sm:$0xff]
        %v1998 = vld [vmem:[%s1996 + $0x8] sm:$0xff]
        %v1999 = vld [vmem:[%s1996 + $0x10] sm:$0xff]
        %v2000 = vld [vmem:[%s1996 + $0x18] sm:$0xff]
        %v2001 = vld [vmem:[%s1996 + $0x20] sm:$0xff]
        %v2002 = vld [vmem:[%s1996 + $0x28] sm:$0xff]
        %v2003 = vld [vmem:[%s1996 + $0x30] sm:$0xff]
        %v2004 = vld [vmem:[%s1996 + $0x38] sm:$0xff]
        %s2005 = scalar_lea.vmem %s6, 3
        %v2006 = vld [vmem:[%s2005] sm:$0x1]
        %v2008 = vlaneseq
        %v2009 = vshrl.u32 %v2008, 7
        %v2010 = vsub.s32 0, %v2009
        %v2011 = vrot.slane %v2006, %v2010
        %2013 = vmatprep.subr.mxu0 0.0
        %2014 = vmatpush1.msra.mxu0 %v1997
        %2015 = vmatprep.subr.mxu0 0.0
        %2016 = vmatpush1.msra.mxu0 %v1998
        %2017 = vmatprep.subr.mxu0 0.0
        %2018 = vmatpush1.msra.mxu0 %v1999
        %2019 = vmatprep.subr.mxu0 0.0
        %2020 = vmatpush1.msra.mxu0 %v2000
        %2021 = vmatprep.subr.mxu0 0.0
        %2022 = vmatpush1.msra.mxu0 %v2001
        %2023 = vmatprep.subr.mxu0 0.0
        %2024 = vmatpush1.msra.mxu0 %v2002
        %2025 = vmatprep.subr.mxu0 0.0
        %2026 = vmatpush1.msra.mxu0 %v2003
        %2027 = vmatprep.subr.mxu0 0.0
        %2028 = vmatpush1.msra.mxu0 %v2004
        %2029 = vmatprep.subr.mxu0 0.0
        %2030 = vmatpush1.msra.mxu0 0.0
        %2031 = vmatprep.subr.mxu0 0.0
        %2032 = vmatpush1.msra.mxu0 0.0
        %2033 = vmatprep.subr.mxu0 0.0
        %2034 = vmatpush1.msra.mxu0 0.0
        %2035 = vmatprep.subr.mxu0 0.0
        %2036 = vmatpush1.msra.mxu0 0.0
        %2037 = vmatprep.subr.mxu0 0.0
        %2038 = vmatpush1.msra.mxu0 0.0
        %2039 = vmatprep.subr.mxu0 0.0
        %2040 = vmatpush1.msra.mxu0 0.0
        %2041 = vmatprep.subr.mxu0 0.0
        %2042 = vmatpush1.msra.mxu0 0.0
        %2043 = vmatprep.subr.mxu0 0.0
        %2044 = vmatpush1.msra.mxu0 0.0
        %2045 = vmatprep.subr.mxu0 0.0
        %2046 = vmatpush1.msra.mxu0 0.0
        %2047 = vmatprep.subr.mxu0 0.0
        %2048 = vmatpush1.msra.mxu0 0.0
        %2049 = vmatprep.subr.mxu0 0.0
        %2050 = vmatpush1.msra.mxu0 0.0
        %2051 = vmatprep.subr.mxu0 0.0
        %2052 = vmatpush1.msra.mxu0 0.0
        %2053 = vmatprep.subr.mxu0 0.0
        %2054 = vmatpush1.msra.mxu0 0.0
        %2055 = vmatprep.subr.mxu0 0.0
        %2056 = vmatpush1.msra.mxu0 0.0
        %2057 = vmatprep.subr.mxu0 0.0
        %2058 = vmatpush1.msra.mxu0 0.0
        %2059 = vmatprep.subr.mxu0 0.0
        %2060 = vmatpush1.msra.mxu0 0.0
        %2061 = vmatprep.subr.mxu0 0.0
        %2062 = vmatpush1.msra.mxu0 0.0
        %2063 = vmatprep.subr.mxu0 0.0
        %2064 = vmatpush1.msra.mxu0 0.0
        %2065 = vmatprep.subr.mxu0 0.0
        %2066 = vmatpush1.msra.mxu0 0.0
        %2067 = vmatprep.subr.mxu0 0.0
        %2068 = vmatpush1.msra.mxu0 0.0
        %2069 = vmatprep.subr.mxu0 0.0
        %2070 = vmatpush1.msra.mxu0 0.0
        %2071 = vmatprep.subr.mxu0 0.0
        %2072 = vmatpush1.msra.mxu0 0.0
        %2073 = vmatprep.subr.mxu0 0.0
        %2074 = vmatpush1.msra.mxu0 0.0
        %2075 = vmatprep.subr.mxu0 0.0
        %2076 = vmatpush1.msra.mxu0 0.0
        %2077 = vmatprep.mubr.f32.mxu0 0.0
        %2078 = vmatmul.mubr.f32.gmra.mrb[0].mxu0 %v508
        %v2079 = vpop.f32.mrb[0].mxu0
        %v2080 = vadd.f32 %v2011, %v2079
        %v2081 = vpop.f32.mrb[0].mxu0
        %2082 = vdwg.mxu0
        %s2083 = scalar_lea.vmem %s7, 192
        %v2084 = vld [vmem:[%s2083] sm:$0xff]
        %v2085 = vld [vmem:[%s2083 + $0x8] sm:$0xff]
        %v2086 = vld [vmem:[%s2083 + $0x10] sm:$0xff]
        %v2087 = vld [vmem:[%s2083 + $0x18] sm:$0xff]
        %v2088 = vld [vmem:[%s2083 + $0x20] sm:$0xff]
        %v2089 = vld [vmem:[%s2083 + $0x28] sm:$0xff]
        %v2090 = vld [vmem:[%s2083 + $0x30] sm:$0xff]
        %v2091 = vld [vmem:[%s2083 + $0x38] sm:$0xff]
        %s2092 = scalar_lea.vmem %s8, 3
        %v2093 = vld [vmem:[%s2092] sm:$0x1]
        %v2095 = vlaneseq
        %v2096 = vshrl.u32 %v2095, 7
        %v2097 = vsub.s32 0, %v2096
        %v2098 = vrot.slane %v2093, %v2097
        %2100 = vmatprep.subr.mxu0 0.0
        %2101 = vmatpush1.msra.mxu0 %v2084
        %2102 = vmatprep.subr.mxu0 0.0
        %2103 = vmatpush1.msra.mxu0 %v2085
        %2104 = vmatprep.subr.mxu0 0.0
        %2105 = vmatpush1.msra.mxu0 %v2086
        %2106 = vmatprep.subr.mxu0 0.0
        %2107 = vmatpush1.msra.mxu0 %v2087
        %2108 = vmatprep.subr.mxu0 0.0
        %2109 = vmatpush1.msra.mxu0 %v2088
        %2110 = vmatprep.subr.mxu0 0.0
        %2111 = vmatpush1.msra.mxu0 %v2089
        %2112 = vmatprep.subr.mxu0 0.0
        %2113 = vmatpush1.msra.mxu0 %v2090
        %2114 = vmatprep.subr.mxu0 0.0
        %2115 = vmatpush1.msra.mxu0 %v2091
        %2116 = vmatprep.subr.mxu0 0.0
        %2117 = vmatpush1.msra.mxu0 0.0
        %2118 = vmatprep.subr.mxu0 0.0
        %2119 = vmatpush1.msra.mxu0 0.0
        %2120 = vmatprep.subr.mxu0 0.0
        %2121 = vmatpush1.msra.mxu0 0.0
        %2122 = vmatprep.subr.mxu0 0.0
        %2123 = vmatpush1.msra.mxu0 0.0
        %2124 = vmatprep.subr.mxu0 0.0
        %2125 = vmatpush1.msra.mxu0 0.0
        %2126 = vmatprep.subr.mxu0 0.0
        %2127 = vmatpush1.msra.mxu0 0.0
        %2128 = vmatprep.subr.mxu0 0.0
        %2129 = vmatpush1.msra.mxu0 0.0
        %2130 = vmatprep.subr.mxu0 0.0
        %2131 = vmatpush1.msra.mxu0 0.0
        %2132 = vmatprep.subr.mxu0 0.0
        %2133 = vmatpush1.msra.mxu0 0.0
        %2134 = vmatprep.subr.mxu0 0.0
        %2135 = vmatpush1.msra.mxu0 0.0
        %2136 = vmatprep.subr.mxu0 0.0
        %2137 = vmatpush1.msra.mxu0 0.0
        %2138 = vmatprep.subr.mxu0 0.0
        %2139 = vmatpush1.msra.mxu0 0.0
        %2140 = vmatprep.subr.mxu0 0.0
        %2141 = vmatpush1.msra.mxu0 0.0
        %2142 = vmatprep.subr.mxu0 0.0
        %2143 = vmatpush1.msra.mxu0 0.0
        %2144 = vmatprep.subr.mxu0 0.0
        %2145 = vmatpush1.msra.mxu0 0.0
        %2146 = vmatprep.subr.mxu0 0.0
        %2147 = vmatpush1.msra.mxu0 0.0
        %2148 = vmatprep.subr.mxu0 0.0
        %2149 = vmatpush1.msra.mxu0 0.0
        %2150 = vmatprep.subr.mxu0 0.0
        %2151 = vmatpush1.msra.mxu0 0.0
        %2152 = vmatprep.subr.mxu0 0.0
        %2153 = vmatpush1.msra.mxu0 0.0
        %2154 = vmatprep.subr.mxu0 0.0
        %2155 = vmatpush1.msra.mxu0 0.0
        %2156 = vmatprep.subr.mxu0 0.0
        %2157 = vmatpush1.msra.mxu0 0.0
        %2158 = vmatprep.subr.mxu0 0.0
        %2159 = vmatpush1.msra.mxu0 0.0
        %2160 = vmatprep.subr.mxu0 0.0
        %2161 = vmatpush1.msra.mxu0 0.0
        %2162 = vmatprep.subr.mxu0 0.0
        %2163 = vmatpush1.msra.mxu0 0.0
        %2164 = vmatprep.mubr.f32.mxu0 0.0
        %2165 = vmatmul.mubr.f32.gmra.mrb[0].mxu0 %v508
        %v2166 = vpop.f32.mrb[0].mxu0
        %v2167 = vadd.f32 %v2098, %v2166
        %v2168 = vpop.f32.mrb[0].mxu0
        %2169 = vdwg.mxu0
        %s2170 = scalar_lea.vmem %s9, 192
        %v2171 = vld [vmem:[%s2170] sm:$0xff]
        %v2172 = vld [vmem:[%s2170 + $0x8] sm:$0xff]
        %v2173 = vld [vmem:[%s2170 + $0x10] sm:$0xff]
        %v2174 = vld [vmem:[%s2170 + $0x18] sm:$0xff]
        %v2175 = vld [vmem:[%s2170 + $0x20] sm:$0xff]
        %v2176 = vld [vmem:[%s2170 + $0x28] sm:$0xff]
        %v2177 = vld [vmem:[%s2170 + $0x30] sm:$0xff]
        %v2178 = vld [vmem:[%s2170 + $0x38] sm:$0xff]
        %s2179 = scalar_lea.vmem %s10, 3
        %v2180 = vld [vmem:[%s2179] sm:$0x1]
        %v2182 = vlaneseq
        %v2183 = vshrl.u32 %v2182, 7
        %v2184 = vsub.s32 0, %v2183
        %v2185 = vrot.slane %v2180, %v2184
        %2187 = vmatprep.subr.mxu0 0.0
        %2188 = vmatpush1.msra.mxu0 %v2171
        %2189 = vmatprep.subr.mxu0 0.0
        %2190 = vmatpush1.msra.mxu0 %v2172
        %2191 = vmatprep.subr.mxu0 0.0
        %2192 = vmatpush1.msra.mxu0 %v2173
        %2193 = vmatprep.subr.mxu0 0.0
        %2194 = vmatpush1.msra.mxu0 %v2174
        %2195 = vmatprep.subr.mxu0 0.0
        %2196 = vmatpush1.msra.mxu0 %v2175
        %2197 = vmatprep.subr.mxu0 0.0
        %2198 = vmatpush1.msra.mxu0 %v2176
        %2199 = vmatprep.subr.mxu0 0.0
        %2200 = vmatpush1.msra.mxu0 %v2177
        %2201 = vmatprep.subr.mxu0 0.0
        %2202 = vmatpush1.msra.mxu0 %v2178
        %2203 = vmatprep.subr.mxu0 0.0
        %2204 = vmatpush1.msra.mxu0 0.0
        %2205 = vmatprep.subr.mxu0 0.0
        %2206 = vmatpush1.msra.mxu0 0.0
        %2207 = vmatprep.subr.mxu0 0.0
        %2208 = vmatpush1.msra.mxu0 0.0
        %2209 = vmatprep.subr.mxu0 0.0
        %2210 = vmatpush1.msra.mxu0 0.0
        %2211 = vmatprep.subr.mxu0 0.0
        %2212 = vmatpush1.msra.mxu0 0.0
        %2213 = vmatprep.subr.mxu0 0.0
        %2214 = vmatpush1.msra.mxu0 0.0
        %2215 = vmatprep.subr.mxu0 0.0
        %2216 = vmatpush1.msra.mxu0 0.0
        %2217 = vmatprep.subr.mxu0 0.0
        %2218 = vmatpush1.msra.mxu0 0.0
        %2219 = vmatprep.subr.mxu0 0.0
        %2220 = vmatpush1.msra.mxu0 0.0
        %2221 = vmatprep.subr.mxu0 0.0
        %2222 = vmatpush1.msra.mxu0 0.0
        %2223 = vmatprep.subr.mxu0 0.0
        %2224 = vmatpush1.msra.mxu0 0.0
        %2225 = vmatprep.subr.mxu0 0.0
        %2226 = vmatpush1.msra.mxu0 0.0
        %2227 = vmatprep.subr.mxu0 0.0
        %2228 = vmatpush1.msra.mxu0 0.0
        %2229 = vmatprep.subr.mxu0 0.0
        %2230 = vmatpush1.msra.mxu0 0.0
        %2231 = vmatprep.subr.mxu0 0.0
        %2232 = vmatpush1.msra.mxu0 0.0
        %2233 = vmatprep.subr.mxu0 0.0
        %2234 = vmatpush1.msra.mxu0 0.0
        %2235 = vmatprep.subr.mxu0 0.0
        %2236 = vmatpush1.msra.mxu0 0.0
        %2237 = vmatprep.subr.mxu0 0.0
        %2238 = vmatpush1.msra.mxu0 0.0
        %2239 = vmatprep.subr.mxu0 0.0
        %2240 = vmatpush1.msra.mxu0 0.0
        %2241 = vmatprep.subr.mxu0 0.0
        %2242 = vmatpush1.msra.mxu0 0.0
        %2243 = vmatprep.subr.mxu0 0.0
        %2244 = vmatpush1.msra.mxu0 0.0
        %2245 = vmatprep.subr.mxu0 0.0
        %2246 = vmatpush1.msra.mxu0 0.0
        %2247 = vmatprep.subr.mxu0 0.0
        %2248 = vmatpush1.msra.mxu0 0.0
        %2249 = vmatprep.subr.mxu0 0.0
        %2250 = vmatpush1.msra.mxu0 0.0
        %2251 = vmatprep.mubr.f32.mxu0 0.0
        %2252 = vmatmul.mubr.f32.gmra.mrb[0].mxu0 %v508
        %v2253 = vpop.f32.mrb[0].mxu0
        %v2254 = vadd.f32 %v2185, %v2253
        %v2255 = vpop.f32.mrb[0].mxu0
        %2256 = vdwg.mxu0
        %v2258 = vsel %vm750, %v2080, 0
        %v2261 = vsel %vm750, %v2167, 0
        %2263 = vmatprep.subr.mxu0 0.0
        %2264 = vmatpush1.xpose.msra.mxu0 %v2261
        %2265 = vmatprep.subr.mxu0 0.0
        %2266 = vmatpush1.xpose.msra.mxu0 0.0
        %2267 = vmatprep.subr.mxu0 0.0
        %2268 = vmatpush1.xpose.msra.mxu0 0.0
        %2269 = vmatprep.subr.mxu0 0.0
        %2270 = vmatpush1.xpose.msra.mxu0 0.0
        %2271 = vmatprep.subr.mxu0 0.0
        %2272 = vmatpush1.xpose.msra.mxu0 0.0
        %2273 = vmatprep.subr.mxu0 0.0
        %2274 = vmatpush1.xpose.msra.mxu0 0.0
        %2275 = vmatprep.subr.mxu0 0.0
        %2276 = vmatpush1.xpose.msra.mxu0 0.0
        %2277 = vmatprep.subr.mxu0 0.0
        %2278 = vmatpush1.xpose.msra.mxu0 0.0
        %2279 = vmatprep.subr.mxu0 0.0
        %2280 = vmatpush1.xpose.msra.mxu0 0.0
        %2281 = vmatprep.subr.mxu0 0.0
        %2282 = vmatpush1.xpose.msra.mxu0 0.0
        %2283 = vmatprep.subr.mxu0 0.0
        %2284 = vmatpush1.xpose.msra.mxu0 0.0
        %2285 = vmatprep.subr.mxu0 0.0
        %2286 = vmatpush1.xpose.msra.mxu0 0.0
        %2287 = vmatprep.subr.mxu0 0.0
        %2288 = vmatpush1.xpose.msra.mxu0 0.0
        %2289 = vmatprep.subr.mxu0 0.0
        %2290 = vmatpush1.xpose.msra.mxu0 0.0
        %2291 = vmatprep.subr.mxu0 0.0
        %2292 = vmatpush1.xpose.msra.mxu0 0.0
        %2293 = vmatprep.subr.mxu0 0.0
        %2294 = vmatpush1.xpose.msra.mxu0 0.0
        %2295 = vmatprep.subr.mxu0 0.0
        %2296 = vmatpush1.xpose.msra.mxu0 0.0
        %2297 = vmatprep.subr.mxu0 0.0
        %2298 = vmatpush1.xpose.msra.mxu0 0.0
        %2299 = vmatprep.subr.mxu0 0.0
        %2300 = vmatpush1.xpose.msra.mxu0 0.0
        %2301 = vmatprep.subr.mxu0 0.0
        %2302 = vmatpush1.xpose.msra.mxu0 0.0
        %2303 = vmatprep.subr.mxu0 0.0
        %2304 = vmatpush1.xpose.msra.mxu0 0.0
        %2305 = vmatprep.subr.mxu0 0.0
        %2306 = vmatpush1.xpose.msra.mxu0 0.0
        %2307 = vmatprep.subr.mxu0 0.0
        %2308 = vmatpush1.xpose.msra.mxu0 0.0
        %2309 = vmatprep.subr.mxu0 0.0
        %2310 = vmatpush1.xpose.msra.mxu0 0.0
        %2311 = vmatprep.subr.mxu0 0.0
        %2312 = vmatpush1.xpose.msra.mxu0 0.0
        %2313 = vmatprep.subr.mxu0 0.0
        %2314 = vmatpush1.xpose.msra.mxu0 0.0
        %2315 = vmatprep.subr.mxu0 0.0
        %2316 = vmatpush1.xpose.msra.mxu0 0.0
        %2317 = vmatprep.subr.mxu0 0.0
        %2318 = vmatpush1.xpose.msra.mxu0 0.0
        %2319 = vmatprep.subr.mxu0 0.0
        %2320 = vmatpush1.xpose.msra.mxu0 0.0
        %2321 = vmatprep.subr.mxu0 0.0
        %2322 = vmatpush1.xpose.msra.mxu0 0.0
        %2323 = vmatprep.subr.mxu0 0.0
        %2324 = vmatpush1.xpose.msra.mxu0 0.0
        %2325 = vmatprep.subr.mxu0 0.0
        %2326 = vmatpush1.xpose.msra.mxu0 0.0
        %2327 = vmatprep.mubr.f32.mxu0 0.0
        %2328 = vmatmul.mubr.f32.gmra.mrb[0].mxu0 %v2258
        %v2329 = vpop.f32.mrb[0].mxu0
        %v2330 = vadd.f32 0.0, %v2329
        %v2331 = vpop.f32.mrb[0].mxu0
        %2332 = vdwg.mxu0
        %v2333 = vmul.f32 %v2330, 0.25
        %s2334 = scalar_lea.vmem %s2, 24
        %v2335 = vld [vmem:[%s2334] sm:$0xff]
        %vm2336 = vcmp.eq.f32.partialorder %v2335, 0.0
        %v2337 = vsel %vm2336, -1e+09, %v2333
        %v2338 = vsel %vm831, %v2337, -inf
        %2339 = vmax.xlane.f32.xlu0 %v2338
        %v2340 = vpop.xlane.xlu0 %2339
        %v2341 = vsub.f32 %v2337, %v2340
        %v2342 = vmul.f32 %v2341, 1.442695
        %v2343 = vpow.pop %v2342
        %v2344 = vsel %vm831, %v2343, 0.0
        %2345 = vadd.xlane.f32.xlu0 %v2344
        %v2346 = vpop.xlane.xlu0 %2345
        %v2347 = vrcp.pop %v2346
        %v2348 = vmul.f32 %v2343, %v2347
        %v2350 = vsel %vm831, %v2348, 0
        %2352 = vmatprep.subr.mxu0 0.0
        %2353 = vmatpush1.msra.mxu0 %v2254
        %2354 = vmatprep.subr.mxu0 0.0
        %2355 = vmatpush1.msra.mxu0 0.0
        %2356 = vmatprep.subr.mxu0 0.0
        %2357 = vmatpush1.msra.mxu0 0.0
        %2358 = vmatprep.subr.mxu0 0.0
        %2359 = vmatpush1.msra.mxu0 0.0
        %2360 = vmatprep.subr.mxu0 0.0
        %2361 = vmatpush1.msra.mxu0 0.0
        %2362 = vmatprep.subr.mxu0 0.0
        %2363 = vmatpush1.msra.mxu0 0.0
        %2364 = vmatprep.subr.mxu0 0.0
        %2365 = vmatpush1.msra.mxu0 0.0
        %2366 = vmatprep.subr.mxu0 0.0
        %2367 = vmatpush1.msra.mxu0 0.0
        %2368 = vmatprep.subr.mxu0 0.0
        %2369 = vmatpush1.msra.mxu0 0.0
        %2370 = vmatprep.subr.mxu0 0.0
        %2371 = vmatpush1.msra.mxu0 0.0
        %2372 = vmatprep.subr.mxu0 0.0
        %2373 = vmatpush1.msra.mxu0 0.0
        %2374 = vmatprep.subr.mxu0 0.0
        %2375 = vmatpush1.msra.mxu0 0.0
        %2376 = vmatprep.subr.mxu0 0.0
        %2377 = vmatpush1.msra.mxu0 0.0
        %2378 = vmatprep.subr.mxu0 0.0
        %2379 = vmatpush1.msra.mxu0 0.0
        %2380 = vmatprep.subr.mxu0 0.0
        %2381 = vmatpush1.msra.mxu0 0.0
        %2382 = vmatprep.subr.mxu0 0.0
        %2383 = vmatpush1.msra.mxu0 0.0
        %2384 = vmatprep.subr.mxu0 0.0
        %2385 = vmatpush1.msra.mxu0 0.0
        %2386 = vmatprep.subr.mxu0 0.0
        %2387 = vmatpush1.msra.mxu0 0.0
        %2388 = vmatprep.subr.mxu0 0.0
        %2389 = vmatpush1.msra.mxu0 0.0
        %2390 = vmatprep.subr.mxu0 0.0
        %2391 = vmatpush1.msra.mxu0 0.0
        %2392 = vmatprep.subr.mxu0 0.0
        %2393 = vmatpush1.msra.mxu0 0.0
        %2394 = vmatprep.subr.mxu0 0.0
        %2395 = vmatpush1.msra.mxu0 0.0
        %2396 = vmatprep.subr.mxu0 0.0
        %2397 = vmatpush1.msra.mxu0 0.0
        %2398 = vmatprep.subr.mxu0 0.0
        %2399 = vmatpush1.msra.mxu0 0.0
        %2400 = vmatprep.subr.mxu0 0.0
        %2401 = vmatpush1.msra.mxu0 0.0
        %2402 = vmatprep.subr.mxu0 0.0
        %2403 = vmatpush1.msra.mxu0 0.0
        %2404 = vmatprep.subr.mxu0 0.0
        %2405 = vmatpush1.msra.mxu0 0.0
        %2406 = vmatprep.subr.mxu0 0.0
        %2407 = vmatpush1.msra.mxu0 0.0
        %2408 = vmatprep.subr.mxu0 0.0
        %2409 = vmatpush1.msra.mxu0 0.0
        %2410 = vmatprep.subr.mxu0 0.0
        %2411 = vmatpush1.msra.mxu0 0.0
        %2412 = vmatprep.subr.mxu0 0.0
        %2413 = vmatpush1.msra.mxu0 0.0
        %2414 = vmatprep.subr.mxu0 0.0
        %2415 = vmatpush1.msra.mxu0 0.0
        %2416 = vmatprep.mubr.f32.mxu0 0.0
        %2417 = vmatmul.mubr.f32.gmra.mrb[0].mxu0 %v2350
        %v2418 = vpop.f32.mrb[0].mxu0
        %v2419 = vadd.f32 0.0, %v2418
        %v2420 = vpop.f32.mrb[0].mxu0
        %2421 = vdwg.mxu0
        %s2422 = scalar_lea.vmem %s11, 48
        %v2423 = vld [vmem:[%s2422] sm:$0xff]
        %v2424 = vld [vmem:[%s2422 + $0x8] sm:$0xff]
        %v2426 = vsel %vm750, %v2419, 0
        %2428 = vmatprep.subr.mxu0 0.0
        %2429 = vmatpush1.msra.mxu0 %v2423
        %2430 = vmatprep.subr.mxu0 0.0
        %2431 = vmatpush1.msra.mxu0 %v2424
        %2432 = vmatprep.subr.mxu0 0.0
        %2433 = vmatpush1.msra.mxu0 0.0
        %2434 = vmatprep.subr.mxu0 0.0
        %2435 = vmatpush1.msra.mxu0 0.0
        %2436 = vmatprep.subr.mxu0 0.0
        %2437 = vmatpush1.msra.mxu0 0.0
        %2438 = vmatprep.subr.mxu0 0.0
        %2439 = vmatpush1.msra.mxu0 0.0
        %2440 = vmatprep.subr.mxu0 0.0
        %2441 = vmatpush1.msra.mxu0 0.0
        %2442 = vmatprep.subr.mxu0 0.0
        %2443 = vmatpush1.msra.mxu0 0.0
        %2444 = vmatprep.subr.mxu0 0.0
        %2445 = vmatpush1.msra.mxu0 0.0
        %2446 = vmatprep.subr.mxu0 0.0
        %2447 = vmatpush1.msra.mxu0 0.0
        %2448 = vmatprep.subr.mxu0 0.0
        %2449 = vmatpush1.msra.mxu0 0.0
        %2450 = vmatprep.subr.mxu0 0.0
        %2451 = vmatpush1.msra.mxu0 0.0
        %2452 = vmatprep.subr.mxu0 0.0
        %2453 = vmatpush1.msra.mxu0 0.0
        %2454 = vmatprep.subr.mxu0 0.0
        %2455 = vmatpush1.msra.mxu0 0.0
        %2456 = vmatprep.subr.mxu0 0.0
        %2457 = vmatpush1.msra.mxu0 0.0
        %2458 = vmatprep.subr.mxu0 0.0
        %2459 = vmatpush1.msra.mxu0 0.0
        %2460 = vmatprep.subr.mxu0 0.0
        %2461 = vmatpush1.msra.mxu0 0.0
        %2462 = vmatprep.subr.mxu0 0.0
        %2463 = vmatpush1.msra.mxu0 0.0
        %2464 = vmatprep.subr.mxu0 0.0
        %2465 = vmatpush1.msra.mxu0 0.0
        %2466 = vmatprep.subr.mxu0 0.0
        %2467 = vmatpush1.msra.mxu0 0.0
        %2468 = vmatprep.subr.mxu0 0.0
        %2469 = vmatpush1.msra.mxu0 0.0
        %2470 = vmatprep.subr.mxu0 0.0
        %2471 = vmatpush1.msra.mxu0 0.0
        %2472 = vmatprep.subr.mxu0 0.0
        %2473 = vmatpush1.msra.mxu0 0.0
        %2474 = vmatprep.subr.mxu0 0.0
        %2475 = vmatpush1.msra.mxu0 0.0
        %2476 = vmatprep.subr.mxu0 0.0
        %2477 = vmatpush1.msra.mxu0 0.0
        %2478 = vmatprep.subr.mxu0 0.0
        %2479 = vmatpush1.msra.mxu0 0.0
        %2480 = vmatprep.subr.mxu0 0.0
        %2481 = vmatpush1.msra.mxu0 0.0
        %2482 = vmatprep.subr.mxu0 0.0
        %2483 = vmatpush1.msra.mxu0 0.0
        %2484 = vmatprep.subr.mxu0 0.0
        %2485 = vmatpush1.msra.mxu0 0.0
        %2486 = vmatprep.subr.mxu0 0.0
        %2487 = vmatpush1.msra.mxu0 0.0
        %2488 = vmatprep.subr.mxu0 0.0
        %2489 = vmatpush1.msra.mxu0 0.0
        %2490 = vmatprep.subr.mxu0 0.0
        %2491 = vmatpush1.msra.mxu0 0.0
        %2492 = vmatprep.mubr.f32.mxu0 0.0
        %2493 = vmatmul.mubr.f32.gmra.mrb[0].mxu0 %v2426
        %v2494 = vpop.f32.mrb[0].mxu0
        %v2495 = vadd.f32 0.0, %v2494
        %v2496 = vpop.f32.mrb[0].mxu0
        %2497 = vdwg.mxu0
        %v2498 = vadd.f32 %v1995, %v2495
        %v2499 = vadd.f32 %v453, %v2498
        %v2500 = vld [vmem:[%s12] sm:$0x1]
        %v2502 = vlaneseq
        %v2503 = vshrl.u32 %v2502, 7
        %v2504 = vsub.s32 0, %v2503
        %v2505 = vrot.slane %v2500, %v2504
        %v2507 = vadd.f32 %v2499, %v2505
        %2508 = vst.msk [vmem:[%s444] sm:$0xff] %vm456, %v2507
        %s2509 = sand.u32 %s318, 1
        %s2510 = scalar_lea.sflag [#allocation3], %s2509
        %s2511 = sand.u32 %s318, 1
        %s2512 = smul.addr %s2511, 8
        %s2513 = scalar_lea.vmem [#allocation2], %s2512
        // Predicated region
        $region73: #{tpu_custom_call.1} parent=71 // pred_check
          %p2514 = pneg %p328
        $region74: #{tpu_custom_call.1} parent=71 // pred_check_branch
          %2516 = sbr.rel (%p2514) target = $region76
        $region75: #{tpu_custom_call.1} parent=71 // pred_region
          %s2518 = ssub.s32 128, 128
          %2519 = vsyncadd %s2510, %s2518
          %s2520 = smul.addr %s27, 128
          %s2521 = scalar_lea.hbm %s13, %s2520
          %s2523 = sshll.u32 %s2513, 4
          %s2524 = int_to_ptr.vmem [resolvable:$true] %s2523
          %2526 = dma.vmem_to_hbm [thread:$0]  %s2524, 128, %s2521, %s2510
        $region76: #{tpu_custom_call.1} parent=71 // pred_fallthru
          _
      $region72: #{tpu_custom_call.1} parent=5 // pred_fallthru
        _
      %p2527 = scmp.le.s32.totalorder 2, %s22
      // Predicated region
      $region77: #{tpu_custom_call.1} parent=5 // pred_check
        %p2528 = pneg %p2527
      $region78: #{tpu_custom_call.1} parent=5 // pred_check_branch
        %2530 = sbr.rel (%p2528) target = $region80
      $region79: #{tpu_custom_call.1} parent=5 // pred_region
        %s2531 = ssub.s32 %s22, 2
        // Predicated region
        $region81: #{tpu_custom_call.1} parent=79 // pred_check
          %p2532 = pneg %p334
        $region82: #{tpu_custom_call.1} parent=79 // pred_check_branch
          %2534 = sbr.rel (%p2532) target = $region84
        $region83: #{tpu_custom_call.1} parent=79 // pred_region
          %s2535 = sand.u32 %s319, 1
          %s2536 = scalar_lea.sflag [#allocation3], %s2535
          %s2537 = sand.u32 %s319, 1
          %s2538 = smul.addr %s2537, 8
          %s2539 = scalar_lea.vmem [#allocation2], %s2538
          %2540 = dma.done %s2536, 128
        $region84: #{tpu_custom_call.1} parent=79 // pred_fallthru
          _
      $region80: #{tpu_custom_call.1} parent=5 // pred_fallthru
        _
    $region6: #{tpu_custom_call.1} parent=1 // loop_footer
      %s26 = sadd.s32 1, %s22
    $region7: #{tpu_custom_call.1} parent=1 // loop_footer_branch
      %21 = sbr.rel target = $region3
    $region8: #{tpu_custom_call.1} parent=1 // loop_exit
      _
    %2541 = vsyncpa [#allocation3], 1
    %s2542 = scalar_lea.sflag [#allocation3], 1
    %2543 = vsyncpa %s2542, 1

</llo_original>
